<compile_context>
chip_gen: v7x
topology: tpu7x:2x2x1
jax: 0.10.0
libtpu: 0.0.40
codegen_flags: <defaults>
</compile_context>

<pallas_src>
import functools
import math

import numpy as np
import jax
import jax.numpy as jnp
from jax import lax
from jax.experimental import pallas as pl
from jax.experimental.pallas import tpu as pltpu


# --------------------------------------------------------------------------
# Pallas kernel: one full TransformerEncoderLayer for one batch element
# --------------------------------------------------------------------------
def _encoder_layer_kernel(x_ref, wq_ref, bq_ref, wk_ref, bk_ref, wv_ref, bv_ref,
                          wo_ref, bo_ref, w1_ref, b1_ref, w2_ref, b2_ref,
                          gamma_ref, beta_ref, o_ref, *, num_heads, scale, eps):
    x = x_ref[0].astype(jnp.float32)                        # (S, D)
    S, D = x.shape

    gamma = gamma_ref[...].astype(jnp.float32)              # (1, D)
    beta = beta_ref[...].astype(jnp.float32)                # (1, D)

    def layer_norm(t):
        mu = jnp.mean(t, axis=-1, keepdims=True)
        var = jnp.mean(jnp.square(t - mu), axis=-1, keepdims=True)
        return (t - mu) * lax.rsqrt(var + eps) * gamma + beta

    # ---- multi-head self-attention (heads unrolled; num_heads is static) ----
    attn = jnp.zeros((S, D), jnp.float32)
    for h in range(num_heads):
        wq = wq_ref[h].astype(jnp.float32)                  # (D, d_k) effective
        wk = wk_ref[h].astype(jnp.float32)
        wv = wv_ref[h].astype(jnp.float32)
        q = jnp.dot(x, wq, preferred_element_type=jnp.float32) + bq_ref[h].astype(jnp.float32)
        k = jnp.dot(x, wk, preferred_element_type=jnp.float32) + bk_ref[h].astype(jnp.float32)
        v = jnp.dot(x, wv, preferred_element_type=jnp.float32) + bv_ref[h].astype(jnp.float32)

        # scores = q @ k^T  (NT matmul on the MXU, no explicit transpose)
        s = lax.dot_general(q, k, (((1,), (1,)), ((), ())),
                            preferred_element_type=jnp.float32) * scale   # (S, S)
        s = s - jnp.max(s, axis=-1, keepdims=True)
        p = jnp.exp(s)
        p = p / jnp.sum(p, axis=-1, keepdims=True)
        head = jnp.dot(p, v, preferred_element_type=jnp.float32)          # (S, d_k)

        # output projection: concat(heads) @ Wo^T == sum_h head_h @ Wo^T[h-slice]
        attn = attn + jnp.dot(head, wo_ref[h].astype(jnp.float32),
                              preferred_element_type=jnp.float32)
    attn = attn + bo_ref[...].astype(jnp.float32)

    # residual + LayerNorm (dropout == identity in eval)
    x1 = layer_norm(x + attn)

    # feed-forward: Linear -> ReLU -> Linear
    h1 = jnp.dot(x1, w1_ref[...].astype(jnp.float32),
                 preferred_element_type=jnp.float32) + b1_ref[...].astype(jnp.float32)
    h1 = jnp.maximum(h1, 0.0)
    ff = jnp.dot(h1, w2_ref[...].astype(jnp.float32),
                 preferred_element_type=jnp.float32) + b2_ref[...].astype(jnp.float32)

    # residual + (same) LayerNorm again, matching the PyTorch module
    x2 = layer_norm(x1 + ff)
    o_ref[0] = x2.astype(o_ref.dtype)


# --------------------------------------------------------------------------
# Wrapper: parameter packing + pallas_call
# --------------------------------------------------------------------------
def _group_shuffle_perm(d_model, groups):
    """shuffled[..., j] == x[..., perm[j]] for view(G,C).transpose(-1,-2).view(d)."""
    cpg = d_model // groups
    return np.arange(d_model).reshape(groups, cpg).T.reshape(-1)


def _pack_layer_params(p, d_model, num_heads, groups):
    """Fold group shuffle + per-head Linears into dense effective weights."""
    d_k = d_model // num_heads
    perm = _group_shuffle_perm(d_model, groups)

    def eff_head_weights(w_raw):            # (H, d_k, d_k) torch (out,in) -> (H, D, d_k)
        w = np.asarray(w_raw, dtype=np.float32)
        out = np.zeros((num_heads, d_model, d_k), dtype=np.float32)
        for h in range(num_heads):
            rows = perm[h * d_k:(h + 1) * d_k]
            out[h][rows, :] = w[h].T
        return jnp.asarray(out)

    return {
        "wq": eff_head_weights(p["wq"]),
        "wk": eff_head_weights(p["wk"]),
        "wv": eff_head_weights(p["wv"]),
        "bq": jnp.asarray(p["bq"]).reshape(num_heads, 1, d_k),
        "bk": jnp.asarray(p["bk"]).reshape(num_heads, 1, d_k),
        "bv": jnp.asarray(p["bv"]).reshape(num_heads, 1, d_k),
        "wo": jnp.asarray(np.asarray(p["wo"], np.float32).T.reshape(num_heads, d_k, d_model)),
        "bo": jnp.asarray(p["bo"]).reshape(1, d_model),
        "w1": jnp.asarray(p["w1"]).T,                       # (D, 4D)
        "b1": jnp.asarray(p["b1"]).reshape(1, -1),
        "w2": jnp.asarray(p["w2"]).T,                       # (4D, D)
        "b2": jnp.asarray(p["b2"]).reshape(1, d_model),
        "gamma": jnp.asarray(p["gamma"]).reshape(1, d_model),
        "beta": jnp.asarray(p["beta"]).reshape(1, d_model),
    }


def _full_block_spec(shape):
    if len(shape) == 2:
        return pl.BlockSpec(shape, lambda b: (0, 0))
    assert len(shape) == 3
    return pl.BlockSpec(shape, lambda b: (0, 0, 0))


def encoder_layer_pallas(x, packed, *, num_heads, d_k, eps=1e-5):
    B, S, D = x.shape
    d_ff = packed["w1"].shape[-1]
    scale = 1.0 / math.sqrt(d_k)

    kernel = functools.partial(_encoder_layer_kernel, num_heads=num_heads,
                               scale=scale, eps=eps)

    operands = (x, packed["wq"], packed["bq"], packed["wk"], packed["bk"],
                packed["wv"], packed["bv"], packed["wo"], packed["bo"],
                packed["w1"], packed["b1"], packed["w2"], packed["b2"],
                packed["gamma"], packed["beta"])

    in_specs = [pl.BlockSpec((1, S, D), lambda b: (b, 0, 0))]
    in_specs += [_full_block_spec(op.shape) for op in operands[1:]]

    operand_bytes = sum(int(np.prod(op.shape)) * op.dtype.itemsize for op in operands)
    out_bytes = B * S * D * x.dtype.itemsize
    # explicit scoped-VMEM limit: generous vs. actual footprint, capped for v7x (64 MiB/TC)
    vmem_limit = int(min(max(8 * 1024 * 1024, 4 * operand_bytes), 48 * 1024 * 1024))

    flops = int(B * (3 * num_heads * 2 * S * D * d_k      # Q/K/V projections
                     + num_heads * 2 * (2 * S * S * d_k)  # scores + attn @ V
                     + 2 * S * D * D                      # output projection
                     + 2 * (2 * S * D * d_ff)))           # FFN
    cost = pl.CostEstimate(flops=flops,
                           transcendentals=int(B * (num_heads * S * S + 2 * S)),
                           bytes_accessed=int(operand_bytes + out_bytes))

    return pl.pallas_call(
        kernel,
        out_shape=jax.ShapeDtypeStruct((B, S, D), x.dtype),
        grid_spec=pltpu.PrefetchScalarGridSpec(
            num_scalar_prefetch=0,
            grid=(B,),
            in_specs=in_specs,
            out_specs=pl.BlockSpec((1, S, D), lambda b: (b, 0, 0)),
        ),
        compiler_params=pltpu.CompilerParams(
            dimension_semantics=("parallel",),
            vmem_limit_bytes=vmem_limit,
        ),
        cost_estimate=cost,
    )(*operands)


def transformer_encoder_pallas(x, layer_params, *, num_heads, groups):
    B, S, D = x.shape
    d_k = D // num_heads
    for p in layer_params:
        packed = _pack_layer_params(p, D, num_heads, groups)
        x = encoder_layer_pallas(x, packed, num_heads=num_heads, d_k=d_k)
    return x


# --------------------------------------------------------------------------
# Parameter init (torch-style shapes: weight is (out_features, in_features))
# --------------------------------------------------------------------------
def init_layer_params(key, d_model, num_heads):
    d_k = d_model // num_heads
    d_ff = 4 * d_model
    ks = jax.random.split(key, 8)

    def lin(k, out_f, in_f, prefix=()):
        bound = 1.0 / math.sqrt(in_f)
        kw, kb = jax.random.split(k)
        w = jax.random.uniform(kw, prefix + (out_f, in_f), jnp.float32, -bound, bound)
        b = jax.random.uniform(kb, prefix + (out_f,), jnp.float32, -bound, bound)
        return w, b

    wq, bq = lin(ks[0], d_k, d_k, (num_heads,))
    wk, bk = lin(ks[1], d_k, d_k, (num_heads,))
    wv, bv = lin(ks[2], d_k, d_k, (num_heads,))
    wo, bo = lin(ks[3], d_model, d_model)
    w1, b1 = lin(ks[4], d_ff, d_model)
    w2, b2 = lin(ks[5], d_model, d_ff)
    gamma = 1.0 + 0.1 * jax.random.normal(ks[6], (d_model,), jnp.float32)
    beta = 0.1 * jax.random.normal(ks[7], (d_model,), jnp.float32)
    return dict(wq=wq, bq=bq, wk=wk, bk=bk, wv=wv, bv=bv, wo=wo, bo=bo,
                w1=w1, b1=b1, w2=w2, b2=b2, gamma=gamma, beta=beta)


# --------------------------------------------------------------------------
# Pure-JAX reference mirroring the PyTorch module (eval mode, mask=None)
# --------------------------------------------------------------------------
_MM = functools.partial(jnp.matmul, precision=jax.lax.Precision.HIGHEST)


def _layer_norm_ref(x, gamma, beta, eps=1e-5):
    mu = jnp.mean(x, axis=-1, keepdims=True)
    var = jnp.mean(jnp.square(x - mu), axis=-1, keepdims=True)
    return (x - mu) / jnp.sqrt(var + eps) * gamma + beta


def _mha_ref(x, p, num_heads, groups):
    B, S, d = x.shape
    d_k = d // num_heads
    cpg = d // groups
    xs = x.reshape(B, S, groups, cpg)
    xs = jnp.swapaxes(xs, -1, -2).reshape(B, S, d)              # group shuffle
    split = lambda t: jnp.swapaxes(t.reshape(B, S, num_heads, d_k), 1, 2)
    q, k, v = split(xs), split(xs), split(xs)
    heads = []
    for h in range(num_heads):
        qh = _MM(q[:, h], p["wq"][h].T) + p["bq"][h]
        kh = _MM(k[:, h], p["wk"][h].T) + p["bk"][h]
        vh = _MM(v[:, h], p["wv"][h].T) + p["bv"][h]
        s = _MM(qh, jnp.swapaxes(kh, -1, -2)) / math.sqrt(d_k)
        a = jax.nn.softmax(s, axis=-1)
        heads.append(_MM(a, vh))
    concat = jnp.concatenate(heads, axis=-1)
    return _MM(concat, p["wo"].T) + p["bo"]


def _encoder_layer_ref(x, p, num_heads, groups):
    att = _mha_ref(x, p, num_heads, groups)
    x = _layer_norm_ref(x + att, p["gamma"], p["beta"])
    ff = _MM(jnp.maximum(_MM(x, p["w1"].T) + p["b1"], 0.0), p["w2"].T) + p["b2"]
    x = _layer_norm_ref(x + ff, p["gamma"], p["beta"])
    return x


def transformer_encoder_ref(x, layer_params, *, num_heads, groups):
    for p in layer_params:
        x = _encoder_layer_ref(x, p, num_heads, groups)
    return x


# --------------------------------------------------------------------------
if __name__ == "__main__":
    # d_model must be divisible by num_heads (=4) and by groups (=5)
    B, S, D = 2, 8, 40
    NUM_HEADS, GROUPS, NUM_LAYERS = 4, 5, 2

    key = jax.random.PRNGKey(0)
    key, xk = jax.random.split(key)
    x = jax.random.normal(xk, (B, S, D), dtype=jnp.float32)

    layer_params = []
    for _ in range(NUM_LAYERS):
        key, sub = jax.random.split(key)
        layer_params.append(init_layer_params(sub, D, NUM_HEADS))

    out = transformer_encoder_pallas(x, layer_params, num_heads=NUM_HEADS, groups=GROUPS)
    out = jax.block_until_ready(out)

    ref = transformer_encoder_ref(x, layer_params, num_heads=NUM_HEADS, groups=GROUPS)
    assert out.shape == ref.shape == (B, S, D)
    max_err = float(jnp.max(jnp.abs(out - ref)))
    assert jnp.allclose(out, ref, atol=2e-3, rtol=2e-3), (
        f"mismatch vs reference, max|diff|={max_err}")

    print("KERNEL_OK")
</pallas_src>

<mosaic_0001>
module attributes {stable_mosaic.version = 11 : i64} {
  func.func @_encoder_layer_kernel(%arg0: i32, %arg1: memref<1x8x40xf32, #tpu.memory_space<vmem>>, %arg2: memref<4x40x10xf32, #tpu.memory_space<vmem>>, %arg3: memref<4x1x10xf32, #tpu.memory_space<vmem>>, %arg4: memref<4x40x10xf32, #tpu.memory_space<vmem>>, %arg5: memref<4x1x10xf32, #tpu.memory_space<vmem>>, %arg6: memref<4x40x10xf32, #tpu.memory_space<vmem>>, %arg7: memref<4x1x10xf32, #tpu.memory_space<vmem>>, %arg8: memref<4x10x40xf32, #tpu.memory_space<vmem>>, %arg9: memref<1x40xf32, #tpu.memory_space<vmem>>, %arg10: memref<40x160xf32, #tpu.memory_space<vmem>>, %arg11: memref<1x160xf32, #tpu.memory_space<vmem>>, %arg12: memref<160x40xf32, #tpu.memory_space<vmem>>, %arg13: memref<1x40xf32, #tpu.memory_space<vmem>>, %arg14: memref<1x40xf32, #tpu.memory_space<vmem>>, %arg15: memref<1x40xf32, #tpu.memory_space<vmem>>, %arg16: memref<1x8x40xf32, #tpu.memory_space<vmem>>) attributes {dimension_semantics = [#tpu.dimension_semantics<parallel>], iteration_bounds = array<i64: 2>, scalar_prefetch = 0 : i64, scratch_operands = 0 : i64, tpu.core_type = #tpu.core_type<tc>, window_params = [{transform_indices = @transform_0, window_bounds = array<i64: 1, 8, 40>}, {pipeline_mode = #tpu.pipeline_mode<synchronous>, transform_indices = @transform_1, window_bounds = array<i64: 4, 40, 10>}, {pipeline_mode = #tpu.pipeline_mode<synchronous>, transform_indices = @transform_2, window_bounds = array<i64: 4, 1, 10>}, {pipeline_mode = #tpu.pipeline_mode<synchronous>, transform_indices = @transform_3, window_bounds = array<i64: 4, 40, 10>}, {pipeline_mode = #tpu.pipeline_mode<synchronous>, transform_indices = @transform_4, window_bounds = array<i64: 4, 1, 10>}, {pipeline_mode = #tpu.pipeline_mode<synchronous>, transform_indices = @transform_5, window_bounds = array<i64: 4, 40, 10>}, {pipeline_mode = #tpu.pipeline_mode<synchronous>, transform_indices = @transform_6, window_bounds = array<i64: 4, 1, 10>}, {pipeline_mode = #tpu.pipeline_mode<synchronous>, transform_indices = @transform_7, window_bounds = array<i64: 4, 10, 40>}, {pipeline_mode = #tpu.pipeline_mode<synchronous>, transform_indices = @transform_8, window_bounds = array<i64: 1, 40>}, {pipeline_mode = #tpu.pipeline_mode<synchronous>, transform_indices = @transform_9, window_bounds = array<i64: 40, 160>}, {pipeline_mode = #tpu.pipeline_mode<synchronous>, transform_indices = @transform_10, window_bounds = array<i64: 1, 160>}, {pipeline_mode = #tpu.pipeline_mode<synchronous>, transform_indices = @transform_11, window_bounds = array<i64: 160, 40>}, {pipeline_mode = #tpu.pipeline_mode<synchronous>, transform_indices = @transform_12, window_bounds = array<i64: 1, 40>}, {pipeline_mode = #tpu.pipeline_mode<synchronous>, transform_indices = @transform_13, window_bounds = array<i64: 1, 40>}, {pipeline_mode = #tpu.pipeline_mode<synchronous>, transform_indices = @transform_14, window_bounds = array<i64: 1, 40>}, {transform_indices = @transform_15, window_bounds = array<i64: 1, 8, 40>}]} {
    %c0 = arith.constant 0 : index
    %c0_0 = arith.constant 0 : index
    %c0_1 = arith.constant 0 : index
    %0 = vector.load %arg1[%c0, %c0_0, %c0_1] : memref<1x8x40xf32, #tpu.memory_space<vmem>>, vector<1x8x40xf32>
    %1 = vector.shape_cast %0 : vector<1x8x40xf32> to vector<8x40xf32>
    %c0_2 = arith.constant 0 : index
    %c0_3 = arith.constant 0 : index
    %2 = vector.load %arg14[%c0_2, %c0_3] : memref<1x40xf32, #tpu.memory_space<vmem>>, vector<1x40xf32>
    %c0_4 = arith.constant 0 : index
    %c0_5 = arith.constant 0 : index
    %3 = vector.load %arg15[%c0_4, %c0_5] : memref<1x40xf32, #tpu.memory_space<vmem>>, vector<1x40xf32>
    %cst = arith.constant 0.000000e+00 : f32
    %4 = vector.broadcast %cst : f32 to vector<8x40xf32>
    %c0_6 = arith.constant 0 : index
    %c0_7 = arith.constant 0 : index
    %c0_8 = arith.constant 0 : index
    %5 = vector.load %arg2[%c0_6, %c0_7, %c0_8] : memref<4x40x10xf32, #tpu.memory_space<vmem>>, vector<1x40x10xf32>
    %6 = vector.shape_cast %5 : vector<1x40x10xf32> to vector<40x10xf32>
    %c0_9 = arith.constant 0 : index
    %c0_10 = arith.constant 0 : index
    %c0_11 = arith.constant 0 : index
    %7 = vector.load %arg4[%c0_9, %c0_10, %c0_11] : memref<4x40x10xf32, #tpu.memory_space<vmem>>, vector<1x40x10xf32>
    %8 = vector.shape_cast %7 : vector<1x40x10xf32> to vector<40x10xf32>
    %c0_12 = arith.constant 0 : index
    %c0_13 = arith.constant 0 : index
    %c0_14 = arith.constant 0 : index
    %9 = vector.load %arg6[%c0_12, %c0_13, %c0_14] : memref<4x40x10xf32, #tpu.memory_space<vmem>>, vector<1x40x10xf32>
    %10 = vector.shape_cast %9 : vector<1x40x10xf32> to vector<40x10xf32>
    %cst_15 = arith.constant dense<0.000000e+00> : vector<8x10xf32>
    %11 = tpu.matmul %1, %6, %cst_15 {dimension_numbers = #tpu.dot_dimension_numbers<[1], [0], [0], [1], [0, 0, 1, 1], [], []>} : vector<8x40xf32>, vector<40x10xf32>, vector<8x10xf32> -> vector<8x10xf32>
    %c0_16 = arith.constant 0 : index
    %c0_17 = arith.constant 0 : index
    %c0_18 = arith.constant 0 : index
    %12 = vector.load %arg3[%c0_16, %c0_17, %c0_18] : memref<4x1x10xf32, #tpu.memory_space<vmem>>, vector<1x1x10xf32>
    %13 = vector.shape_cast %12 : vector<1x1x10xf32> to vector<1x10xf32>
    %14 = vector.broadcast %13 : vector<1x10xf32> to vector<8x10xf32>
    %15 = arith.addf %11, %14 : vector<8x10xf32>
    %cst_19 = arith.constant dense<0.000000e+00> : vector<8x10xf32>
    %16 = tpu.matmul %1, %8, %cst_19 {dimension_numbers = #tpu.dot_dimension_numbers<[1], [0], [0], [1], [0, 0, 1, 1], [], []>} : vector<8x40xf32>, vector<40x10xf32>, vector<8x10xf32> -> vector<8x10xf32>
    %c0_20 = arith.constant 0 : index
    %c0_21 = arith.constant 0 : index
    %c0_22 = arith.constant 0 : index
    %17 = vector.load %arg5[%c0_20, %c0_21, %c0_22] : memref<4x1x10xf32, #tpu.memory_space<vmem>>, vector<1x1x10xf32>
    %18 = vector.shape_cast %17 : vector<1x1x10xf32> to vector<1x10xf32>
    %19 = vector.broadcast %18 : vector<1x10xf32> to vector<8x10xf32>
    %20 = arith.addf %16, %19 : vector<8x10xf32>
    %cst_23 = arith.constant dense<0.000000e+00> : vector<8x10xf32>
    %21 = tpu.matmul %1, %10, %cst_23 {dimension_numbers = #tpu.dot_dimension_numbers<[1], [0], [0], [1], [0, 0, 1, 1], [], []>} : vector<8x40xf32>, vector<40x10xf32>, vector<8x10xf32> -> vector<8x10xf32>
    %c0_24 = arith.constant 0 : index
    %c0_25 = arith.constant 0 : index
    %c0_26 = arith.constant 0 : index
    %22 = vector.load %arg7[%c0_24, %c0_25, %c0_26] : memref<4x1x10xf32, #tpu.memory_space<vmem>>, vector<1x1x10xf32>
    %23 = vector.shape_cast %22 : vector<1x1x10xf32> to vector<1x10xf32>
    %24 = vector.broadcast %23 : vector<1x10xf32> to vector<8x10xf32>
    %25 = arith.addf %21, %24 : vector<8x10xf32>
    %cst_27 = arith.constant dense<0.000000e+00> : vector<8x8xf32>
    %26 = tpu.matmul %15, %20, %cst_27 {dimension_numbers = #tpu.dot_dimension_numbers<[1], [1], [0], [0], [0, 0, 1, 0], [], []>} : vector<8x10xf32>, vector<8x10xf32>, vector<8x8xf32> -> vector<8x8xf32>
    %cst_28 = arith.constant 0.316227764 : f32
    %27 = vector.broadcast %cst_28 : f32 to vector<8x8xf32>
    %28 = arith.mulf %26, %27 : vector<8x8xf32>
    %cst_29 = arith.constant dense<0xFF800000> : vector<8xf32>
    %29 = vector.multi_reduction <maximumf>, %28, %cst_29 [1] : vector<8x8xf32> to vector<8xf32>
    %30 = vector.shape_cast %29 : vector<8xf32> to vector<8x1xf32>
    %31 = vector.broadcast %30 : vector<8x1xf32> to vector<8x8xf32>
    %32 = arith.subf %28, %31 : vector<8x8xf32>
    %33 = math.exp %32 : vector<8x8xf32>
    %cst_30 = arith.constant dense<0.000000e+00> : vector<8xf32>
    %34 = vector.multi_reduction <add>, %33, %cst_30 [1] : vector<8x8xf32> to vector<8xf32>
    %35 = vector.shape_cast %34 : vector<8xf32> to vector<8x1xf32>
    %36 = vector.broadcast %35 : vector<8x1xf32> to vector<8x8xf32>
    %37 = arith.divf %33, %36 : vector<8x8xf32>
    %cst_31 = arith.constant dense<0.000000e+00> : vector<8x10xf32>
    %38 = tpu.matmul %37, %25, %cst_31 {dimension_numbers = #tpu.dot_dimension_numbers<[1], [0], [0], [1], [0, 0, 1, 1], [], []>} : vector<8x8xf32>, vector<8x10xf32>, vector<8x10xf32> -> vector<8x10xf32>
    %c0_32 = arith.constant 0 : index
    %c0_33 = arith.constant 0 : index
    %c0_34 = arith.constant 0 : index
    %39 = vector.load %arg8[%c0_32, %c0_33, %c0_34] : memref<4x10x40xf32, #tpu.memory_space<vmem>>, vector<1x10x40xf32>
    %40 = vector.shape_cast %39 : vector<1x10x40xf32> to vector<10x40xf32>
    %cst_35 = arith.constant dense<0.000000e+00> : vector<8x40xf32>
    %41 = tpu.matmul %38, %40, %cst_35 {dimension_numbers = #tpu.dot_dimension_numbers<[1], [0], [0], [1], [0, 0, 1, 1], [], []>} : vector<8x10xf32>, vector<10x40xf32>, vector<8x40xf32> -> vector<8x40xf32>
    %42 = arith.addf %4, %41 : vector<8x40xf32>
    %c1 = arith.constant 1 : index
    %c0_36 = arith.constant 0 : index
    %c0_37 = arith.constant 0 : index
    %43 = vector.load %arg2[%c1, %c0_36, %c0_37] : memref<4x40x10xf32, #tpu.memory_space<vmem>>, vector<1x40x10xf32>
    %44 = vector.shape_cast %43 : vector<1x40x10xf32> to vector<40x10xf32>
    %c1_38 = arith.constant 1 : index
    %c0_39 = arith.constant 0 : index
    %c0_40 = arith.constant 0 : index
    %45 = vector.load %arg4[%c1_38, %c0_39, %c0_40] : memref<4x40x10xf32, #tpu.memory_space<vmem>>, vector<1x40x10xf32>
    %46 = vector.shape_cast %45 : vector<1x40x10xf32> to vector<40x10xf32>
    %c1_41 = arith.constant 1 : index
    %c0_42 = arith.constant 0 : index
    %c0_43 = arith.constant 0 : index
    %47 = vector.load %arg6[%c1_41, %c0_42, %c0_43] : memref<4x40x10xf32, #tpu.memory_space<vmem>>, vector<1x40x10xf32>
    %48 = vector.shape_cast %47 : vector<1x40x10xf32> to vector<40x10xf32>
    %cst_44 = arith.constant dense<0.000000e+00> : vector<8x10xf32>
    %49 = tpu.matmul %1, %44, %cst_44 {dimension_numbers = #tpu.dot_dimension_numbers<[1], [0], [0], [1], [0, 0, 1, 1], [], []>} : vector<8x40xf32>, vector<40x10xf32>, vector<8x10xf32> -> vector<8x10xf32>
    %c1_45 = arith.constant 1 : index
    %c0_46 = arith.constant 0 : index
    %c0_47 = arith.constant 0 : index
    %50 = vector.load %arg3[%c1_45, %c0_46, %c0_47] : memref<4x1x10xf32, #tpu.memory_space<vmem>>, vector<1x1x10xf32>
    %51 = vector.shape_cast %50 : vector<1x1x10xf32> to vector<1x10xf32>
    %52 = vector.broadcast %51 : vector<1x10xf32> to vector<8x10xf32>
    %53 = arith.addf %49, %52 : vector<8x10xf32>
    %cst_48 = arith.constant dense<0.000000e+00> : vector<8x10xf32>
    %54 = tpu.matmul %1, %46, %cst_48 {dimension_numbers = #tpu.dot_dimension_numbers<[1], [0], [0], [1], [0, 0, 1, 1], [], []>} : vector<8x40xf32>, vector<40x10xf32>, vector<8x10xf32> -> vector<8x10xf32>
    %c1_49 = arith.constant 1 : index
    %c0_50 = arith.constant 0 : index
    %c0_51 = arith.constant 0 : index
    %55 = vector.load %arg5[%c1_49, %c0_50, %c0_51] : memref<4x1x10xf32, #tpu.memory_space<vmem>>, vector<1x1x10xf32>
    %56 = vector.shape_cast %55 : vector<1x1x10xf32> to vector<1x10xf32>
    %57 = vector.broadcast %56 : vector<1x10xf32> to vector<8x10xf32>
    %58 = arith.addf %54, %57 : vector<8x10xf32>
    %cst_52 = arith.constant dense<0.000000e+00> : vector<8x10xf32>
    %59 = tpu.matmul %1, %48, %cst_52 {dimension_numbers = #tpu.dot_dimension_numbers<[1], [0], [0], [1], [0, 0, 1, 1], [], []>} : vector<8x40xf32>, vector<40x10xf32>, vector<8x10xf32> -> vector<8x10xf32>
    %c1_53 = arith.constant 1 : index
    %c0_54 = arith.constant 0 : index
    %c0_55 = arith.constant 0 : index
    %60 = vector.load %arg7[%c1_53, %c0_54, %c0_55] : memref<4x1x10xf32, #tpu.memory_space<vmem>>, vector<1x1x10xf32>
    %61 = vector.shape_cast %60 : vector<1x1x10xf32> to vector<1x10xf32>
    %62 = vector.broadcast %61 : vector<1x10xf32> to vector<8x10xf32>
    %63 = arith.addf %59, %62 : vector<8x10xf32>
    %cst_56 = arith.constant dense<0.000000e+00> : vector<8x8xf32>
    %64 = tpu.matmul %53, %58, %cst_56 {dimension_numbers = #tpu.dot_dimension_numbers<[1], [1], [0], [0], [0, 0, 1, 0], [], []>} : vector<8x10xf32>, vector<8x10xf32>, vector<8x8xf32> -> vector<8x8xf32>
    %cst_57 = arith.constant 0.316227764 : f32
    %65 = vector.broadcast %cst_57 : f32 to vector<8x8xf32>
    %66 = arith.mulf %64, %65 : vector<8x8xf32>
    %cst_58 = arith.constant dense<0xFF800000> : vector<8xf32>
    %67 = vector.multi_reduction <maximumf>, %66, %cst_58 [1] : vector<8x8xf32> to vector<8xf32>
    %68 = vector.shape_cast %67 : vector<8xf32> to vector<8x1xf32>
    %69 = vector.broadcast %68 : vector<8x1xf32> to vector<8x8xf32>
    %70 = arith.subf %66, %69 : vector<8x8xf32>
    %71 = math.exp %70 : vector<8x8xf32>
    %cst_59 = arith.constant dense<0.000000e+00> : vector<8xf32>
    %72 = vector.multi_reduction <add>, %71, %cst_59 [1] : vector<8x8xf32> to vector<8xf32>
    %73 = vector.shape_cast %72 : vector<8xf32> to vector<8x1xf32>
    %74 = vector.broadcast %73 : vector<8x1xf32> to vector<8x8xf32>
    %75 = arith.divf %71, %74 : vector<8x8xf32>
    %cst_60 = arith.constant dense<0.000000e+00> : vector<8x10xf32>
    %76 = tpu.matmul %75, %63, %cst_60 {dimension_numbers = #tpu.dot_dimension_numbers<[1], [0], [0], [1], [0, 0, 1, 1], [], []>} : vector<8x8xf32>, vector<8x10xf32>, vector<8x10xf32> -> vector<8x10xf32>
    %c1_61 = arith.constant 1 : index
    %c0_62 = arith.constant 0 : index
    %c0_63 = arith.constant 0 : index
    %77 = vector.load %arg8[%c1_61, %c0_62, %c0_63] : memref<4x10x40xf32, #tpu.memory_space<vmem>>, vector<1x10x40xf32>
    %78 = vector.shape_cast %77 : vector<1x10x40xf32> to vector<10x40xf32>
    %cst_64 = arith.constant dense<0.000000e+00> : vector<8x40xf32>
    %79 = tpu.matmul %76, %78, %cst_64 {dimension_numbers = #tpu.dot_dimension_numbers<[1], [0], [0], [1], [0, 0, 1, 1], [], []>} : vector<8x10xf32>, vector<10x40xf32>, vector<8x40xf32> -> vector<8x40xf32>
    %80 = arith.addf %42, %79 : vector<8x40xf32>
    %c2 = arith.constant 2 : index
    %c0_65 = arith.constant 0 : index
    %c0_66 = arith.constant 0 : index
    %81 = vector.load %arg2[%c2, %c0_65, %c0_66] : memref<4x40x10xf32, #tpu.memory_space<vmem>>, vector<1x40x10xf32>
    %82 = vector.shape_cast %81 : vector<1x40x10xf32> to vector<40x10xf32>
    %c2_67 = arith.constant 2 : index
    %c0_68 = arith.constant 0 : index
    %c0_69 = arith.constant 0 : index
    %83 = vector.load %arg4[%c2_67, %c0_68, %c0_69] : memref<4x40x10xf32, #tpu.memory_space<vmem>>, vector<1x40x10xf32>
    %84 = vector.shape_cast %83 : vector<1x40x10xf32> to vector<40x10xf32>
    %c2_70 = arith.constant 2 : index
    %c0_71 = arith.constant 0 : index
    %c0_72 = arith.constant 0 : index
    %85 = vector.load %arg6[%c2_70, %c0_71, %c0_72] : memref<4x40x10xf32, #tpu.memory_space<vmem>>, vector<1x40x10xf32>
    %86 = vector.shape_cast %85 : vector<1x40x10xf32> to vector<40x10xf32>
    %cst_73 = arith.constant dense<0.000000e+00> : vector<8x10xf32>
    %87 = tpu.matmul %1, %82, %cst_73 {dimension_numbers = #tpu.dot_dimension_numbers<[1], [0], [0], [1], [0, 0, 1, 1], [], []>} : vector<8x40xf32>, vector<40x10xf32>, vector<8x10xf32> -> vector<8x10xf32>
    %c2_74 = arith.constant 2 : index
    %c0_75 = arith.constant 0 : index
    %c0_76 = arith.constant 0 : index
    %88 = vector.load %arg3[%c2_74, %c0_75, %c0_76] : memref<4x1x10xf32, #tpu.memory_space<vmem>>, vector<1x1x10xf32>
    %89 = vector.shape_cast %88 : vector<1x1x10xf32> to vector<1x10xf32>
    %90 = vector.broadcast %89 : vector<1x10xf32> to vector<8x10xf32>
    %91 = arith.addf %87, %90 : vector<8x10xf32>
    %cst_77 = arith.constant dense<0.000000e+00> : vector<8x10xf32>
    %92 = tpu.matmul %1, %84, %cst_77 {dimension_numbers = #tpu.dot_dimension_numbers<[1], [0], [0], [1], [0, 0, 1, 1], [], []>} : vector<8x40xf32>, vector<40x10xf32>, vector<8x10xf32> -> vector<8x10xf32>
    %c2_78 = arith.constant 2 : index
    %c0_79 = arith.constant 0 : index
    %c0_80 = arith.constant 0 : index
    %93 = vector.load %arg5[%c2_78, %c0_79, %c0_80] : memref<4x1x10xf32, #tpu.memory_space<vmem>>, vector<1x1x10xf32>
    %94 = vector.shape_cast %93 : vector<1x1x10xf32> to vector<1x10xf32>
    %95 = vector.broadcast %94 : vector<1x10xf32> to vector<8x10xf32>
    %96 = arith.addf %92, %95 : vector<8x10xf32>
    %cst_81 = arith.constant dense<0.000000e+00> : vector<8x10xf32>
    %97 = tpu.matmul %1, %86, %cst_81 {dimension_numbers = #tpu.dot_dimension_numbers<[1], [0], [0], [1], [0, 0, 1, 1], [], []>} : vector<8x40xf32>, vector<40x10xf32>, vector<8x10xf32> -> vector<8x10xf32>
    %c2_82 = arith.constant 2 : index
    %c0_83 = arith.constant 0 : index
    %c0_84 = arith.constant 0 : index
    %98 = vector.load %arg7[%c2_82, %c0_83, %c0_84] : memref<4x1x10xf32, #tpu.memory_space<vmem>>, vector<1x1x10xf32>
    %99 = vector.shape_cast %98 : vector<1x1x10xf32> to vector<1x10xf32>
    %100 = vector.broadcast %99 : vector<1x10xf32> to vector<8x10xf32>
    %101 = arith.addf %97, %100 : vector<8x10xf32>
    %cst_85 = arith.constant dense<0.000000e+00> : vector<8x8xf32>
    %102 = tpu.matmul %91, %96, %cst_85 {dimension_numbers = #tpu.dot_dimension_numbers<[1], [1], [0], [0], [0, 0, 1, 0], [], []>} : vector<8x10xf32>, vector<8x10xf32>, vector<8x8xf32> -> vector<8x8xf32>
    %cst_86 = arith.constant 0.316227764 : f32
    %103 = vector.broadcast %cst_86 : f32 to vector<8x8xf32>
    %104 = arith.mulf %102, %103 : vector<8x8xf32>
    %cst_87 = arith.constant dense<0xFF800000> : vector<8xf32>
    %105 = vector.multi_reduction <maximumf>, %104, %cst_87 [1] : vector<8x8xf32> to vector<8xf32>
    %106 = vector.shape_cast %105 : vector<8xf32> to vector<8x1xf32>
    %107 = vector.broadcast %106 : vector<8x1xf32> to vector<8x8xf32>
    %108 = arith.subf %104, %107 : vector<8x8xf32>
    %109 = math.exp %108 : vector<8x8xf32>
    %cst_88 = arith.constant dense<0.000000e+00> : vector<8xf32>
    %110 = vector.multi_reduction <add>, %109, %cst_88 [1] : vector<8x8xf32> to vector<8xf32>
    %111 = vector.shape_cast %110 : vector<8xf32> to vector<8x1xf32>
    %112 = vector.broadcast %111 : vector<8x1xf32> to vector<8x8xf32>
    %113 = arith.divf %109, %112 : vector<8x8xf32>
    %cst_89 = arith.constant dense<0.000000e+00> : vector<8x10xf32>
    %114 = tpu.matmul %113, %101, %cst_89 {dimension_numbers = #tpu.dot_dimension_numbers<[1], [0], [0], [1], [0, 0, 1, 1], [], []>} : vector<8x8xf32>, vector<8x10xf32>, vector<8x10xf32> -> vector<8x10xf32>
    %c2_90 = arith.constant 2 : index
    %c0_91 = arith.constant 0 : index
    %c0_92 = arith.constant 0 : index
    %115 = vector.load %arg8[%c2_90, %c0_91, %c0_92] : memref<4x10x40xf32, #tpu.memory_space<vmem>>, vector<1x10x40xf32>
    %116 = vector.shape_cast %115 : vector<1x10x40xf32> to vector<10x40xf32>
    %cst_93 = arith.constant dense<0.000000e+00> : vector<8x40xf32>
    %117 = tpu.matmul %114, %116, %cst_93 {dimension_numbers = #tpu.dot_dimension_numbers<[1], [0], [0], [1], [0, 0, 1, 1], [], []>} : vector<8x10xf32>, vector<10x40xf32>, vector<8x40xf32> -> vector<8x40xf32>
    %118 = arith.addf %80, %117 : vector<8x40xf32>
    %c3 = arith.constant 3 : index
    %c0_94 = arith.constant 0 : index
    %c0_95 = arith.constant 0 : index
    %119 = vector.load %arg2[%c3, %c0_94, %c0_95] : memref<4x40x10xf32, #tpu.memory_space<vmem>>, vector<1x40x10xf32>
    %120 = vector.shape_cast %119 : vector<1x40x10xf32> to vector<40x10xf32>
    %c3_96 = arith.constant 3 : index
    %c0_97 = arith.constant 0 : index
    %c0_98 = arith.constant 0 : index
    %121 = vector.load %arg4[%c3_96, %c0_97, %c0_98] : memref<4x40x10xf32, #tpu.memory_space<vmem>>, vector<1x40x10xf32>
    %122 = vector.shape_cast %121 : vector<1x40x10xf32> to vector<40x10xf32>
    %c3_99 = arith.constant 3 : index
    %c0_100 = arith.constant 0 : index
    %c0_101 = arith.constant 0 : index
    %123 = vector.load %arg6[%c3_99, %c0_100, %c0_101] : memref<4x40x10xf32, #tpu.memory_space<vmem>>, vector<1x40x10xf32>
    %124 = vector.shape_cast %123 : vector<1x40x10xf32> to vector<40x10xf32>
    %cst_102 = arith.constant dense<0.000000e+00> : vector<8x10xf32>
    %125 = tpu.matmul %1, %120, %cst_102 {dimension_numbers = #tpu.dot_dimension_numbers<[1], [0], [0], [1], [0, 0, 1, 1], [], []>} : vector<8x40xf32>, vector<40x10xf32>, vector<8x10xf32> -> vector<8x10xf32>
    %c3_103 = arith.constant 3 : index
    %c0_104 = arith.constant 0 : index
    %c0_105 = arith.constant 0 : index
    %126 = vector.load %arg3[%c3_103, %c0_104, %c0_105] : memref<4x1x10xf32, #tpu.memory_space<vmem>>, vector<1x1x10xf32>
    %127 = vector.shape_cast %126 : vector<1x1x10xf32> to vector<1x10xf32>
    %128 = vector.broadcast %127 : vector<1x10xf32> to vector<8x10xf32>
    %129 = arith.addf %125, %128 : vector<8x10xf32>
    %cst_106 = arith.constant dense<0.000000e+00> : vector<8x10xf32>
    %130 = tpu.matmul %1, %122, %cst_106 {dimension_numbers = #tpu.dot_dimension_numbers<[1], [0], [0], [1], [0, 0, 1, 1], [], []>} : vector<8x40xf32>, vector<40x10xf32>, vector<8x10xf32> -> vector<8x10xf32>
    %c3_107 = arith.constant 3 : index
    %c0_108 = arith.constant 0 : index
    %c0_109 = arith.constant 0 : index
    %131 = vector.load %arg5[%c3_107, %c0_108, %c0_109] : memref<4x1x10xf32, #tpu.memory_space<vmem>>, vector<1x1x10xf32>
    %132 = vector.shape_cast %131 : vector<1x1x10xf32> to vector<1x10xf32>
    %133 = vector.broadcast %132 : vector<1x10xf32> to vector<8x10xf32>
    %134 = arith.addf %130, %133 : vector<8x10xf32>
    %cst_110 = arith.constant dense<0.000000e+00> : vector<8x10xf32>
    %135 = tpu.matmul %1, %124, %cst_110 {dimension_numbers = #tpu.dot_dimension_numbers<[1], [0], [0], [1], [0, 0, 1, 1], [], []>} : vector<8x40xf32>, vector<40x10xf32>, vector<8x10xf32> -> vector<8x10xf32>
    %c3_111 = arith.constant 3 : index
    %c0_112 = arith.constant 0 : index
    %c0_113 = arith.constant 0 : index
    %136 = vector.load %arg7[%c3_111, %c0_112, %c0_113] : memref<4x1x10xf32, #tpu.memory_space<vmem>>, vector<1x1x10xf32>
    %137 = vector.shape_cast %136 : vector<1x1x10xf32> to vector<1x10xf32>
    %138 = vector.broadcast %137 : vector<1x10xf32> to vector<8x10xf32>
    %139 = arith.addf %135, %138 : vector<8x10xf32>
    %cst_114 = arith.constant dense<0.000000e+00> : vector<8x8xf32>
    %140 = tpu.matmul %129, %134, %cst_114 {dimension_numbers = #tpu.dot_dimension_numbers<[1], [1], [0], [0], [0, 0, 1, 0], [], []>} : vector<8x10xf32>, vector<8x10xf32>, vector<8x8xf32> -> vector<8x8xf32>
    %cst_115 = arith.constant 0.316227764 : f32
    %141 = vector.broadcast %cst_115 : f32 to vector<8x8xf32>
    %142 = arith.mulf %140, %141 : vector<8x8xf32>
    %cst_116 = arith.constant dense<0xFF800000> : vector<8xf32>
    %143 = vector.multi_reduction <maximumf>, %142, %cst_116 [1] : vector<8x8xf32> to vector<8xf32>
    %144 = vector.shape_cast %143 : vector<8xf32> to vector<8x1xf32>
    %145 = vector.broadcast %144 : vector<8x1xf32> to vector<8x8xf32>
    %146 = arith.subf %142, %145 : vector<8x8xf32>
    %147 = math.exp %146 : vector<8x8xf32>
    %cst_117 = arith.constant dense<0.000000e+00> : vector<8xf32>
    %148 = vector.multi_reduction <add>, %147, %cst_117 [1] : vector<8x8xf32> to vector<8xf32>
    %149 = vector.shape_cast %148 : vector<8xf32> to vector<8x1xf32>
    %150 = vector.broadcast %149 : vector<8x1xf32> to vector<8x8xf32>
    %151 = arith.divf %147, %150 : vector<8x8xf32>
    %cst_118 = arith.constant dense<0.000000e+00> : vector<8x10xf32>
    %152 = tpu.matmul %151, %139, %cst_118 {dimension_numbers = #tpu.dot_dimension_numbers<[1], [0], [0], [1], [0, 0, 1, 1], [], []>} : vector<8x8xf32>, vector<8x10xf32>, vector<8x10xf32> -> vector<8x10xf32>
    %c3_119 = arith.constant 3 : index
    %c0_120 = arith.constant 0 : index
    %c0_121 = arith.constant 0 : index
    %153 = vector.load %arg8[%c3_119, %c0_120, %c0_121] : memref<4x10x40xf32, #tpu.memory_space<vmem>>, vector<1x10x40xf32>
    %154 = vector.shape_cast %153 : vector<1x10x40xf32> to vector<10x40xf32>
    %cst_122 = arith.constant dense<0.000000e+00> : vector<8x40xf32>
    %155 = tpu.matmul %152, %154, %cst_122 {dimension_numbers = #tpu.dot_dimension_numbers<[1], [0], [0], [1], [0, 0, 1, 1], [], []>} : vector<8x10xf32>, vector<10x40xf32>, vector<8x40xf32> -> vector<8x40xf32>
    %156 = arith.addf %118, %155 : vector<8x40xf32>
    %c0_123 = arith.constant 0 : index
    %c0_124 = arith.constant 0 : index
    %157 = vector.load %arg9[%c0_123, %c0_124] : memref<1x40xf32, #tpu.memory_space<vmem>>, vector<1x40xf32>
    %158 = vector.broadcast %157 : vector<1x40xf32> to vector<8x40xf32>
    %159 = arith.addf %156, %158 : vector<8x40xf32>
    %160 = arith.addf %1, %159 : vector<8x40xf32>
    %cst_125 = arith.constant dense<0.000000e+00> : vector<8xf32>
    %161 = vector.multi_reduction <add>, %160, %cst_125 [1] : vector<8x40xf32> to vector<8xf32>
    %162 = vector.shape_cast %161 : vector<8xf32> to vector<8x1xf32>
    %cst_126 = arith.constant 4.000000e+01 : f32
    %163 = vector.broadcast %cst_126 : f32 to vector<8x1xf32>
    %164 = arith.divf %162, %163 : vector<8x1xf32>
    %165 = vector.broadcast %164 : vector<8x1xf32> to vector<8x40xf32>
    %166 = arith.subf %160, %165 : vector<8x40xf32>
    %167 = arith.mulf %166, %166 : vector<8x40xf32>
    %cst_127 = arith.constant dense<0.000000e+00> : vector<8xf32>
    %168 = vector.multi_reduction <add>, %167, %cst_127 [1] : vector<8x40xf32> to vector<8xf32>
    %169 = vector.shape_cast %168 : vector<8xf32> to vector<8x1xf32>
    %cst_128 = arith.constant 4.000000e+01 : f32
    %170 = vector.broadcast %cst_128 : f32 to vector<8x1xf32>
    %171 = arith.divf %169, %170 : vector<8x1xf32>
    %172 = vector.broadcast %164 : vector<8x1xf32> to vector<8x40xf32>
    %173 = arith.subf %160, %172 : vector<8x40xf32>
    %cst_129 = arith.constant 9.99999974E-6 : f32
    %174 = vector.broadcast %cst_129 : f32 to vector<8x1xf32>
    %175 = arith.addf %171, %174 : vector<8x1xf32>
    %176 = math.rsqrt %175 : vector<8x1xf32>
    %177 = vector.broadcast %176 : vector<8x1xf32> to vector<8x40xf32>
    %178 = arith.mulf %173, %177 : vector<8x40xf32>
    %179 = vector.broadcast %2 : vector<1x40xf32> to vector<8x40xf32>
    %180 = arith.mulf %178, %179 : vector<8x40xf32>
    %181 = vector.broadcast %3 : vector<1x40xf32> to vector<8x40xf32>
    %182 = arith.addf %180, %181 : vector<8x40xf32>
    %c0_130 = arith.constant 0 : index
    %c0_131 = arith.constant 0 : index
    %183 = vector.load %arg10[%c0_130, %c0_131] : memref<40x160xf32, #tpu.memory_space<vmem>>, vector<40x160xf32>
    %cst_132 = arith.constant dense<0.000000e+00> : vector<8x160xf32>
    %184 = tpu.matmul %182, %183, %cst_132 {dimension_numbers = #tpu.dot_dimension_numbers<[1], [0], [0], [1], [0, 0, 1, 1], [], []>} : vector<8x40xf32>, vector<40x160xf32>, vector<8x160xf32> -> vector<8x160xf32>
    %c0_133 = arith.constant 0 : index
    %c0_134 = arith.constant 0 : index
    %185 = vector.load %arg11[%c0_133, %c0_134] : memref<1x160xf32, #tpu.memory_space<vmem>>, vector<1x160xf32>
    %186 = vector.broadcast %185 : vector<1x160xf32> to vector<8x160xf32>
    %187 = arith.addf %184, %186 : vector<8x160xf32>
    %cst_135 = arith.constant 0.000000e+00 : f32
    %188 = vector.broadcast %cst_135 : f32 to vector<8x160xf32>
    %189 = arith.maximumf %187, %188 : vector<8x160xf32>
    %c0_136 = arith.constant 0 : index
    %c0_137 = arith.constant 0 : index
    %190 = vector.load %arg12[%c0_136, %c0_137] : memref<160x40xf32, #tpu.memory_space<vmem>>, vector<160x40xf32>
    %cst_138 = arith.constant dense<0.000000e+00> : vector<8x40xf32>
    %191 = tpu.matmul %189, %190, %cst_138 {dimension_numbers = #tpu.dot_dimension_numbers<[1], [0], [0], [1], [0, 0, 1, 1], [], []>} : vector<8x160xf32>, vector<160x40xf32>, vector<8x40xf32> -> vector<8x40xf32>
    %c0_139 = arith.constant 0 : index
    %c0_140 = arith.constant 0 : index
    %192 = vector.load %arg13[%c0_139, %c0_140] : memref<1x40xf32, #tpu.memory_space<vmem>>, vector<1x40xf32>
    %193 = vector.broadcast %192 : vector<1x40xf32> to vector<8x40xf32>
    %194 = arith.addf %191, %193 : vector<8x40xf32>
    %195 = arith.addf %182, %194 : vector<8x40xf32>
    %cst_141 = arith.constant dense<0.000000e+00> : vector<8xf32>
    %196 = vector.multi_reduction <add>, %195, %cst_141 [1] : vector<8x40xf32> to vector<8xf32>
    %197 = vector.shape_cast %196 : vector<8xf32> to vector<8x1xf32>
    %cst_142 = arith.constant 4.000000e+01 : f32
    %198 = vector.broadcast %cst_142 : f32 to vector<8x1xf32>
    %199 = arith.divf %197, %198 : vector<8x1xf32>
    %200 = vector.broadcast %199 : vector<8x1xf32> to vector<8x40xf32>
    %201 = arith.subf %195, %200 : vector<8x40xf32>
    %202 = arith.mulf %201, %201 : vector<8x40xf32>
    %cst_143 = arith.constant dense<0.000000e+00> : vector<8xf32>
    %203 = vector.multi_reduction <add>, %202, %cst_143 [1] : vector<8x40xf32> to vector<8xf32>
    %204 = vector.shape_cast %203 : vector<8xf32> to vector<8x1xf32>
    %cst_144 = arith.constant 4.000000e+01 : f32
    %205 = vector.broadcast %cst_144 : f32 to vector<8x1xf32>
    %206 = arith.divf %204, %205 : vector<8x1xf32>
    %207 = vector.broadcast %199 : vector<8x1xf32> to vector<8x40xf32>
    %208 = arith.subf %195, %207 : vector<8x40xf32>
    %cst_145 = arith.constant 9.99999974E-6 : f32
    %209 = vector.broadcast %cst_145 : f32 to vector<8x1xf32>
    %210 = arith.addf %206, %209 : vector<8x1xf32>
    %211 = math.rsqrt %210 : vector<8x1xf32>
    %212 = vector.broadcast %211 : vector<8x1xf32> to vector<8x40xf32>
    %213 = arith.mulf %208, %212 : vector<8x40xf32>
    %214 = vector.broadcast %2 : vector<1x40xf32> to vector<8x40xf32>
    %215 = arith.mulf %213, %214 : vector<8x40xf32>
    %216 = vector.broadcast %3 : vector<1x40xf32> to vector<8x40xf32>
    %217 = arith.addf %215, %216 : vector<8x40xf32>
    %c0_146 = arith.constant 0 : index
    %c0_147 = arith.constant 0 : index
    %c0_148 = arith.constant 0 : index
    %218 = vector.load %arg16[%c0_146, %c0_147, %c0_148] : memref<1x8x40xf32, #tpu.memory_space<vmem>>, vector<1x8x40xf32>
    %219 = vector.shape_cast %218 : vector<1x8x40xf32> to vector<8x40xf32>
    %220 = vector.shape_cast %217 : vector<8x40xf32> to vector<1x8x40xf32>
    tpu.vector_store %arg16[%c0_146, %c0_147, %c0_148], %220 {strides = array<i32>} : memref<1x8x40xf32, #tpu.memory_space<vmem>>, vector<1x8x40xf32>,
    return
  }
  func.func @transform_0(%arg0: i32) -> (i32, i32, i32) {
    %c0_i32 = arith.constant 0 : i32
    %c0_i32_0 = arith.constant 0 : i32
    %c0_i32_1 = arith.constant 0 : i32
    return %arg0, %c0_i32, %c0_i32_0 : i32, i32, i32
  }
  func.func @transform_1(%arg0: i32) -> (i32, i32, i32) {
    %c0_i32 = arith.constant 0 : i32
    %c0_i32_0 = arith.constant 0 : i32
    %c0_i32_1 = arith.constant 0 : i32
    %c0_i32_2 = arith.constant 0 : i32
    return %c0_i32, %c0_i32_0, %c0_i32_1 : i32, i32, i32
  }
  func.func @transform_2(%arg0: i32) -> (i32, i32, i32) {
    %c0_i32 = arith.constant 0 : i32
    %c0_i32_0 = arith.constant 0 : i32
    %c0_i32_1 = arith.constant 0 : i32
    %c0_i32_2 = arith.constant 0 : i32
    return %c0_i32, %c0_i32_0, %c0_i32_1 : i32, i32, i32
  }
  func.func @transform_3(%arg0: i32) -> (i32, i32, i32) {
    %c0_i32 = arith.constant 0 : i32
    %c0_i32_0 = arith.constant 0 : i32
    %c0_i32_1 = arith.constant 0 : i32
    %c0_i32_2 = arith.constant 0 : i32
    return %c0_i32, %c0_i32_0, %c0_i32_1 : i32, i32, i32
  }
  func.func @transform_4(%arg0: i32) -> (i32, i32, i32) {
    %c0_i32 = arith.constant 0 : i32
    %c0_i32_0 = arith.constant 0 : i32
    %c0_i32_1 = arith.constant 0 : i32
    %c0_i32_2 = arith.constant 0 : i32
    return %c0_i32, %c0_i32_0, %c0_i32_1 : i32, i32, i32
  }
  func.func @transform_5(%arg0: i32) -> (i32, i32, i32) {
    %c0_i32 = arith.constant 0 : i32
    %c0_i32_0 = arith.constant 0 : i32
    %c0_i32_1 = arith.constant 0 : i32
    %c0_i32_2 = arith.constant 0 : i32
    return %c0_i32, %c0_i32_0, %c0_i32_1 : i32, i32, i32
  }
  func.func @transform_6(%arg0: i32) -> (i32, i32, i32) {
    %c0_i32 = arith.constant 0 : i32
    %c0_i32_0 = arith.constant 0 : i32
    %c0_i32_1 = arith.constant 0 : i32
    %c0_i32_2 = arith.constant 0 : i32
    return %c0_i32, %c0_i32_0, %c0_i32_1 : i32, i32, i32
  }
  func.func @transform_7(%arg0: i32) -> (i32, i32, i32) {
    %c0_i32 = arith.constant 0 : i32
    %c0_i32_0 = arith.constant 0 : i32
    %c0_i32_1 = arith.constant 0 : i32
    %c0_i32_2 = arith.constant 0 : i32
    return %c0_i32, %c0_i32_0, %c0_i32_1 : i32, i32, i32
  }
  func.func @transform_8(%arg0: i32) -> (i32, i32) {
    %c0_i32 = arith.constant 0 : i32
    %c0_i32_0 = arith.constant 0 : i32
    %c0_i32_1 = arith.constant 0 : i32
    return %c0_i32, %c0_i32_0 : i32, i32
  }
  func.func @transform_9(%arg0: i32) -> (i32, i32) {
    %c0_i32 = arith.constant 0 : i32
    %c0_i32_0 = arith.constant 0 : i32
    %c0_i32_1 = arith.constant 0 : i32
    return %c0_i32, %c0_i32_0 : i32, i32
  }
  func.func @transform_10(%arg0: i32) -> (i32, i32) {
    %c0_i32 = arith.constant 0 : i32
    %c0_i32_0 = arith.constant 0 : i32
    %c0_i32_1 = arith.constant 0 : i32
    return %c0_i32, %c0_i32_0 : i32, i32
  }
  func.func @transform_11(%arg0: i32) -> (i32, i32) {
    %c0_i32 = arith.constant 0 : i32
    %c0_i32_0 = arith.constant 0 : i32
    %c0_i32_1 = arith.constant 0 : i32
    return %c0_i32, %c0_i32_0 : i32, i32
  }
  func.func @transform_12(%arg0: i32) -> (i32, i32) {
    %c0_i32 = arith.constant 0 : i32
    %c0_i32_0 = arith.constant 0 : i32
    %c0_i32_1 = arith.constant 0 : i32
    return %c0_i32, %c0_i32_0 : i32, i32
  }
  func.func @transform_13(%arg0: i32) -> (i32, i32) {
    %c0_i32 = arith.constant 0 : i32
    %c0_i32_0 = arith.constant 0 : i32
    %c0_i32_1 = arith.constant 0 : i32
    return %c0_i32, %c0_i32_0 : i32, i32
  }
  func.func @transform_14(%arg0: i32) -> (i32, i32) {
    %c0_i32 = arith.constant 0 : i32
    %c0_i32_0 = arith.constant 0 : i32
    %c0_i32_1 = arith.constant 0 : i32
    return %c0_i32, %c0_i32_0 : i32, i32
  }
  func.func @transform_15(%arg0: i32) -> (i32, i32, i32) {
    %c0_i32 = arith.constant 0 : i32
    %c0_i32_0 = arith.constant 0 : i32
    %c0_i32_1 = arith.constant 0 : i32
    return %arg0, %c0_i32, %c0_i32_0 : i32, i32, i32
  }
}

</mosaic_0001>

<llo_original>
// kernel: tpu_custom_call.1
$region0: #{tpu_custom_call.1}
  #allocation0 [shape = 'u32[]', space=smem, size = 0x4, offset = 0x4, fixed_abs, tag = 'smem constant byte address 0x4 - core index']
  #allocation1 [shape = 'u32[144,128]{1,0:T(1,128)}', space=vmem, size = 0x12000, scoped, tag = 'internal scratch']
  %s0 = inlined_call_operand.vmem [shape: f32[2,8,40], index: 0, kind: input, shape index: {}]
  %s1 = inlined_call_operand.vmem [shape: f32[4,40,10], index: 1, kind: input, shape index: {}]
  %s2 = inlined_call_operand.vmem [shape: f32[4,1,10], index: 2, kind: input, shape index: {}]
  %s3 = inlined_call_operand.vmem [shape: f32[4,40,10], index: 3, kind: input, shape index: {}]
  %s4 = inlined_call_operand.vmem [shape: f32[4,1,10], index: 4, kind: input, shape index: {}]
  %s5 = inlined_call_operand.vmem [shape: f32[4,40,10], index: 5, kind: input, shape index: {}]
  %s6 = inlined_call_operand.vmem [shape: f32[4,1,10], index: 6, kind: input, shape index: {}]
  %s7 = inlined_call_operand.vmem [shape: f32[4,10,40], index: 7, kind: input, shape index: {}]
  %s8 = inlined_call_operand.vmem [shape: f32[1,40], index: 8, kind: input, shape index: {}]
  %s9 = inlined_call_operand.vmem [shape: f32[40,160], index: 9, kind: input, shape index: {}]
  %s10 = inlined_call_operand.vmem [shape: f32[1,160], index: 10, kind: input, shape index: {}]
  %s11 = inlined_call_operand.vmem [shape: f32[160,40], index: 11, kind: input, shape index: {}]
  %s12 = inlined_call_operand.vmem [shape: f32[1,40], index: 12, kind: input, shape index: {}]
  %s13 = inlined_call_operand.vmem [shape: f32[1,40], index: 13, kind: input, shape index: {}]
  %s14 = inlined_call_operand.vmem [shape: f32[1,40], index: 14, kind: input, shape index: {}]
  %s15 = inlined_call_operand.hbm [shape: f32[2,8,40], index: 15, kind: output, shape index: {}]
  %s16 = sld [smem:[#allocation0]]
  $region93: #{tpu_custom_call.1} parent=0
    _
  %s18 = ssub.s32 1, %s16
  %s19 = scalar_select 0, %s18, %s16
  $region1: #{tpu_custom_call.1} parent=0
    #allocation2 [shape = 'u8[8192]{0}', space=vmem, size = 0x2000, scoped, tag = 'output window, operand 0']
    #allocation3 [shape = 's32[2]{0}', space=sflag, size = 0x8, scoped, tag = 'scoped memory for tpu_custom_call.1']
    %20 = vsyncpa [#allocation3], 0
    %s21 = scalar_lea.sflag [#allocation3], 1
    %22 = vsyncpa %s21, 0
    loop: start=0, step=1, limit=4
    $region2: #{tpu_custom_call.1} parent=1 // loop_pre_header
      _
    $region3: #{tpu_custom_call.1} parent=1 // loop_header
      %s24 = sphi 0, %s28
      %p25 = scmp.ge.s32.totalorder %s24, 4
      %s34 = sphi 0, %s36
      %s37 = sphi 0, %s34
      %s38 = sphi 0, %s37
      %s54 = sphi 0, %s38
      %s58 = sphi 0, %s58
      %s60 = sphi 0, %s58
      %s61 = sphi 0, %s60
      %s75 = sphi 0, %s61
      %s79 = sphi 0, %s79
      %s81 = sphi 0, %s79
      %s82 = sphi 0, %s81
      %s96 = sphi 0, %s82
      %s100 = sphi 0, %s100
      %s102 = sphi 0, %s100
      %s103 = sphi 0, %s102
      %s117 = sphi 0, %s103
      %s121 = sphi 0, %s121
      %s123 = sphi 0, %s121
      %s124 = sphi 0, %s123
      %s138 = sphi 0, %s124
      %s142 = sphi 0, %s142
      %s144 = sphi 0, %s142
      %s145 = sphi 0, %s144
      %s159 = sphi 0, %s145
      %s163 = sphi 0, %s163
      %s165 = sphi 0, %s163
      %s166 = sphi 0, %s165
      %s180 = sphi 0, %s166
      %s184 = sphi 0, %s184
      %s186 = sphi 0, %s184
      %s187 = sphi 0, %s186
      %s201 = sphi 0, %s187
      %s205 = sphi 0, %s205
      %s207 = sphi 0, %s205
      %s208 = sphi 0, %s207
      %s222 = sphi 0, %s208
      %s226 = sphi 0, %s226
      %s228 = sphi 0, %s226
      %s229 = sphi 0, %s228
      %s243 = sphi 0, %s229
      %s247 = sphi 0, %s247
      %s249 = sphi 0, %s247
      %s250 = sphi 0, %s249
      %s264 = sphi 0, %s250
      %s268 = sphi 0, %s268
      %s270 = sphi 0, %s268
      %s271 = sphi 0, %s270
      %s285 = sphi 0, %s271
      %s289 = sphi 0, %s289
      %s291 = sphi 0, %s289
      %s292 = sphi 0, %s291
      %s306 = sphi 0, %s292
      %s310 = sphi 0, %s310
      %s312 = sphi 0, %s310
      %s313 = sphi 0, %s312
      %s327 = sphi 0, %s313
      %s331 = sphi 0, %s331
      %s333 = sphi 0, %s331
      %s334 = sphi 0, %s333
      %s348 = sphi 0, %s334
      %s354 = sphi 0, %s356
      %s357 = sphi 0, %s354
      %s358 = sphi 0, %s357
      %s374 = sphi 0, %s358
    $region4: #{tpu_custom_call.1} parent=1 // loop_header_branch
      %27 = sbr.rel (%p25) target = $region8
    $region5: #{tpu_custom_call.1} parent=1 // loop_body
      %s29 = ssub.s32 %s24, 1
      %s30 = ssub.s32 %s24, 2
      %s31 = sadd.s32 %s24, 1
      %s32 = ssub.s32 %s24, %s31
      %p33 = scmp.eq.s32.totalorder %s32, 0
      %s35 = sadd.s32 %s34, 1
      %s36 = scalar_select %p33, %s34, %s35
      %p39 = pneg %p33
      %p40 = scmp.eq.s32.totalorder %s24, 1
      %p41 = por %p39, %p40
      %p42 = scmp.ne.s32.totalorder %s34, %s37
      %p43 = scmp.eq.s32.totalorder %s24, 0
      %p44 = por %p42, %p43
      %p45 = scmp.ne.s32.totalorder %s34, %s37
      %p46 = scmp.eq.s32.totalorder %s29, 1
      %p47 = por %p45, %p46
      %p48 = scmp.ne.s32.totalorder %s37, %s38
      %p49 = scmp.eq.s32.totalorder %s29, 0
      %p50 = por %p48, %p49
      %p51 = scmp.ne.s32.totalorder %s37, %s38
      %p52 = scmp.eq.s32.totalorder %s30, 1
      %p53 = por %p51, %p52
      %p55 = scmp.ne.s32.totalorder %s38, %s54
      %p56 = scmp.eq.s32.totalorder %s30, 0
      %p57 = por %p55, %p56
      %s59 = sadd.s32 %s58, 1
      %p62 = scmp.eq.s32.totalorder %s24, 1
      %p63 = scmp.ne.s32.totalorder %s58, %s60
      %p64 = scmp.eq.s32.totalorder %s24, 0
      %p65 = por %p63, %p64
      %p66 = scmp.ne.s32.totalorder %s58, %s60
      %p67 = scmp.eq.s32.totalorder %s29, 1
      %p68 = por %p66, %p67
      %p69 = scmp.ne.s32.totalorder %s60, %s61
      %p70 = scmp.eq.s32.totalorder %s29, 0
      %p71 = por %p69, %p70
      %p72 = scmp.ne.s32.totalorder %s60, %s61
      %p73 = scmp.eq.s32.totalorder %s30, 1
      %p74 = por %p72, %p73
      %p76 = scmp.ne.s32.totalorder %s61, %s75
      %p77 = scmp.eq.s32.totalorder %s30, 0
      %p78 = por %p76, %p77
      %s80 = sadd.s32 %s79, 1
      %p83 = scmp.eq.s32.totalorder %s24, 1
      %p84 = scmp.ne.s32.totalorder %s79, %s81
      %p85 = scmp.eq.s32.totalorder %s24, 0
      %p86 = por %p84, %p85
      %p87 = scmp.ne.s32.totalorder %s79, %s81
      %p88 = scmp.eq.s32.totalorder %s29, 1
      %p89 = por %p87, %p88
      %p90 = scmp.ne.s32.totalorder %s81, %s82
      %p91 = scmp.eq.s32.totalorder %s29, 0
      %p92 = por %p90, %p91
      %p93 = scmp.ne.s32.totalorder %s81, %s82
      %p94 = scmp.eq.s32.totalorder %s30, 1
      %p95 = por %p93, %p94
      %p97 = scmp.ne.s32.totalorder %s82, %s96
      %p98 = scmp.eq.s32.totalorder %s30, 0
      %p99 = por %p97, %p98
      %s101 = sadd.s32 %s100, 1
      %p104 = scmp.eq.s32.totalorder %s24, 1
      %p105 = scmp.ne.s32.totalorder %s100, %s102
      %p106 = scmp.eq.s32.totalorder %s24, 0
      %p107 = por %p105, %p106
      %p108 = scmp.ne.s32.totalorder %s100, %s102
      %p109 = scmp.eq.s32.totalorder %s29, 1
      %p110 = por %p108, %p109
      %p111 = scmp.ne.s32.totalorder %s102, %s103
      %p112 = scmp.eq.s32.totalorder %s29, 0
      %p113 = por %p111, %p112
      %p114 = scmp.ne.s32.totalorder %s102, %s103
      %p115 = scmp.eq.s32.totalorder %s30, 1
      %p116 = por %p114, %p115
      %p118 = scmp.ne.s32.totalorder %s103, %s117
      %p119 = scmp.eq.s32.totalorder %s30, 0
      %p120 = por %p118, %p119
      %s122 = sadd.s32 %s121, 1
      %p125 = scmp.eq.s32.totalorder %s24, 1
      %p126 = scmp.ne.s32.totalorder %s121, %s123
      %p127 = scmp.eq.s32.totalorder %s24, 0
      %p128 = por %p126, %p127
      %p129 = scmp.ne.s32.totalorder %s121, %s123
      %p130 = scmp.eq.s32.totalorder %s29, 1
      %p131 = por %p129, %p130
      %p132 = scmp.ne.s32.totalorder %s123, %s124
      %p133 = scmp.eq.s32.totalorder %s29, 0
      %p134 = por %p132, %p133
      %p135 = scmp.ne.s32.totalorder %s123, %s124
      %p136 = scmp.eq.s32.totalorder %s30, 1
      %p137 = por %p135, %p136
      %p139 = scmp.ne.s32.totalorder %s124, %s138
      %p140 = scmp.eq.s32.totalorder %s30, 0
      %p141 = por %p139, %p140
      %s143 = sadd.s32 %s142, 1
      %p146 = scmp.eq.s32.totalorder %s24, 1
      %p147 = scmp.ne.s32.totalorder %s142, %s144
      %p148 = scmp.eq.s32.totalorder %s24, 0
      %p149 = por %p147, %p148
      %p150 = scmp.ne.s32.totalorder %s142, %s144
      %p151 = scmp.eq.s32.totalorder %s29, 1
      %p152 = por %p150, %p151
      %p153 = scmp.ne.s32.totalorder %s144, %s145
      %p154 = scmp.eq.s32.totalorder %s29, 0
      %p155 = por %p153, %p154
      %p156 = scmp.ne.s32.totalorder %s144, %s145
      %p157 = scmp.eq.s32.totalorder %s30, 1
      %p158 = por %p156, %p157
      %p160 = scmp.ne.s32.totalorder %s145, %s159
      %p161 = scmp.eq.s32.totalorder %s30, 0
      %p162 = por %p160, %p161
      %s164 = sadd.s32 %s163, 1
      %p167 = scmp.eq.s32.totalorder %s24, 1
      %p168 = scmp.ne.s32.totalorder %s163, %s165
      %p169 = scmp.eq.s32.totalorder %s24, 0
      %p170 = por %p168, %p169
      %p171 = scmp.ne.s32.totalorder %s163, %s165
      %p172 = scmp.eq.s32.totalorder %s29, 1
      %p173 = por %p171, %p172
      %p174 = scmp.ne.s32.totalorder %s165, %s166
      %p175 = scmp.eq.s32.totalorder %s29, 0
      %p176 = por %p174, %p175
      %p177 = scmp.ne.s32.totalorder %s165, %s166
      %p178 = scmp.eq.s32.totalorder %s30, 1
      %p179 = por %p177, %p178
      %p181 = scmp.ne.s32.totalorder %s166, %s180
      %p182 = scmp.eq.s32.totalorder %s30, 0
      %p183 = por %p181, %p182
      %s185 = sadd.s32 %s184, 1
      %p188 = scmp.eq.s32.totalorder %s24, 1
      %p189 = scmp.ne.s32.totalorder %s184, %s186
      %p190 = scmp.eq.s32.totalorder %s24, 0
      %p191 = por %p189, %p190
      %p192 = scmp.ne.s32.totalorder %s184, %s186
      %p193 = scmp.eq.s32.totalorder %s29, 1
      %p194 = por %p192, %p193
      %p195 = scmp.ne.s32.totalorder %s186, %s187
      %p196 = scmp.eq.s32.totalorder %s29, 0
      %p197 = por %p195, %p196
      %p198 = scmp.ne.s32.totalorder %s186, %s187
      %p199 = scmp.eq.s32.totalorder %s30, 1
      %p200 = por %p198, %p199
      %p202 = scmp.ne.s32.totalorder %s187, %s201
      %p203 = scmp.eq.s32.totalorder %s30, 0
      %p204 = por %p202, %p203
      %s206 = sadd.s32 %s205, 1
      %p209 = scmp.eq.s32.totalorder %s24, 1
      %p210 = scmp.ne.s32.totalorder %s205, %s207
      %p211 = scmp.eq.s32.totalorder %s24, 0
      %p212 = por %p210, %p211
      %p213 = scmp.ne.s32.totalorder %s205, %s207
      %p214 = scmp.eq.s32.totalorder %s29, 1
      %p215 = por %p213, %p214
      %p216 = scmp.ne.s32.totalorder %s207, %s208
      %p217 = scmp.eq.s32.totalorder %s29, 0
      %p218 = por %p216, %p217
      %p219 = scmp.ne.s32.totalorder %s207, %s208
      %p220 = scmp.eq.s32.totalorder %s30, 1
      %p221 = por %p219, %p220
      %p223 = scmp.ne.s32.totalorder %s208, %s222
      %p224 = scmp.eq.s32.totalorder %s30, 0
      %p225 = por %p223, %p224
      %s227 = sadd.s32 %s226, 1
      %p230 = scmp.eq.s32.totalorder %s24, 1
      %p231 = scmp.ne.s32.totalorder %s226, %s228
      %p232 = scmp.eq.s32.totalorder %s24, 0
      %p233 = por %p231, %p232
      %p234 = scmp.ne.s32.totalorder %s226, %s228
      %p235 = scmp.eq.s32.totalorder %s29, 1
      %p236 = por %p234, %p235
      %p237 = scmp.ne.s32.totalorder %s228, %s229
      %p238 = scmp.eq.s32.totalorder %s29, 0
      %p239 = por %p237, %p238
      %p240 = scmp.ne.s32.totalorder %s228, %s229
      %p241 = scmp.eq.s32.totalorder %s30, 1
      %p242 = por %p240, %p241
      %p244 = scmp.ne.s32.totalorder %s229, %s243
      %p245 = scmp.eq.s32.totalorder %s30, 0
      %p246 = por %p244, %p245
      %s248 = sadd.s32 %s247, 1
      %p251 = scmp.eq.s32.totalorder %s24, 1
      %p252 = scmp.ne.s32.totalorder %s247, %s249
      %p253 = scmp.eq.s32.totalorder %s24, 0
      %p254 = por %p252, %p253
      %p255 = scmp.ne.s32.totalorder %s247, %s249
      %p256 = scmp.eq.s32.totalorder %s29, 1
      %p257 = por %p255, %p256
      %p258 = scmp.ne.s32.totalorder %s249, %s250
      %p259 = scmp.eq.s32.totalorder %s29, 0
      %p260 = por %p258, %p259
      %p261 = scmp.ne.s32.totalorder %s249, %s250
      %p262 = scmp.eq.s32.totalorder %s30, 1
      %p263 = por %p261, %p262
      %p265 = scmp.ne.s32.totalorder %s250, %s264
      %p266 = scmp.eq.s32.totalorder %s30, 0
      %p267 = por %p265, %p266
      %s269 = sadd.s32 %s268, 1
      %p272 = scmp.eq.s32.totalorder %s24, 1
      %p273 = scmp.ne.s32.totalorder %s268, %s270
      %p274 = scmp.eq.s32.totalorder %s24, 0
      %p275 = por %p273, %p274
      %p276 = scmp.ne.s32.totalorder %s268, %s270
      %p277 = scmp.eq.s32.totalorder %s29, 1
      %p278 = por %p276, %p277
      %p279 = scmp.ne.s32.totalorder %s270, %s271
      %p280 = scmp.eq.s32.totalorder %s29, 0
      %p281 = por %p279, %p280
      %p282 = scmp.ne.s32.totalorder %s270, %s271
      %p283 = scmp.eq.s32.totalorder %s30, 1
      %p284 = por %p282, %p283
      %p286 = scmp.ne.s32.totalorder %s271, %s285
      %p287 = scmp.eq.s32.totalorder %s30, 0
      %p288 = por %p286, %p287
      %s290 = sadd.s32 %s289, 1
      %p293 = scmp.eq.s32.totalorder %s24, 1
      %p294 = scmp.ne.s32.totalorder %s289, %s291
      %p295 = scmp.eq.s32.totalorder %s24, 0
      %p296 = por %p294, %p295
      %p297 = scmp.ne.s32.totalorder %s289, %s291
      %p298 = scmp.eq.s32.totalorder %s29, 1
      %p299 = por %p297, %p298
      %p300 = scmp.ne.s32.totalorder %s291, %s292
      %p301 = scmp.eq.s32.totalorder %s29, 0
      %p302 = por %p300, %p301
      %p303 = scmp.ne.s32.totalorder %s291, %s292
      %p304 = scmp.eq.s32.totalorder %s30, 1
      %p305 = por %p303, %p304
      %p307 = scmp.ne.s32.totalorder %s292, %s306
      %p308 = scmp.eq.s32.totalorder %s30, 0
      %p309 = por %p307, %p308
      %s311 = sadd.s32 %s310, 1
      %p314 = scmp.eq.s32.totalorder %s24, 1
      %p315 = scmp.ne.s32.totalorder %s310, %s312
      %p316 = scmp.eq.s32.totalorder %s24, 0
      %p317 = por %p315, %p316
      %p318 = scmp.ne.s32.totalorder %s310, %s312
      %p319 = scmp.eq.s32.totalorder %s29, 1
      %p320 = por %p318, %p319
      %p321 = scmp.ne.s32.totalorder %s312, %s313
      %p322 = scmp.eq.s32.totalorder %s29, 0
      %p323 = por %p321, %p322
      %p324 = scmp.ne.s32.totalorder %s312, %s313
      %p325 = scmp.eq.s32.totalorder %s30, 1
      %p326 = por %p324, %p325
      %p328 = scmp.ne.s32.totalorder %s313, %s327
      %p329 = scmp.eq.s32.totalorder %s30, 0
      %p330 = por %p328, %p329
      %s332 = sadd.s32 %s331, 1
      %p335 = scmp.eq.s32.totalorder %s24, 1
      %p336 = scmp.ne.s32.totalorder %s331, %s333
      %p337 = scmp.eq.s32.totalorder %s24, 0
      %p338 = por %p336, %p337
      %p339 = scmp.ne.s32.totalorder %s331, %s333
      %p340 = scmp.eq.s32.totalorder %s29, 1
      %p341 = por %p339, %p340
      %p342 = scmp.ne.s32.totalorder %s333, %s334
      %p343 = scmp.eq.s32.totalorder %s29, 0
      %p344 = por %p342, %p343
      %p345 = scmp.ne.s32.totalorder %s333, %s334
      %p346 = scmp.eq.s32.totalorder %s30, 1
      %p347 = por %p345, %p346
      %p349 = scmp.ne.s32.totalorder %s334, %s348
      %p350 = scmp.eq.s32.totalorder %s30, 0
      %p351 = por %p349, %p350
      %s352 = ssub.s32 %s24, %s31
      %p353 = scmp.eq.s32.totalorder %s352, 0
      %s355 = sadd.s32 %s354, 1
      %s356 = scalar_select %p353, %s354, %s355
      %p359 = pneg %p353
      %p360 = scmp.eq.s32.totalorder %s24, 1
      %p361 = por %p359, %p360
      %p362 = scmp.ne.s32.totalorder %s354, %s357
      %p363 = scmp.eq.s32.totalorder %s24, 0
      %p364 = por %p362, %p363
      %p365 = scmp.ne.s32.totalorder %s354, %s357
      %p366 = scmp.eq.s32.totalorder %s29, 1
      %p367 = por %p365, %p366
      %p368 = scmp.ne.s32.totalorder %s357, %s358
      %p369 = scmp.eq.s32.totalorder %s29, 0
      %p370 = por %p368, %p369
      %p371 = scmp.ne.s32.totalorder %s357, %s358
      %p372 = scmp.eq.s32.totalorder %s30, 1
      %p373 = por %p371, %p372
      %p375 = scmp.ne.s32.totalorder %s358, %s374
      %p376 = scmp.eq.s32.totalorder %s30, 0
      %p377 = por %p375, %p376
      %p378 = scmp.le.s32.totalorder 1, %s24
      %p379 = scmp.lt.s32.totalorder %s24, 3
      %p380 = pnand %p378, %p379
      %p381 = pneg %p380
      // Predicated region
      $region9: #{tpu_custom_call.1} parent=5 // pred_check
        _
      $region10: #{tpu_custom_call.1} parent=5 // pred_check_branch
        %383 = sbr.rel (%p380) target = $region12
      $region11: #{tpu_custom_call.1} parent=5 // pred_region
        %s384 = ssub.s32 %s24, 1
        // Predicated region
        $region13: #{tpu_custom_call.1} parent=11 // pred_check
          %p385 = pneg %p71
        $region14: #{tpu_custom_call.1} parent=11 // pred_check_branch
          %387 = sbr.rel (%p385) target = $region16
        $region15: #{tpu_custom_call.1} parent=11 // pred_region
          _
        $region16: #{tpu_custom_call.1} parent=11 // pred_fallthru
          _
        // Predicated region
        $region17: #{tpu_custom_call.1} parent=11 // pred_check
          %p388 = pneg %p92
        $region18: #{tpu_custom_call.1} parent=11 // pred_check_branch
          %390 = sbr.rel (%p388) target = $region20
        $region19: #{tpu_custom_call.1} parent=11 // pred_region
          _
        $region20: #{tpu_custom_call.1} parent=11 // pred_fallthru
          _
        // Predicated region
        $region21: #{tpu_custom_call.1} parent=11 // pred_check
          %p391 = pneg %p113
        $region22: #{tpu_custom_call.1} parent=11 // pred_check_branch
          %393 = sbr.rel (%p391) target = $region24
        $region23: #{tpu_custom_call.1} parent=11 // pred_region
          _
        $region24: #{tpu_custom_call.1} parent=11 // pred_fallthru
          _
        // Predicated region
        $region25: #{tpu_custom_call.1} parent=11 // pred_check
          %p394 = pneg %p134
        $region26: #{tpu_custom_call.1} parent=11 // pred_check_branch
          %396 = sbr.rel (%p394) target = $region28
        $region27: #{tpu_custom_call.1} parent=11 // pred_region
          _
        $region28: #{tpu_custom_call.1} parent=11 // pred_fallthru
          _
        // Predicated region
        $region29: #{tpu_custom_call.1} parent=11 // pred_check
          %p397 = pneg %p155
        $region30: #{tpu_custom_call.1} parent=11 // pred_check_branch
          %399 = sbr.rel (%p397) target = $region32
        $region31: #{tpu_custom_call.1} parent=11 // pred_region
          _
        $region32: #{tpu_custom_call.1} parent=11 // pred_fallthru
          _
        // Predicated region
        $region33: #{tpu_custom_call.1} parent=11 // pred_check
          %p400 = pneg %p176
        $region34: #{tpu_custom_call.1} parent=11 // pred_check_branch
          %402 = sbr.rel (%p400) target = $region36
        $region35: #{tpu_custom_call.1} parent=11 // pred_region
          _
        $region36: #{tpu_custom_call.1} parent=11 // pred_fallthru
          _
        // Predicated region
        $region37: #{tpu_custom_call.1} parent=11 // pred_check
          %p403 = pneg %p197
        $region38: #{tpu_custom_call.1} parent=11 // pred_check_branch
          %405 = sbr.rel (%p403) target = $region40
        $region39: #{tpu_custom_call.1} parent=11 // pred_region
          _
        $region40: #{tpu_custom_call.1} parent=11 // pred_fallthru
          _
        // Predicated region
        $region41: #{tpu_custom_call.1} parent=11 // pred_check
          %p406 = pneg %p218
        $region42: #{tpu_custom_call.1} parent=11 // pred_check_branch
          %408 = sbr.rel (%p406) target = $region44
        $region43: #{tpu_custom_call.1} parent=11 // pred_region
          _
        $region44: #{tpu_custom_call.1} parent=11 // pred_fallthru
          _
        // Predicated region
        $region45: #{tpu_custom_call.1} parent=11 // pred_check
          %p409 = pneg %p239
        $region46: #{tpu_custom_call.1} parent=11 // pred_check_branch
          %411 = sbr.rel (%p409) target = $region48
        $region47: #{tpu_custom_call.1} parent=11 // pred_region
          _
        $region48: #{tpu_custom_call.1} parent=11 // pred_fallthru
          _
        // Predicated region
        $region49: #{tpu_custom_call.1} parent=11 // pred_check
          %p412 = pneg %p260
        $region50: #{tpu_custom_call.1} parent=11 // pred_check_branch
          %414 = sbr.rel (%p412) target = $region52
        $region51: #{tpu_custom_call.1} parent=11 // pred_region
          _
        $region52: #{tpu_custom_call.1} parent=11 // pred_fallthru
          _
        // Predicated region
        $region53: #{tpu_custom_call.1} parent=11 // pred_check
          %p415 = pneg %p281
        $region54: #{tpu_custom_call.1} parent=11 // pred_check_branch
          %417 = sbr.rel (%p415) target = $region56
        $region55: #{tpu_custom_call.1} parent=11 // pred_region
          _
        $region56: #{tpu_custom_call.1} parent=11 // pred_fallthru
          _
        // Predicated region
        $region57: #{tpu_custom_call.1} parent=11 // pred_check
          %p418 = pneg %p302
        $region58: #{tpu_custom_call.1} parent=11 // pred_check_branch
          %420 = sbr.rel (%p418) target = $region60
        $region59: #{tpu_custom_call.1} parent=11 // pred_region
          _
        $region60: #{tpu_custom_call.1} parent=11 // pred_fallthru
          _
        // Predicated region
        $region61: #{tpu_custom_call.1} parent=11 // pred_check
          %p421 = pneg %p323
        $region62: #{tpu_custom_call.1} parent=11 // pred_check_branch
          %423 = sbr.rel (%p421) target = $region64
        $region63: #{tpu_custom_call.1} parent=11 // pred_region
          _
        $region64: #{tpu_custom_call.1} parent=11 // pred_fallthru
          _
        // Predicated region
        $region65: #{tpu_custom_call.1} parent=11 // pred_check
          %p424 = pneg %p344
        $region66: #{tpu_custom_call.1} parent=11 // pred_check_branch
          %426 = sbr.rel (%p424) target = $region68
        $region67: #{tpu_custom_call.1} parent=11 // pred_region
          _
        $region68: #{tpu_custom_call.1} parent=11 // pred_fallthru
          _
      $region12: #{tpu_custom_call.1} parent=5 // pred_fallthru
        _
      %p427 = scmp.lt.s32.totalorder %s24, 2
      // Predicated region
      $region69: #{tpu_custom_call.1} parent=5 // pred_check
        %p428 = pneg %p427
      $region70: #{tpu_custom_call.1} parent=5 // pred_check_branch
        %430 = sbr.rel (%p428) target = $region72
      $region71: #{tpu_custom_call.1} parent=5 // pred_region
        // Predicated region
        $region73: #{tpu_custom_call.1} parent=71 // pred_check
          %p431 = pneg %p44
        $region74: #{tpu_custom_call.1} parent=71 // pred_check_branch
          %433 = sbr.rel (%p431) target = $region76
        $region75: #{tpu_custom_call.1} parent=71 // pred_region
          %p434 = scmp.lt.s32.totalorder %s24, 1
          %s435 = scalar_select %p434, %s24, 1
          %s436 = smul.addr %s435, 8
          %s437 = scalar_lea.vmem %s0, %s436
        $region76: #{tpu_custom_call.1} parent=71 // pred_fallthru
          _
      $region72: #{tpu_custom_call.1} parent=5 // pred_fallthru
        _
      %p438 = scmp.le.s32.totalorder 1, %s24
      %p439 = scmp.lt.s32.totalorder %s24, 3
      %p440 = pnand %p438, %p439
      %p441 = pneg %p440
      // Predicated region
      $region77: #{tpu_custom_call.1} parent=5 // pred_check
        _
      $region78: #{tpu_custom_call.1} parent=5 // pred_check_branch
        %443 = sbr.rel (%p440) target = $region80
      $region79: #{tpu_custom_call.1} parent=5 // pred_region
        %s444 = ssub.s32 %s24, 1
        %p445 = scmp.lt.s32.totalorder %s29, 1
        %s446 = scalar_select %p445, %s29, 1
        %s447 = smul.addr %s446, 8
        %s448 = scalar_lea.vmem %s0, %s447
        %p449 = pneg %p50
        %p450 = pneg %p47
        %p451 = pneg %p71
        %p452 = pneg %p68
        %p453 = pneg %p92
        %p454 = pneg %p89
        %p455 = pneg %p113
        %p456 = pneg %p110
        %p457 = pneg %p134
        %p458 = pneg %p131
        %p459 = pneg %p155
        %p460 = pneg %p152
        %p461 = pneg %p176
        %p462 = pneg %p173
        %p463 = pneg %p197
        %p464 = pneg %p194
        %p465 = pneg %p218
        %p466 = pneg %p215
        %p467 = pneg %p239
        %p468 = pneg %p236
        %p469 = pneg %p260
        %p470 = pneg %p257
        %p471 = pneg %p281
        %p472 = pneg %p278
        %p473 = pneg %p302
        %p474 = pneg %p299
        %p475 = pneg %p323
        %p476 = pneg %p320
        %p477 = pneg %p344
        %p478 = pneg %p341
        %p479 = pneg %p370
        %p480 = pneg %p367
        %s481 = sand.u32 %s357, 1
        %s482 = scalar_lea.sflag [#allocation3], %s481
        %s483 = sand.u32 %s357, 1
        %s484 = smul.addr %s483, 8
        %s485 = scalar_lea.vmem [#allocation2], %s484
        %p486 = scmp.lt.s32.totalorder %s29, 1
        %s487 = scalar_select %p486, %s29, 1
        %s488 = smul.addr %s487, 8
        %s489 = scalar_lea.vmem %s0, %s488
        %v490 = vld [vmem:[%s489] sm:$0xff]
        %v491 = vld [vmem:[%s13] sm:$0x1]
        %v492 = vld [vmem:[%s14] sm:$0x1]
        %v493 = vld [vmem:[%s1] sm:$0xff]
        %v494 = vld [vmem:[%s1 + $0x8] sm:$0xff]
        %v495 = vld [vmem:[%s1 + $0x10] sm:$0xff]
        %v496 = vld [vmem:[%s1 + $0x18] sm:$0xff]
        %v497 = vld [vmem:[%s1 + $0x20] sm:$0xff]
        %v498 = vld [vmem:[%s3] sm:$0xff]
        %v499 = vld [vmem:[%s3 + $0x8] sm:$0xff]
        %v500 = vld [vmem:[%s3 + $0x10] sm:$0xff]
        %v501 = vld [vmem:[%s3 + $0x18] sm:$0xff]
        %v502 = vld [vmem:[%s3 + $0x20] sm:$0xff]
        %v503 = vld [vmem:[%s5] sm:$0xff]
        %v504 = vld [vmem:[%s5 + $0x8] sm:$0xff]
        %v505 = vld [vmem:[%s5 + $0x10] sm:$0xff]
        %v506 = vld [vmem:[%s5 + $0x18] sm:$0xff]
        %v507 = vld [vmem:[%s5 + $0x20] sm:$0xff]
        %v508 = vld [vmem:[%s2] sm:$0x1]
        %v510 = vlaneseq
        %v511 = vshrl.u32 %v510, 7
        %v512 = vsub.s32 0, %v511
        %v513 = vrot.slane %v508, %v512
        %vm515 = vcmask 326656
        %v517 = vsel %vm515, %v490, 0
        %519 = vmatprep.subr.mxu0 0.0
        %520 = vmatpush1.msra.mxu0 %v493
        %521 = vmatprep.subr.mxu0 0.0
        %522 = vmatpush1.msra.mxu0 %v494
        %523 = vmatprep.subr.mxu0 0.0
        %524 = vmatpush1.msra.mxu0 %v495
        %525 = vmatprep.subr.mxu0 0.0
        %526 = vmatpush1.msra.mxu0 %v496
        %527 = vmatprep.subr.mxu0 0.0
        %528 = vmatpush1.msra.mxu0 %v497
        %529 = vmatprep.subr.mxu0 0.0
        %530 = vmatpush1.msra.mxu0 0.0
        %531 = vmatprep.subr.mxu0 0.0
        %532 = vmatpush1.msra.mxu0 0.0
        %533 = vmatprep.subr.mxu0 0.0
        %534 = vmatpush1.msra.mxu0 0.0
        %535 = vmatprep.subr.mxu0 0.0
        %536 = vmatpush1.msra.mxu0 0.0
        %537 = vmatprep.subr.mxu0 0.0
        %538 = vmatpush1.msra.mxu0 0.0
        %539 = vmatprep.subr.mxu0 0.0
        %540 = vmatpush1.msra.mxu0 0.0
        %541 = vmatprep.subr.mxu0 0.0
        %542 = vmatpush1.msra.mxu0 0.0
        %543 = vmatprep.subr.mxu0 0.0
        %544 = vmatpush1.msra.mxu0 0.0
        %545 = vmatprep.subr.mxu0 0.0
        %546 = vmatpush1.msra.mxu0 0.0
        %547 = vmatprep.subr.mxu0 0.0
        %548 = vmatpush1.msra.mxu0 0.0
        %549 = vmatprep.subr.mxu0 0.0
        %550 = vmatpush1.msra.mxu0 0.0
        %551 = vmatprep.subr.mxu0 0.0
        %552 = vmatpush1.msra.mxu0 0.0
        %553 = vmatprep.subr.mxu0 0.0
        %554 = vmatpush1.msra.mxu0 0.0
        %555 = vmatprep.subr.mxu0 0.0
        %556 = vmatpush1.msra.mxu0 0.0
        %557 = vmatprep.subr.mxu0 0.0
        %558 = vmatpush1.msra.mxu0 0.0
        %559 = vmatprep.subr.mxu0 0.0
        %560 = vmatpush1.msra.mxu0 0.0
        %561 = vmatprep.subr.mxu0 0.0
        %562 = vmatpush1.msra.mxu0 0.0
        %563 = vmatprep.subr.mxu0 0.0
        %564 = vmatpush1.msra.mxu0 0.0
        %565 = vmatprep.subr.mxu0 0.0
        %566 = vmatpush1.msra.mxu0 0.0
        %567 = vmatprep.subr.mxu0 0.0
        %568 = vmatpush1.msra.mxu0 0.0
        %569 = vmatprep.subr.mxu0 0.0
        %570 = vmatpush1.msra.mxu0 0.0
        %571 = vmatprep.subr.mxu0 0.0
        %572 = vmatpush1.msra.mxu0 0.0
        %573 = vmatprep.subr.mxu0 0.0
        %574 = vmatpush1.msra.mxu0 0.0
        %575 = vmatprep.subr.mxu0 0.0
        %576 = vmatpush1.msra.mxu0 0.0
        %577 = vmatprep.subr.mxu0 0.0
        %578 = vmatpush1.msra.mxu0 0.0
        %579 = vmatprep.subr.mxu0 0.0
        %580 = vmatpush1.msra.mxu0 0.0
        %581 = vmatprep.subr.mxu0 0.0
        %582 = vmatpush1.msra.mxu0 0.0
        %583 = vmatprep.mubr.f32.mxu0 0.0
        %584 = vmatmul.mubr.f32.gmra.mrb[0].mxu0 %v517
        %v585 = vpop.f32.mrb[0].mxu0
        %v586 = vadd.f32 %v513, %v585
        %v587 = vpop.f32.mrb[0].mxu0
        %588 = vdwg.mxu0
        %v589 = vld [vmem:[%s4] sm:$0x1]
        %v591 = vlaneseq
        %v592 = vshrl.u32 %v591, 7
        %v593 = vsub.s32 0, %v592
        %v594 = vrot.slane %v589, %v593
        %596 = vmatprep.subr.mxu0 0.0
        %597 = vmatpush1.msra.mxu0 %v498
        %598 = vmatprep.subr.mxu0 0.0
        %599 = vmatpush1.msra.mxu0 %v499
        %600 = vmatprep.subr.mxu0 0.0
        %601 = vmatpush1.msra.mxu0 %v500
        %602 = vmatprep.subr.mxu0 0.0
        %603 = vmatpush1.msra.mxu0 %v501
        %604 = vmatprep.subr.mxu0 0.0
        %605 = vmatpush1.msra.mxu0 %v502
        %606 = vmatprep.subr.mxu0 0.0
        %607 = vmatpush1.msra.mxu0 0.0
        %608 = vmatprep.subr.mxu0 0.0
        %609 = vmatpush1.msra.mxu0 0.0
        %610 = vmatprep.subr.mxu0 0.0
        %611 = vmatpush1.msra.mxu0 0.0
        %612 = vmatprep.subr.mxu0 0.0
        %613 = vmatpush1.msra.mxu0 0.0
        %614 = vmatprep.subr.mxu0 0.0
        %615 = vmatpush1.msra.mxu0 0.0
        %616 = vmatprep.subr.mxu0 0.0
        %617 = vmatpush1.msra.mxu0 0.0
        %618 = vmatprep.subr.mxu0 0.0
        %619 = vmatpush1.msra.mxu0 0.0
        %620 = vmatprep.subr.mxu0 0.0
        %621 = vmatpush1.msra.mxu0 0.0
        %622 = vmatprep.subr.mxu0 0.0
        %623 = vmatpush1.msra.mxu0 0.0
        %624 = vmatprep.subr.mxu0 0.0
        %625 = vmatpush1.msra.mxu0 0.0
        %626 = vmatprep.subr.mxu0 0.0
        %627 = vmatpush1.msra.mxu0 0.0
        %628 = vmatprep.subr.mxu0 0.0
        %629 = vmatpush1.msra.mxu0 0.0
        %630 = vmatprep.subr.mxu0 0.0
        %631 = vmatpush1.msra.mxu0 0.0
        %632 = vmatprep.subr.mxu0 0.0
        %633 = vmatpush1.msra.mxu0 0.0
        %634 = vmatprep.subr.mxu0 0.0
        %635 = vmatpush1.msra.mxu0 0.0
        %636 = vmatprep.subr.mxu0 0.0
        %637 = vmatpush1.msra.mxu0 0.0
        %638 = vmatprep.subr.mxu0 0.0
        %639 = vmatpush1.msra.mxu0 0.0
        %640 = vmatprep.subr.mxu0 0.0
        %641 = vmatpush1.msra.mxu0 0.0
        %642 = vmatprep.subr.mxu0 0.0
        %643 = vmatpush1.msra.mxu0 0.0
        %644 = vmatprep.subr.mxu0 0.0
        %645 = vmatpush1.msra.mxu0 0.0
        %646 = vmatprep.subr.mxu0 0.0
        %647 = vmatpush1.msra.mxu0 0.0
        %648 = vmatprep.subr.mxu0 0.0
        %649 = vmatpush1.msra.mxu0 0.0
        %650 = vmatprep.subr.mxu0 0.0
        %651 = vmatpush1.msra.mxu0 0.0
        %652 = vmatprep.subr.mxu0 0.0
        %653 = vmatpush1.msra.mxu0 0.0
        %654 = vmatprep.subr.mxu0 0.0
        %655 = vmatpush1.msra.mxu0 0.0
        %656 = vmatprep.subr.mxu0 0.0
        %657 = vmatpush1.msra.mxu0 0.0
        %658 = vmatprep.subr.mxu0 0.0
        %659 = vmatpush1.msra.mxu0 0.0
        %660 = vmatprep.mubr.f32.mxu0 0.0
        %661 = vmatmul.mubr.f32.gmra.mrb[0].mxu0 %v517
        %v662 = vpop.f32.mrb[0].mxu0
        %v663 = vadd.f32 %v594, %v662
        %v664 = vpop.f32.mrb[0].mxu0
        %665 = vdwg.mxu0
        %v666 = vld [vmem:[%s6] sm:$0x1]
        %v668 = vlaneseq
        %v669 = vshrl.u32 %v668, 7
        %v670 = vsub.s32 0, %v669
        %v671 = vrot.slane %v666, %v670
        %673 = vmatprep.subr.mxu0 0.0
        %674 = vmatpush1.msra.mxu0 %v503
        %675 = vmatprep.subr.mxu0 0.0
        %676 = vmatpush1.msra.mxu0 %v504
        %677 = vmatprep.subr.mxu0 0.0
        %678 = vmatpush1.msra.mxu0 %v505
        %679 = vmatprep.subr.mxu0 0.0
        %680 = vmatpush1.msra.mxu0 %v506
        %681 = vmatprep.subr.mxu0 0.0
        %682 = vmatpush1.msra.mxu0 %v507
        %683 = vmatprep.subr.mxu0 0.0
        %684 = vmatpush1.msra.mxu0 0.0
        %685 = vmatprep.subr.mxu0 0.0
        %686 = vmatpush1.msra.mxu0 0.0
        %687 = vmatprep.subr.mxu0 0.0
        %688 = vmatpush1.msra.mxu0 0.0
        %689 = vmatprep.subr.mxu0 0.0
        %690 = vmatpush1.msra.mxu0 0.0
        %691 = vmatprep.subr.mxu0 0.0
        %692 = vmatpush1.msra.mxu0 0.0
        %693 = vmatprep.subr.mxu0 0.0
        %694 = vmatpush1.msra.mxu0 0.0
        %695 = vmatprep.subr.mxu0 0.0
        %696 = vmatpush1.msra.mxu0 0.0
        %697 = vmatprep.subr.mxu0 0.0
        %698 = vmatpush1.msra.mxu0 0.0
        %699 = vmatprep.subr.mxu0 0.0
        %700 = vmatpush1.msra.mxu0 0.0
        %701 = vmatprep.subr.mxu0 0.0
        %702 = vmatpush1.msra.mxu0 0.0
        %703 = vmatprep.subr.mxu0 0.0
        %704 = vmatpush1.msra.mxu0 0.0
        %705 = vmatprep.subr.mxu0 0.0
        %706 = vmatpush1.msra.mxu0 0.0
        %707 = vmatprep.subr.mxu0 0.0
        %708 = vmatpush1.msra.mxu0 0.0
        %709 = vmatprep.subr.mxu0 0.0
        %710 = vmatpush1.msra.mxu0 0.0
        %711 = vmatprep.subr.mxu0 0.0
        %712 = vmatpush1.msra.mxu0 0.0
        %713 = vmatprep.subr.mxu0 0.0
        %714 = vmatpush1.msra.mxu0 0.0
        %715 = vmatprep.subr.mxu0 0.0
        %716 = vmatpush1.msra.mxu0 0.0
        %717 = vmatprep.subr.mxu0 0.0
        %718 = vmatpush1.msra.mxu0 0.0
        %719 = vmatprep.subr.mxu0 0.0
        %720 = vmatpush1.msra.mxu0 0.0
        %721 = vmatprep.subr.mxu0 0.0
        %722 = vmatpush1.msra.mxu0 0.0
        %723 = vmatprep.subr.mxu0 0.0
        %724 = vmatpush1.msra.mxu0 0.0
        %725 = vmatprep.subr.mxu0 0.0
        %726 = vmatpush1.msra.mxu0 0.0
        %727 = vmatprep.subr.mxu0 0.0
        %728 = vmatpush1.msra.mxu0 0.0
        %729 = vmatprep.subr.mxu0 0.0
        %730 = vmatpush1.msra.mxu0 0.0
        %731 = vmatprep.subr.mxu0 0.0
        %732 = vmatpush1.msra.mxu0 0.0
        %733 = vmatprep.subr.mxu0 0.0
        %734 = vmatpush1.msra.mxu0 0.0
        %735 = vmatprep.subr.mxu0 0.0
        %736 = vmatpush1.msra.mxu0 0.0
        %737 = vmatprep.mubr.f32.mxu0 0.0
        %738 = vmatmul.mubr.f32.gmra.mrb[0].mxu0 %v517
        %v739 = vpop.f32.mrb[0].mxu0
        %v740 = vadd.f32 %v671, %v739
        %v741 = vpop.f32.mrb[0].mxu0
        %742 = vdwg.mxu0
        %vm743 = vcmask 80896
        %v745 = vsel %vm743, %v586, 0
        %v748 = vsel %vm743, %v663, 0
        %750 = vmatprep.subr.mxu0 0.0
        %751 = vmatpush1.xpose.msra.mxu0 %v748
        %752 = vmatprep.subr.mxu0 0.0
        %753 = vmatpush1.xpose.msra.mxu0 0.0
        %754 = vmatprep.subr.mxu0 0.0
        %755 = vmatpush1.xpose.msra.mxu0 0.0
        %756 = vmatprep.subr.mxu0 0.0
        %757 = vmatpush1.xpose.msra.mxu0 0.0
        %758 = vmatprep.subr.mxu0 0.0
        %759 = vmatpush1.xpose.msra.mxu0 0.0
        %760 = vmatprep.subr.mxu0 0.0
        %761 = vmatpush1.xpose.msra.mxu0 0.0
        %762 = vmatprep.subr.mxu0 0.0
        %763 = vmatpush1.xpose.msra.mxu0 0.0
        %764 = vmatprep.subr.mxu0 0.0
        %765 = vmatpush1.xpose.msra.mxu0 0.0
        %766 = vmatprep.subr.mxu0 0.0
        %767 = vmatpush1.xpose.msra.mxu0 0.0
        %768 = vmatprep.subr.mxu0 0.0
        %769 = vmatpush1.xpose.msra.mxu0 0.0
        %770 = vmatprep.subr.mxu0 0.0
        %771 = vmatpush1.xpose.msra.mxu0 0.0
        %772 = vmatprep.subr.mxu0 0.0
        %773 = vmatpush1.xpose.msra.mxu0 0.0
        %774 = vmatprep.subr.mxu0 0.0
        %775 = vmatpush1.xpose.msra.mxu0 0.0
        %776 = vmatprep.subr.mxu0 0.0
        %777 = vmatpush1.xpose.msra.mxu0 0.0
        %778 = vmatprep.subr.mxu0 0.0
        %779 = vmatpush1.xpose.msra.mxu0 0.0
        %780 = vmatprep.subr.mxu0 0.0
        %781 = vmatpush1.xpose.msra.mxu0 0.0
        %782 = vmatprep.subr.mxu0 0.0
        %783 = vmatpush1.xpose.msra.mxu0 0.0
        %784 = vmatprep.subr.mxu0 0.0
        %785 = vmatpush1.xpose.msra.mxu0 0.0
        %786 = vmatprep.subr.mxu0 0.0
        %787 = vmatpush1.xpose.msra.mxu0 0.0
        %788 = vmatprep.subr.mxu0 0.0
        %789 = vmatpush1.xpose.msra.mxu0 0.0
        %790 = vmatprep.subr.mxu0 0.0
        %791 = vmatpush1.xpose.msra.mxu0 0.0
        %792 = vmatprep.subr.mxu0 0.0
        %793 = vmatpush1.xpose.msra.mxu0 0.0
        %794 = vmatprep.subr.mxu0 0.0
        %795 = vmatpush1.xpose.msra.mxu0 0.0
        %796 = vmatprep.subr.mxu0 0.0
        %797 = vmatpush1.xpose.msra.mxu0 0.0
        %798 = vmatprep.subr.mxu0 0.0
        %799 = vmatpush1.xpose.msra.mxu0 0.0
        %800 = vmatprep.subr.mxu0 0.0
        %801 = vmatpush1.xpose.msra.mxu0 0.0
        %802 = vmatprep.subr.mxu0 0.0
        %803 = vmatpush1.xpose.msra.mxu0 0.0
        %804 = vmatprep.subr.mxu0 0.0
        %805 = vmatpush1.xpose.msra.mxu0 0.0
        %806 = vmatprep.subr.mxu0 0.0
        %807 = vmatpush1.xpose.msra.mxu0 0.0
        %808 = vmatprep.subr.mxu0 0.0
        %809 = vmatpush1.xpose.msra.mxu0 0.0
        %810 = vmatprep.subr.mxu0 0.0
        %811 = vmatpush1.xpose.msra.mxu0 0.0
        %812 = vmatprep.subr.mxu0 0.0
        %813 = vmatpush1.xpose.msra.mxu0 0.0
        %814 = vmatprep.mubr.f32.mxu0 0.0
        %815 = vmatmul.mubr.f32.gmra.mrb[0].mxu0 %v745
        %v816 = vpop.f32.mrb[0].mxu0
        %v817 = vadd.f32 0.0, %v816
        %v818 = vpop.f32.mrb[0].mxu0
        %819 = vdwg.mxu0
        %v820 = vmul.f32 %v817, 0.31622776
        %vm821 = vcmask 64512
        %v822 = vsel %vm821, %v820, -inf
        %823 = vmax.xlane.f32.xlu0 %v822
        %v824 = vpop.xlane.xlu0 %823
        %v825 = vsub.f32 %v820, %v824
        %v826 = vmul.f32 %v825, 1.442695
        %v827 = vpow.pop %v826
        %v828 = vsel %vm821, %v827, 0.0
        %829 = vadd.xlane.f32.xlu0 %v828
        %v830 = vpop.xlane.xlu0 %829
        %v831 = vrcp.pop %v830
        %v832 = vmul.f32 %v827, %v831
        %v834 = vsel %vm821, %v832, 0
        %836 = vmatprep.subr.mxu0 0.0
        %837 = vmatpush1.msra.mxu0 %v740
        %838 = vmatprep.subr.mxu0 0.0
        %839 = vmatpush1.msra.mxu0 0.0
        %840 = vmatprep.subr.mxu0 0.0
        %841 = vmatpush1.msra.mxu0 0.0
        %842 = vmatprep.subr.mxu0 0.0
        %843 = vmatpush1.msra.mxu0 0.0
        %844 = vmatprep.subr.mxu0 0.0
        %845 = vmatpush1.msra.mxu0 0.0
        %846 = vmatprep.subr.mxu0 0.0
        %847 = vmatpush1.msra.mxu0 0.0
        %848 = vmatprep.subr.mxu0 0.0
        %849 = vmatpush1.msra.mxu0 0.0
        %850 = vmatprep.subr.mxu0 0.0
        %851 = vmatpush1.msra.mxu0 0.0
        %852 = vmatprep.subr.mxu0 0.0
        %853 = vmatpush1.msra.mxu0 0.0
        %854 = vmatprep.subr.mxu0 0.0
        %855 = vmatpush1.msra.mxu0 0.0
        %856 = vmatprep.subr.mxu0 0.0
        %857 = vmatpush1.msra.mxu0 0.0
        %858 = vmatprep.subr.mxu0 0.0
        %859 = vmatpush1.msra.mxu0 0.0
        %860 = vmatprep.subr.mxu0 0.0
        %861 = vmatpush1.msra.mxu0 0.0
        %862 = vmatprep.subr.mxu0 0.0
        %863 = vmatpush1.msra.mxu0 0.0
        %864 = vmatprep.subr.mxu0 0.0
        %865 = vmatpush1.msra.mxu0 0.0
        %866 = vmatprep.subr.mxu0 0.0
        %867 = vmatpush1.msra.mxu0 0.0
        %868 = vmatprep.subr.mxu0 0.0
        %869 = vmatpush1.msra.mxu0 0.0
        %870 = vmatprep.subr.mxu0 0.0
        %871 = vmatpush1.msra.mxu0 0.0
        %872 = vmatprep.subr.mxu0 0.0
        %873 = vmatpush1.msra.mxu0 0.0
        %874 = vmatprep.subr.mxu0 0.0
        %875 = vmatpush1.msra.mxu0 0.0
        %876 = vmatprep.subr.mxu0 0.0
        %877 = vmatpush1.msra.mxu0 0.0
        %878 = vmatprep.subr.mxu0 0.0
        %879 = vmatpush1.msra.mxu0 0.0
        %880 = vmatprep.subr.mxu0 0.0
        %881 = vmatpush1.msra.mxu0 0.0
        %882 = vmatprep.subr.mxu0 0.0
        %883 = vmatpush1.msra.mxu0 0.0
        %884 = vmatprep.subr.mxu0 0.0
        %885 = vmatpush1.msra.mxu0 0.0
        %886 = vmatprep.subr.mxu0 0.0
        %887 = vmatpush1.msra.mxu0 0.0
        %888 = vmatprep.subr.mxu0 0.0
        %889 = vmatpush1.msra.mxu0 0.0
        %890 = vmatprep.subr.mxu0 0.0
        %891 = vmatpush1.msra.mxu0 0.0
        %892 = vmatprep.subr.mxu0 0.0
        %893 = vmatpush1.msra.mxu0 0.0
        %894 = vmatprep.subr.mxu0 0.0
        %895 = vmatpush1.msra.mxu0 0.0
        %896 = vmatprep.subr.mxu0 0.0
        %897 = vmatpush1.msra.mxu0 0.0
        %898 = vmatprep.subr.mxu0 0.0
        %899 = vmatpush1.msra.mxu0 0.0
        %900 = vmatprep.mubr.f32.mxu0 0.0
        %901 = vmatmul.mubr.f32.gmra.mrb[0].mxu0 %v834
        %v902 = vpop.f32.mrb[0].mxu0
        %v903 = vadd.f32 0.0, %v902
        %v904 = vpop.f32.mrb[0].mxu0
        %905 = vdwg.mxu0
        %v906 = vld [vmem:[%s7] sm:$0xff]
        %v907 = vld [vmem:[%s7 + $0x8] sm:$0x3]
        %s908 = scalar_lea.vmem %s1, 40
        %v909 = vld [vmem:[%s908] sm:$0xff]
        %v910 = vld [vmem:[%s908 + $0x8] sm:$0xff]
        %v911 = vld [vmem:[%s908 + $0x10] sm:$0xff]
        %v912 = vld [vmem:[%s908 + $0x18] sm:$0xff]
        %v913 = vld [vmem:[%s908 + $0x20] sm:$0xff]
        %s914 = scalar_lea.vmem %s3, 40
        %v915 = vld [vmem:[%s914] sm:$0xff]
        %v916 = vld [vmem:[%s914 + $0x8] sm:$0xff]
        %v917 = vld [vmem:[%s914 + $0x10] sm:$0xff]
        %v918 = vld [vmem:[%s914 + $0x18] sm:$0xff]
        %v919 = vld [vmem:[%s914 + $0x20] sm:$0xff]
        %s920 = scalar_lea.vmem %s5, 40
        %v921 = vld [vmem:[%s920] sm:$0xff]
        %v922 = vld [vmem:[%s920 + $0x8] sm:$0xff]
        %v923 = vld [vmem:[%s920 + $0x10] sm:$0xff]
        %v924 = vld [vmem:[%s920 + $0x18] sm:$0xff]
        %v925 = vld [vmem:[%s920 + $0x20] sm:$0xff]
        %s926 = scalar_lea.vmem %s2, 1
        %v927 = vld [vmem:[%s926] sm:$0x1]
        %v929 = vlaneseq
        %v930 = vshrl.u32 %v929, 7
        %v931 = vsub.s32 0, %v930
        %v932 = vrot.slane %v927, %v931
        %934 = vmatprep.subr.mxu0 0.0
        %935 = vmatpush1.msra.mxu0 %v909
        %936 = vmatprep.subr.mxu0 0.0
        %937 = vmatpush1.msra.mxu0 %v910
        %938 = vmatprep.subr.mxu0 0.0
        %939 = vmatpush1.msra.mxu0 %v911
        %940 = vmatprep.subr.mxu0 0.0
        %941 = vmatpush1.msra.mxu0 %v912
        %942 = vmatprep.subr.mxu0 0.0
        %943 = vmatpush1.msra.mxu0 %v913
        %944 = vmatprep.subr.mxu0 0.0
        %945 = vmatpush1.msra.mxu0 0.0
        %946 = vmatprep.subr.mxu0 0.0
        %947 = vmatpush1.msra.mxu0 0.0
        %948 = vmatprep.subr.mxu0 0.0
        %949 = vmatpush1.msra.mxu0 0.0
        %950 = vmatprep.subr.mxu0 0.0
        %951 = vmatpush1.msra.mxu0 0.0
        %952 = vmatprep.subr.mxu0 0.0
        %953 = vmatpush1.msra.mxu0 0.0
        %954 = vmatprep.subr.mxu0 0.0
        %955 = vmatpush1.msra.mxu0 0.0
        %956 = vmatprep.subr.mxu0 0.0
        %957 = vmatpush1.msra.mxu0 0.0
        %958 = vmatprep.subr.mxu0 0.0
        %959 = vmatpush1.msra.mxu0 0.0
        %960 = vmatprep.subr.mxu0 0.0
        %961 = vmatpush1.msra.mxu0 0.0
        %962 = vmatprep.subr.mxu0 0.0
        %963 = vmatpush1.msra.mxu0 0.0
        %964 = vmatprep.subr.mxu0 0.0
        %965 = vmatpush1.msra.mxu0 0.0
        %966 = vmatprep.subr.mxu0 0.0
        %967 = vmatpush1.msra.mxu0 0.0
        %968 = vmatprep.subr.mxu0 0.0
        %969 = vmatpush1.msra.mxu0 0.0
        %970 = vmatprep.subr.mxu0 0.0
        %971 = vmatpush1.msra.mxu0 0.0
        %972 = vmatprep.subr.mxu0 0.0
        %973 = vmatpush1.msra.mxu0 0.0
        %974 = vmatprep.subr.mxu0 0.0
        %975 = vmatpush1.msra.mxu0 0.0
        %976 = vmatprep.subr.mxu0 0.0
        %977 = vmatpush1.msra.mxu0 0.0
        %978 = vmatprep.subr.mxu0 0.0
        %979 = vmatpush1.msra.mxu0 0.0
        %980 = vmatprep.subr.mxu0 0.0
        %981 = vmatpush1.msra.mxu0 0.0
        %982 = vmatprep.subr.mxu0 0.0
        %983 = vmatpush1.msra.mxu0 0.0
        %984 = vmatprep.subr.mxu0 0.0
        %985 = vmatpush1.msra.mxu0 0.0
        %986 = vmatprep.subr.mxu0 0.0
        %987 = vmatpush1.msra.mxu0 0.0
        %988 = vmatprep.subr.mxu0 0.0
        %989 = vmatpush1.msra.mxu0 0.0
        %990 = vmatprep.subr.mxu0 0.0
        %991 = vmatpush1.msra.mxu0 0.0
        %992 = vmatprep.subr.mxu0 0.0
        %993 = vmatpush1.msra.mxu0 0.0
        %994 = vmatprep.subr.mxu0 0.0
        %995 = vmatpush1.msra.mxu0 0.0
        %996 = vmatprep.subr.mxu0 0.0
        %997 = vmatpush1.msra.mxu0 0.0
        %998 = vmatprep.mubr.f32.mxu0 0.0
        %999 = vmatmul.mubr.f32.gmra.mrb[0].mxu0 %v517
        %v1000 = vpop.f32.mrb[0].mxu0
        %v1001 = vadd.f32 %v932, %v1000
        %v1002 = vpop.f32.mrb[0].mxu0
        %1003 = vdwg.mxu0
        %s1004 = scalar_lea.vmem %s4, 1
        %v1005 = vld [vmem:[%s1004] sm:$0x1]
        %v1007 = vlaneseq
        %v1008 = vshrl.u32 %v1007, 7
        %v1009 = vsub.s32 0, %v1008
        %v1010 = vrot.slane %v1005, %v1009
        %1012 = vmatprep.subr.mxu0 0.0
        %1013 = vmatpush1.msra.mxu0 %v915
        %1014 = vmatprep.subr.mxu0 0.0
        %1015 = vmatpush1.msra.mxu0 %v916
        %1016 = vmatprep.subr.mxu0 0.0
        %1017 = vmatpush1.msra.mxu0 %v917
        %1018 = vmatprep.subr.mxu0 0.0
        %1019 = vmatpush1.msra.mxu0 %v918
        %1020 = vmatprep.subr.mxu0 0.0
        %1021 = vmatpush1.msra.mxu0 %v919
        %1022 = vmatprep.subr.mxu0 0.0
        %1023 = vmatpush1.msra.mxu0 0.0
        %1024 = vmatprep.subr.mxu0 0.0
        %1025 = vmatpush1.msra.mxu0 0.0
        %1026 = vmatprep.subr.mxu0 0.0
        %1027 = vmatpush1.msra.mxu0 0.0
        %1028 = vmatprep.subr.mxu0 0.0
        %1029 = vmatpush1.msra.mxu0 0.0
        %1030 = vmatprep.subr.mxu0 0.0
        %1031 = vmatpush1.msra.mxu0 0.0
        %1032 = vmatprep.subr.mxu0 0.0
        %1033 = vmatpush1.msra.mxu0 0.0
        %1034 = vmatprep.subr.mxu0 0.0
        %1035 = vmatpush1.msra.mxu0 0.0
        %1036 = vmatprep.subr.mxu0 0.0
        %1037 = vmatpush1.msra.mxu0 0.0
        %1038 = vmatprep.subr.mxu0 0.0
        %1039 = vmatpush1.msra.mxu0 0.0
        %1040 = vmatprep.subr.mxu0 0.0
        %1041 = vmatpush1.msra.mxu0 0.0
        %1042 = vmatprep.subr.mxu0 0.0
        %1043 = vmatpush1.msra.mxu0 0.0
        %1044 = vmatprep.subr.mxu0 0.0
        %1045 = vmatpush1.msra.mxu0 0.0
        %1046 = vmatprep.subr.mxu0 0.0
        %1047 = vmatpush1.msra.mxu0 0.0
        %1048 = vmatprep.subr.mxu0 0.0
        %1049 = vmatpush1.msra.mxu0 0.0
        %1050 = vmatprep.subr.mxu0 0.0
        %1051 = vmatpush1.msra.mxu0 0.0
        %1052 = vmatprep.subr.mxu0 0.0
        %1053 = vmatpush1.msra.mxu0 0.0
        %1054 = vmatprep.subr.mxu0 0.0
        %1055 = vmatpush1.msra.mxu0 0.0
        %1056 = vmatprep.subr.mxu0 0.0
        %1057 = vmatpush1.msra.mxu0 0.0
        %1058 = vmatprep.subr.mxu0 0.0
        %1059 = vmatpush1.msra.mxu0 0.0
        %1060 = vmatprep.subr.mxu0 0.0
        %1061 = vmatpush1.msra.mxu0 0.0
        %1062 = vmatprep.subr.mxu0 0.0
        %1063 = vmatpush1.msra.mxu0 0.0
        %1064 = vmatprep.subr.mxu0 0.0
        %1065 = vmatpush1.msra.mxu0 0.0
        %1066 = vmatprep.subr.mxu0 0.0
        %1067 = vmatpush1.msra.mxu0 0.0
        %1068 = vmatprep.subr.mxu0 0.0
        %1069 = vmatpush1.msra.mxu0 0.0
        %1070 = vmatprep.subr.mxu0 0.0
        %1071 = vmatpush1.msra.mxu0 0.0
        %1072 = vmatprep.subr.mxu0 0.0
        %1073 = vmatpush1.msra.mxu0 0.0
        %1074 = vmatprep.subr.mxu0 0.0
        %1075 = vmatpush1.msra.mxu0 0.0
        %1076 = vmatprep.mubr.f32.mxu0 0.0
        %1077 = vmatmul.mubr.f32.gmra.mrb[0].mxu0 %v517
        %v1078 = vpop.f32.mrb[0].mxu0
        %v1079 = vadd.f32 %v1010, %v1078
        %v1080 = vpop.f32.mrb[0].mxu0
        %1081 = vdwg.mxu0
        %s1082 = scalar_lea.vmem %s6, 1
        %v1083 = vld [vmem:[%s1082] sm:$0x1]
        %v1085 = vlaneseq
        %v1086 = vshrl.u32 %v1085, 7
        %v1087 = vsub.s32 0, %v1086
        %v1088 = vrot.slane %v1083, %v1087
        %1090 = vmatprep.subr.mxu0 0.0
        %1091 = vmatpush1.msra.mxu0 %v921
        %1092 = vmatprep.subr.mxu0 0.0
        %1093 = vmatpush1.msra.mxu0 %v922
        %1094 = vmatprep.subr.mxu0 0.0
        %1095 = vmatpush1.msra.mxu0 %v923
        %1096 = vmatprep.subr.mxu0 0.0
        %1097 = vmatpush1.msra.mxu0 %v924
        %1098 = vmatprep.subr.mxu0 0.0
        %1099 = vmatpush1.msra.mxu0 %v925
        %1100 = vmatprep.subr.mxu0 0.0
        %1101 = vmatpush1.msra.mxu0 0.0
        %1102 = vmatprep.subr.mxu0 0.0
        %1103 = vmatpush1.msra.mxu0 0.0
        %1104 = vmatprep.subr.mxu0 0.0
        %1105 = vmatpush1.msra.mxu0 0.0
        %1106 = vmatprep.subr.mxu0 0.0
        %1107 = vmatpush1.msra.mxu0 0.0
        %1108 = vmatprep.subr.mxu0 0.0
        %1109 = vmatpush1.msra.mxu0 0.0
        %1110 = vmatprep.subr.mxu0 0.0
        %1111 = vmatpush1.msra.mxu0 0.0
        %1112 = vmatprep.subr.mxu0 0.0
        %1113 = vmatpush1.msra.mxu0 0.0
        %1114 = vmatprep.subr.mxu0 0.0
        %1115 = vmatpush1.msra.mxu0 0.0
        %1116 = vmatprep.subr.mxu0 0.0
        %1117 = vmatpush1.msra.mxu0 0.0
        %1118 = vmatprep.subr.mxu0 0.0
        %1119 = vmatpush1.msra.mxu0 0.0
        %1120 = vmatprep.subr.mxu0 0.0
        %1121 = vmatpush1.msra.mxu0 0.0
        %1122 = vmatprep.subr.mxu0 0.0
        %1123 = vmatpush1.msra.mxu0 0.0
        %1124 = vmatprep.subr.mxu0 0.0
        %1125 = vmatpush1.msra.mxu0 0.0
        %1126 = vmatprep.subr.mxu0 0.0
        %1127 = vmatpush1.msra.mxu0 0.0
        %1128 = vmatprep.subr.mxu0 0.0
        %1129 = vmatpush1.msra.mxu0 0.0
        %1130 = vmatprep.subr.mxu0 0.0
        %1131 = vmatpush1.msra.mxu0 0.0
        %1132 = vmatprep.subr.mxu0 0.0
        %1133 = vmatpush1.msra.mxu0 0.0
        %1134 = vmatprep.subr.mxu0 0.0
        %1135 = vmatpush1.msra.mxu0 0.0
        %1136 = vmatprep.subr.mxu0 0.0
        %1137 = vmatpush1.msra.mxu0 0.0
        %1138 = vmatprep.subr.mxu0 0.0
        %1139 = vmatpush1.msra.mxu0 0.0
        %1140 = vmatprep.subr.mxu0 0.0
        %1141 = vmatpush1.msra.mxu0 0.0
        %1142 = vmatprep.subr.mxu0 0.0
        %1143 = vmatpush1.msra.mxu0 0.0
        %1144 = vmatprep.subr.mxu0 0.0
        %1145 = vmatpush1.msra.mxu0 0.0
        %1146 = vmatprep.subr.mxu0 0.0
        %1147 = vmatpush1.msra.mxu0 0.0
        %1148 = vmatprep.subr.mxu0 0.0
        %1149 = vmatpush1.msra.mxu0 0.0
        %1150 = vmatprep.subr.mxu0 0.0
        %1151 = vmatpush1.msra.mxu0 0.0
        %1152 = vmatprep.subr.mxu0 0.0
        %1153 = vmatpush1.msra.mxu0 0.0
        %1154 = vmatprep.mubr.f32.mxu0 0.0
        %1155 = vmatmul.mubr.f32.gmra.mrb[0].mxu0 %v517
        %v1156 = vpop.f32.mrb[0].mxu0
        %v1157 = vadd.f32 %v1088, %v1156
        %v1158 = vpop.f32.mrb[0].mxu0
        %1159 = vdwg.mxu0
        %v1161 = vsel %vm743, %v1001, 0
        %v1164 = vsel %vm743, %v1079, 0
        %1166 = vmatprep.subr.mxu0 0.0
        %1167 = vmatpush1.xpose.msra.mxu0 %v1164
        %1168 = vmatprep.subr.mxu0 0.0
        %1169 = vmatpush1.xpose.msra.mxu0 0.0
        %1170 = vmatprep.subr.mxu0 0.0
        %1171 = vmatpush1.xpose.msra.mxu0 0.0
        %1172 = vmatprep.subr.mxu0 0.0
        %1173 = vmatpush1.xpose.msra.mxu0 0.0
        %1174 = vmatprep.subr.mxu0 0.0
        %1175 = vmatpush1.xpose.msra.mxu0 0.0
        %1176 = vmatprep.subr.mxu0 0.0
        %1177 = vmatpush1.xpose.msra.mxu0 0.0
        %1178 = vmatprep.subr.mxu0 0.0
        %1179 = vmatpush1.xpose.msra.mxu0 0.0
        %1180 = vmatprep.subr.mxu0 0.0
        %1181 = vmatpush1.xpose.msra.mxu0 0.0
        %1182 = vmatprep.subr.mxu0 0.0
        %1183 = vmatpush1.xpose.msra.mxu0 0.0
        %1184 = vmatprep.subr.mxu0 0.0
        %1185 = vmatpush1.xpose.msra.mxu0 0.0
        %1186 = vmatprep.subr.mxu0 0.0
        %1187 = vmatpush1.xpose.msra.mxu0 0.0
        %1188 = vmatprep.subr.mxu0 0.0
        %1189 = vmatpush1.xpose.msra.mxu0 0.0
        %1190 = vmatprep.subr.mxu0 0.0
        %1191 = vmatpush1.xpose.msra.mxu0 0.0
        %1192 = vmatprep.subr.mxu0 0.0
        %1193 = vmatpush1.xpose.msra.mxu0 0.0
        %1194 = vmatprep.subr.mxu0 0.0
        %1195 = vmatpush1.xpose.msra.mxu0 0.0
        %1196 = vmatprep.subr.mxu0 0.0
        %1197 = vmatpush1.xpose.msra.mxu0 0.0
        %1198 = vmatprep.subr.mxu0 0.0
        %1199 = vmatpush1.xpose.msra.mxu0 0.0
        %1200 = vmatprep.subr.mxu0 0.0
        %1201 = vmatpush1.xpose.msra.mxu0 0.0
        %1202 = vmatprep.subr.mxu0 0.0
        %1203 = vmatpush1.xpose.msra.mxu0 0.0
        %1204 = vmatprep.subr.mxu0 0.0
        %1205 = vmatpush1.xpose.msra.mxu0 0.0
        %1206 = vmatprep.subr.mxu0 0.0
        %1207 = vmatpush1.xpose.msra.mxu0 0.0
        %1208 = vmatprep.subr.mxu0 0.0
        %1209 = vmatpush1.xpose.msra.mxu0 0.0
        %1210 = vmatprep.subr.mxu0 0.0
        %1211 = vmatpush1.xpose.msra.mxu0 0.0
        %1212 = vmatprep.subr.mxu0 0.0
        %1213 = vmatpush1.xpose.msra.mxu0 0.0
        %1214 = vmatprep.subr.mxu0 0.0
        %1215 = vmatpush1.xpose.msra.mxu0 0.0
        %1216 = vmatprep.subr.mxu0 0.0
        %1217 = vmatpush1.xpose.msra.mxu0 0.0
        %1218 = vmatprep.subr.mxu0 0.0
        %1219 = vmatpush1.xpose.msra.mxu0 0.0
        %1220 = vmatprep.subr.mxu0 0.0
        %1221 = vmatpush1.xpose.msra.mxu0 0.0
        %1222 = vmatprep.subr.mxu0 0.0
        %1223 = vmatpush1.xpose.msra.mxu0 0.0
        %1224 = vmatprep.subr.mxu0 0.0
        %1225 = vmatpush1.xpose.msra.mxu0 0.0
        %1226 = vmatprep.subr.mxu0 0.0
        %1227 = vmatpush1.xpose.msra.mxu0 0.0
        %1228 = vmatprep.subr.mxu0 0.0
        %1229 = vmatpush1.xpose.msra.mxu0 0.0
        %1230 = vmatprep.mubr.f32.mxu0 0.0
        %1231 = vmatmul.mubr.f32.gmra.mrb[0].mxu0 %v1161
        %v1232 = vpop.f32.mrb[0].mxu0
        %v1233 = vadd.f32 0.0, %v1232
        %v1234 = vpop.f32.mrb[0].mxu0
        %1235 = vdwg.mxu0
        %v1236 = vmul.f32 %v1233, 0.31622776
        %v1237 = vsel %vm821, %v1236, -inf
        %1238 = vmax.xlane.f32.xlu0 %v1237
        %v1239 = vpop.xlane.xlu0 %1238
        %v1240 = vsub.f32 %v1236, %v1239
        %v1241 = vmul.f32 %v1240, 1.442695
        %v1242 = vpow.pop %v1241
        %v1243 = vsel %vm821, %v1242, 0.0
        %1244 = vadd.xlane.f32.xlu0 %v1243
        %v1245 = vpop.xlane.xlu0 %1244
        %v1246 = vrcp.pop %v1245
        %v1247 = vmul.f32 %v1242, %v1246
        %v1249 = vsel %vm821, %v1247, 0
        %1251 = vmatprep.subr.mxu0 0.0
        %1252 = vmatpush1.msra.mxu0 %v1157
        %1253 = vmatprep.subr.mxu0 0.0
        %1254 = vmatpush1.msra.mxu0 0.0
        %1255 = vmatprep.subr.mxu0 0.0
        %1256 = vmatpush1.msra.mxu0 0.0
        %1257 = vmatprep.subr.mxu0 0.0
        %1258 = vmatpush1.msra.mxu0 0.0
        %1259 = vmatprep.subr.mxu0 0.0
        %1260 = vmatpush1.msra.mxu0 0.0
        %1261 = vmatprep.subr.mxu0 0.0
        %1262 = vmatpush1.msra.mxu0 0.0
        %1263 = vmatprep.subr.mxu0 0.0
        %1264 = vmatpush1.msra.mxu0 0.0
        %1265 = vmatprep.subr.mxu0 0.0
        %1266 = vmatpush1.msra.mxu0 0.0
        %1267 = vmatprep.subr.mxu0 0.0
        %1268 = vmatpush1.msra.mxu0 0.0
        %1269 = vmatprep.subr.mxu0 0.0
        %1270 = vmatpush1.msra.mxu0 0.0
        %1271 = vmatprep.subr.mxu0 0.0
        %1272 = vmatpush1.msra.mxu0 0.0
        %1273 = vmatprep.subr.mxu0 0.0
        %1274 = vmatpush1.msra.mxu0 0.0
        %1275 = vmatprep.subr.mxu0 0.0
        %1276 = vmatpush1.msra.mxu0 0.0
        %1277 = vmatprep.subr.mxu0 0.0
        %1278 = vmatpush1.msra.mxu0 0.0
        %1279 = vmatprep.subr.mxu0 0.0
        %1280 = vmatpush1.msra.mxu0 0.0
        %1281 = vmatprep.subr.mxu0 0.0
        %1282 = vmatpush1.msra.mxu0 0.0
        %1283 = vmatprep.subr.mxu0 0.0
        %1284 = vmatpush1.msra.mxu0 0.0
        %1285 = vmatprep.subr.mxu0 0.0
        %1286 = vmatpush1.msra.mxu0 0.0
        %1287 = vmatprep.subr.mxu0 0.0
        %1288 = vmatpush1.msra.mxu0 0.0
        %1289 = vmatprep.subr.mxu0 0.0
        %1290 = vmatpush1.msra.mxu0 0.0
        %1291 = vmatprep.subr.mxu0 0.0
        %1292 = vmatpush1.msra.mxu0 0.0
        %1293 = vmatprep.subr.mxu0 0.0
        %1294 = vmatpush1.msra.mxu0 0.0
        %1295 = vmatprep.subr.mxu0 0.0
        %1296 = vmatpush1.msra.mxu0 0.0
        %1297 = vmatprep.subr.mxu0 0.0
        %1298 = vmatpush1.msra.mxu0 0.0
        %1299 = vmatprep.subr.mxu0 0.0
        %1300 = vmatpush1.msra.mxu0 0.0
        %1301 = vmatprep.subr.mxu0 0.0
        %1302 = vmatpush1.msra.mxu0 0.0
        %1303 = vmatprep.subr.mxu0 0.0
        %1304 = vmatpush1.msra.mxu0 0.0
        %1305 = vmatprep.subr.mxu0 0.0
        %1306 = vmatpush1.msra.mxu0 0.0
        %1307 = vmatprep.subr.mxu0 0.0
        %1308 = vmatpush1.msra.mxu0 0.0
        %1309 = vmatprep.subr.mxu0 0.0
        %1310 = vmatpush1.msra.mxu0 0.0
        %1311 = vmatprep.subr.mxu0 0.0
        %1312 = vmatpush1.msra.mxu0 0.0
        %1313 = vmatprep.subr.mxu0 0.0
        %1314 = vmatpush1.msra.mxu0 0.0
        %1315 = vmatprep.mubr.f32.mxu0 0.0
        %1316 = vmatmul.mubr.f32.gmra.mrb[0].mxu0 %v1249
        %v1317 = vpop.f32.mrb[0].mxu0
        %v1318 = vadd.f32 0.0, %v1317
        %v1319 = vpop.f32.mrb[0].mxu0
        %1320 = vdwg.mxu0
        %s1321 = scalar_lea.vmem %s7, 16
        %v1322 = vld [vmem:[%s1321] sm:$0xff]
        %v1323 = vld [vmem:[%s1321 + $0x8] sm:$0x3]
        %v1325 = vsel %vm743, %v1318, 0
        %vm1327 = vcmask 1041408
        %v1329 = vsel %vm1327, %v1323, 0
        %1331 = vmatprep.subr.mxu0 0.0
        %1332 = vmatpush1.msra.mxu0 %v1322
        %1333 = vmatprep.subr.mxu0 0.0
        %1334 = vmatpush1.msra.mxu0 %v1329
        %1335 = vmatprep.subr.mxu0 0.0
        %1336 = vmatpush1.msra.mxu0 0.0
        %1337 = vmatprep.subr.mxu0 0.0
        %1338 = vmatpush1.msra.mxu0 0.0
        %1339 = vmatprep.subr.mxu0 0.0
        %1340 = vmatpush1.msra.mxu0 0.0
        %1341 = vmatprep.subr.mxu0 0.0
        %1342 = vmatpush1.msra.mxu0 0.0
        %1343 = vmatprep.subr.mxu0 0.0
        %1344 = vmatpush1.msra.mxu0 0.0
        %1345 = vmatprep.subr.mxu0 0.0
        %1346 = vmatpush1.msra.mxu0 0.0
        %1347 = vmatprep.subr.mxu0 0.0
        %1348 = vmatpush1.msra.mxu0 0.0
        %1349 = vmatprep.subr.mxu0 0.0
        %1350 = vmatpush1.msra.mxu0 0.0
        %1351 = vmatprep.subr.mxu0 0.0
        %1352 = vmatpush1.msra.mxu0 0.0
        %1353 = vmatprep.subr.mxu0 0.0
        %1354 = vmatpush1.msra.mxu0 0.0
        %1355 = vmatprep.subr.mxu0 0.0
        %1356 = vmatpush1.msra.mxu0 0.0
        %1357 = vmatprep.subr.mxu0 0.0
        %1358 = vmatpush1.msra.mxu0 0.0
        %1359 = vmatprep.subr.mxu0 0.0
        %1360 = vmatpush1.msra.mxu0 0.0
        %1361 = vmatprep.subr.mxu0 0.0
        %1362 = vmatpush1.msra.mxu0 0.0
        %1363 = vmatprep.subr.mxu0 0.0
        %1364 = vmatpush1.msra.mxu0 0.0
        %1365 = vmatprep.subr.mxu0 0.0
        %1366 = vmatpush1.msra.mxu0 0.0
        %1367 = vmatprep.subr.mxu0 0.0
        %1368 = vmatpush1.msra.mxu0 0.0
        %1369 = vmatprep.subr.mxu0 0.0
        %1370 = vmatpush1.msra.mxu0 0.0
        %1371 = vmatprep.subr.mxu0 0.0
        %1372 = vmatpush1.msra.mxu0 0.0
        %1373 = vmatprep.subr.mxu0 0.0
        %1374 = vmatpush1.msra.mxu0 0.0
        %1375 = vmatprep.subr.mxu0 0.0
        %1376 = vmatpush1.msra.mxu0 0.0
        %1377 = vmatprep.subr.mxu0 0.0
        %1378 = vmatpush1.msra.mxu0 0.0
        %1379 = vmatprep.subr.mxu0 0.0
        %1380 = vmatpush1.msra.mxu0 0.0
        %1381 = vmatprep.subr.mxu0 0.0
        %1382 = vmatpush1.msra.mxu0 0.0
        %1383 = vmatprep.subr.mxu0 0.0
        %1384 = vmatpush1.msra.mxu0 0.0
        %1385 = vmatprep.subr.mxu0 0.0
        %1386 = vmatpush1.msra.mxu0 0.0
        %1387 = vmatprep.subr.mxu0 0.0
        %1388 = vmatpush1.msra.mxu0 0.0
        %1389 = vmatprep.subr.mxu0 0.0
        %1390 = vmatpush1.msra.mxu0 0.0
        %1391 = vmatprep.subr.mxu0 0.0
        %1392 = vmatpush1.msra.mxu0 0.0
        %1393 = vmatprep.subr.mxu0 0.0
        %1394 = vmatpush1.msra.mxu0 0.0
        %1395 = vmatprep.mubr.f32.mxu0 0.0
        %1396 = vmatmul.mubr.f32.gmra.mrb[0].mxu0 %v1325
        %v1397 = vpop.f32.mrb[0].mxu0
        %v1398 = vadd.f32 0.0, %v1397
        %v1399 = vpop.f32.mrb[0].mxu0
        %1400 = vdwg.mxu0
        %v1402 = vsel %vm743, %v903, 0
        %v1405 = vsel %vm1327, %v907, 0
        %1407 = vmatprep.subr.mxu0 0.0
        %1408 = vmatpush1.msra.mxu0 %v906
        %1409 = vmatprep.subr.mxu0 0.0
        %1410 = vmatpush1.msra.mxu0 %v1405
        %1411 = vmatprep.subr.mxu0 0.0
        %1412 = vmatpush1.msra.mxu0 0.0
        %1413 = vmatprep.subr.mxu0 0.0
        %1414 = vmatpush1.msra.mxu0 0.0
        %1415 = vmatprep.subr.mxu0 0.0
        %1416 = vmatpush1.msra.mxu0 0.0
        %1417 = vmatprep.subr.mxu0 0.0
        %1418 = vmatpush1.msra.mxu0 0.0
        %1419 = vmatprep.subr.mxu0 0.0
        %1420 = vmatpush1.msra.mxu0 0.0
        %1421 = vmatprep.subr.mxu0 0.0
        %1422 = vmatpush1.msra.mxu0 0.0
        %1423 = vmatprep.subr.mxu0 0.0
        %1424 = vmatpush1.msra.mxu0 0.0
        %1425 = vmatprep.subr.mxu0 0.0
        %1426 = vmatpush1.msra.mxu0 0.0
        %1427 = vmatprep.subr.mxu0 0.0
        %1428 = vmatpush1.msra.mxu0 0.0
        %1429 = vmatprep.subr.mxu0 0.0
        %1430 = vmatpush1.msra.mxu0 0.0
        %1431 = vmatprep.subr.mxu0 0.0
        %1432 = vmatpush1.msra.mxu0 0.0
        %1433 = vmatprep.subr.mxu0 0.0
        %1434 = vmatpush1.msra.mxu0 0.0
        %1435 = vmatprep.subr.mxu0 0.0
        %1436 = vmatpush1.msra.mxu0 0.0
        %1437 = vmatprep.subr.mxu0 0.0
        %1438 = vmatpush1.msra.mxu0 0.0
        %1439 = vmatprep.subr.mxu0 0.0
        %1440 = vmatpush1.msra.mxu0 0.0
        %1441 = vmatprep.subr.mxu0 0.0
        %1442 = vmatpush1.msra.mxu0 0.0
        %1443 = vmatprep.subr.mxu0 0.0
        %1444 = vmatpush1.msra.mxu0 0.0
        %1445 = vmatprep.subr.mxu0 0.0
        %1446 = vmatpush1.msra.mxu0 0.0
        %1447 = vmatprep.subr.mxu0 0.0
        %1448 = vmatpush1.msra.mxu0 0.0
        %1449 = vmatprep.subr.mxu0 0.0
        %1450 = vmatpush1.msra.mxu0 0.0
        %1451 = vmatprep.subr.mxu0 0.0
        %1452 = vmatpush1.msra.mxu0 0.0
        %1453 = vmatprep.subr.mxu0 0.0
        %1454 = vmatpush1.msra.mxu0 0.0
        %1455 = vmatprep.subr.mxu0 0.0
        %1456 = vmatpush1.msra.mxu0 0.0
        %1457 = vmatprep.subr.mxu0 0.0
        %1458 = vmatpush1.msra.mxu0 0.0
        %1459 = vmatprep.subr.mxu0 0.0
        %1460 = vmatpush1.msra.mxu0 0.0
        %1461 = vmatprep.subr.mxu0 0.0
        %1462 = vmatpush1.msra.mxu0 0.0
        %1463 = vmatprep.subr.mxu0 0.0
        %1464 = vmatpush1.msra.mxu0 0.0
        %1465 = vmatprep.subr.mxu0 0.0
        %1466 = vmatpush1.msra.mxu0 0.0
        %1467 = vmatprep.subr.mxu0 0.0
        %1468 = vmatpush1.msra.mxu0 0.0
        %1469 = vmatprep.subr.mxu0 0.0
        %1470 = vmatpush1.msra.mxu0 0.0
        %1471 = vmatprep.mubr.f32.mxu0 0.0
        %1472 = vmatmul.mubr.f32.gmra.mrb[0].mxu0 %v1402
        %v1473 = vpop.f32.mrb[0].mxu0
        %v1474 = vadd.f32 %v1398, %v1473
        %v1475 = vpop.f32.mrb[0].mxu0
        %1476 = vdwg.mxu0
        %s1477 = scalar_lea.vmem %s1, 80
        %v1478 = vld [vmem:[%s1477] sm:$0xff]
        %v1479 = vld [vmem:[%s1477 + $0x8] sm:$0xff]
        %v1480 = vld [vmem:[%s1477 + $0x10] sm:$0xff]
        %v1481 = vld [vmem:[%s1477 + $0x18] sm:$0xff]
        %v1482 = vld [vmem:[%s1477 + $0x20] sm:$0xff]
        %s1483 = scalar_lea.vmem %s3, 80
        %v1484 = vld [vmem:[%s1483] sm:$0xff]
        %v1485 = vld [vmem:[%s1483 + $0x8] sm:$0xff]
        %v1486 = vld [vmem:[%s1483 + $0x10] sm:$0xff]
        %v1487 = vld [vmem:[%s1483 + $0x18] sm:$0xff]
        %v1488 = vld [vmem:[%s1483 + $0x20] sm:$0xff]
        %s1489 = scalar_lea.vmem %s5, 80
        %v1490 = vld [vmem:[%s1489] sm:$0xff]
        %v1491 = vld [vmem:[%s1489 + $0x8] sm:$0xff]
        %v1492 = vld [vmem:[%s1489 + $0x10] sm:$0xff]
        %v1493 = vld [vmem:[%s1489 + $0x18] sm:$0xff]
        %v1494 = vld [vmem:[%s1489 + $0x20] sm:$0xff]
        %s1495 = scalar_lea.vmem %s2, 2
        %v1496 = vld [vmem:[%s1495] sm:$0x1]
        %v1498 = vlaneseq
        %v1499 = vshrl.u32 %v1498, 7
        %v1500 = vsub.s32 0, %v1499
        %v1501 = vrot.slane %v1496, %v1500
        %1503 = vmatprep.subr.mxu0 0.0
        %1504 = vmatpush1.msra.mxu0 %v1478
        %1505 = vmatprep.subr.mxu0 0.0
        %1506 = vmatpush1.msra.mxu0 %v1479
        %1507 = vmatprep.subr.mxu0 0.0
        %1508 = vmatpush1.msra.mxu0 %v1480
        %1509 = vmatprep.subr.mxu0 0.0
        %1510 = vmatpush1.msra.mxu0 %v1481
        %1511 = vmatprep.subr.mxu0 0.0
        %1512 = vmatpush1.msra.mxu0 %v1482
        %1513 = vmatprep.subr.mxu0 0.0
        %1514 = vmatpush1.msra.mxu0 0.0
        %1515 = vmatprep.subr.mxu0 0.0
        %1516 = vmatpush1.msra.mxu0 0.0
        %1517 = vmatprep.subr.mxu0 0.0
        %1518 = vmatpush1.msra.mxu0 0.0
        %1519 = vmatprep.subr.mxu0 0.0
        %1520 = vmatpush1.msra.mxu0 0.0
        %1521 = vmatprep.subr.mxu0 0.0
        %1522 = vmatpush1.msra.mxu0 0.0
        %1523 = vmatprep.subr.mxu0 0.0
        %1524 = vmatpush1.msra.mxu0 0.0
        %1525 = vmatprep.subr.mxu0 0.0
        %1526 = vmatpush1.msra.mxu0 0.0
        %1527 = vmatprep.subr.mxu0 0.0
        %1528 = vmatpush1.msra.mxu0 0.0
        %1529 = vmatprep.subr.mxu0 0.0
        %1530 = vmatpush1.msra.mxu0 0.0
        %1531 = vmatprep.subr.mxu0 0.0
        %1532 = vmatpush1.msra.mxu0 0.0
        %1533 = vmatprep.subr.mxu0 0.0
        %1534 = vmatpush1.msra.mxu0 0.0
        %1535 = vmatprep.subr.mxu0 0.0
        %1536 = vmatpush1.msra.mxu0 0.0
        %1537 = vmatprep.subr.mxu0 0.0
        %1538 = vmatpush1.msra.mxu0 0.0
        %1539 = vmatprep.subr.mxu0 0.0
        %1540 = vmatpush1.msra.mxu0 0.0
        %1541 = vmatprep.subr.mxu0 0.0
        %1542 = vmatpush1.msra.mxu0 0.0
        %1543 = vmatprep.subr.mxu0 0.0
        %1544 = vmatpush1.msra.mxu0 0.0
        %1545 = vmatprep.subr.mxu0 0.0
        %1546 = vmatpush1.msra.mxu0 0.0
        %1547 = vmatprep.subr.mxu0 0.0
        %1548 = vmatpush1.msra.mxu0 0.0
        %1549 = vmatprep.subr.mxu0 0.0
        %1550 = vmatpush1.msra.mxu0 0.0
        %1551 = vmatprep.subr.mxu0 0.0
        %1552 = vmatpush1.msra.mxu0 0.0
        %1553 = vmatprep.subr.mxu0 0.0
        %1554 = vmatpush1.msra.mxu0 0.0
        %1555 = vmatprep.subr.mxu0 0.0
        %1556 = vmatpush1.msra.mxu0 0.0
        %1557 = vmatprep.subr.mxu0 0.0
        %1558 = vmatpush1.msra.mxu0 0.0
        %1559 = vmatprep.subr.mxu0 0.0
        %1560 = vmatpush1.msra.mxu0 0.0
        %1561 = vmatprep.subr.mxu0 0.0
        %1562 = vmatpush1.msra.mxu0 0.0
        %1563 = vmatprep.subr.mxu0 0.0
        %1564 = vmatpush1.msra.mxu0 0.0
        %1565 = vmatprep.subr.mxu0 0.0
        %1566 = vmatpush1.msra.mxu0 0.0
        %1567 = vmatprep.mubr.f32.mxu0 0.0
        %1568 = vmatmul.mubr.f32.gmra.mrb[0].mxu0 %v517
        %v1569 = vpop.f32.mrb[0].mxu0
        %v1570 = vadd.f32 %v1501, %v1569
        %v1571 = vpop.f32.mrb[0].mxu0
        %1572 = vdwg.mxu0
        %s1573 = scalar_lea.vmem %s4, 2
        %v1574 = vld [vmem:[%s1573] sm:$0x1]
        %v1576 = vlaneseq
        %v1577 = vshrl.u32 %v1576, 7
        %v1578 = vsub.s32 0, %v1577
        %v1579 = vrot.slane %v1574, %v1578
        %1581 = vmatprep.subr.mxu0 0.0
        %1582 = vmatpush1.msra.mxu0 %v1484
        %1583 = vmatprep.subr.mxu0 0.0
        %1584 = vmatpush1.msra.mxu0 %v1485
        %1585 = vmatprep.subr.mxu0 0.0
        %1586 = vmatpush1.msra.mxu0 %v1486
        %1587 = vmatprep.subr.mxu0 0.0
        %1588 = vmatpush1.msra.mxu0 %v1487
        %1589 = vmatprep.subr.mxu0 0.0
        %1590 = vmatpush1.msra.mxu0 %v1488
        %1591 = vmatprep.subr.mxu0 0.0
        %1592 = vmatpush1.msra.mxu0 0.0
        %1593 = vmatprep.subr.mxu0 0.0
        %1594 = vmatpush1.msra.mxu0 0.0
        %1595 = vmatprep.subr.mxu0 0.0
        %1596 = vmatpush1.msra.mxu0 0.0
        %1597 = vmatprep.subr.mxu0 0.0
        %1598 = vmatpush1.msra.mxu0 0.0
        %1599 = vmatprep.subr.mxu0 0.0
        %1600 = vmatpush1.msra.mxu0 0.0
        %1601 = vmatprep.subr.mxu0 0.0
        %1602 = vmatpush1.msra.mxu0 0.0
        %1603 = vmatprep.subr.mxu0 0.0
        %1604 = vmatpush1.msra.mxu0 0.0
        %1605 = vmatprep.subr.mxu0 0.0
        %1606 = vmatpush1.msra.mxu0 0.0
        %1607 = vmatprep.subr.mxu0 0.0
        %1608 = vmatpush1.msra.mxu0 0.0
        %1609 = vmatprep.subr.mxu0 0.0
        %1610 = vmatpush1.msra.mxu0 0.0
        %1611 = vmatprep.subr.mxu0 0.0
        %1612 = vmatpush1.msra.mxu0 0.0
        %1613 = vmatprep.subr.mxu0 0.0
        %1614 = vmatpush1.msra.mxu0 0.0
        %1615 = vmatprep.subr.mxu0 0.0
        %1616 = vmatpush1.msra.mxu0 0.0
        %1617 = vmatprep.subr.mxu0 0.0
        %1618 = vmatpush1.msra.mxu0 0.0
        %1619 = vmatprep.subr.mxu0 0.0
        %1620 = vmatpush1.msra.mxu0 0.0
        %1621 = vmatprep.subr.mxu0 0.0
        %1622 = vmatpush1.msra.mxu0 0.0
        %1623 = vmatprep.subr.mxu0 0.0
        %1624 = vmatpush1.msra.mxu0 0.0
        %1625 = vmatprep.subr.mxu0 0.0
        %1626 = vmatpush1.msra.mxu0 0.0
        %1627 = vmatprep.subr.mxu0 0.0
        %1628 = vmatpush1.msra.mxu0 0.0
        %1629 = vmatprep.subr.mxu0 0.0
        %1630 = vmatpush1.msra.mxu0 0.0
        %1631 = vmatprep.subr.mxu0 0.0
        %1632 = vmatpush1.msra.mxu0 0.0
        %1633 = vmatprep.subr.mxu0 0.0
        %1634 = vmatpush1.msra.mxu0 0.0
        %1635 = vmatprep.subr.mxu0 0.0
        %1636 = vmatpush1.msra.mxu0 0.0
        %1637 = vmatprep.subr.mxu0 0.0
        %1638 = vmatpush1.msra.mxu0 0.0
        %1639 = vmatprep.subr.mxu0 0.0
        %1640 = vmatpush1.msra.mxu0 0.0
        %1641 = vmatprep.subr.mxu0 0.0
        %1642 = vmatpush1.msra.mxu0 0.0
        %1643 = vmatprep.subr.mxu0 0.0
        %1644 = vmatpush1.msra.mxu0 0.0
        %1645 = vmatprep.mubr.f32.mxu0 0.0
        %1646 = vmatmul.mubr.f32.gmra.mrb[0].mxu0 %v517
        %v1647 = vpop.f32.mrb[0].mxu0
        %v1648 = vadd.f32 %v1579, %v1647
        %v1649 = vpop.f32.mrb[0].mxu0
        %1650 = vdwg.mxu0
        %s1651 = scalar_lea.vmem %s6, 2
        %v1652 = vld [vmem:[%s1651] sm:$0x1]
        %v1654 = vlaneseq
        %v1655 = vshrl.u32 %v1654, 7
        %v1656 = vsub.s32 0, %v1655
        %v1657 = vrot.slane %v1652, %v1656
        %1659 = vmatprep.subr.mxu0 0.0
        %1660 = vmatpush1.msra.mxu0 %v1490
        %1661 = vmatprep.subr.mxu0 0.0
        %1662 = vmatpush1.msra.mxu0 %v1491
        %1663 = vmatprep.subr.mxu0 0.0
        %1664 = vmatpush1.msra.mxu0 %v1492
        %1665 = vmatprep.subr.mxu0 0.0
        %1666 = vmatpush1.msra.mxu0 %v1493
        %1667 = vmatprep.subr.mxu0 0.0
        %1668 = vmatpush1.msra.mxu0 %v1494
        %1669 = vmatprep.subr.mxu0 0.0
        %1670 = vmatpush1.msra.mxu0 0.0
        %1671 = vmatprep.subr.mxu0 0.0
        %1672 = vmatpush1.msra.mxu0 0.0
        %1673 = vmatprep.subr.mxu0 0.0
        %1674 = vmatpush1.msra.mxu0 0.0
        %1675 = vmatprep.subr.mxu0 0.0
        %1676 = vmatpush1.msra.mxu0 0.0
        %1677 = vmatprep.subr.mxu0 0.0
        %1678 = vmatpush1.msra.mxu0 0.0
        %1679 = vmatprep.subr.mxu0 0.0
        %1680 = vmatpush1.msra.mxu0 0.0
        %1681 = vmatprep.subr.mxu0 0.0
        %1682 = vmatpush1.msra.mxu0 0.0
        %1683 = vmatprep.subr.mxu0 0.0
        %1684 = vmatpush1.msra.mxu0 0.0
        %1685 = vmatprep.subr.mxu0 0.0
        %1686 = vmatpush1.msra.mxu0 0.0
        %1687 = vmatprep.subr.mxu0 0.0
        %1688 = vmatpush1.msra.mxu0 0.0
        %1689 = vmatprep.subr.mxu0 0.0
        %1690 = vmatpush1.msra.mxu0 0.0
        %1691 = vmatprep.subr.mxu0 0.0
        %1692 = vmatpush1.msra.mxu0 0.0
        %1693 = vmatprep.subr.mxu0 0.0
        %1694 = vmatpush1.msra.mxu0 0.0
        %1695 = vmatprep.subr.mxu0 0.0
        %1696 = vmatpush1.msra.mxu0 0.0
        %1697 = vmatprep.subr.mxu0 0.0
        %1698 = vmatpush1.msra.mxu0 0.0
        %1699 = vmatprep.subr.mxu0 0.0
        %1700 = vmatpush1.msra.mxu0 0.0
        %1701 = vmatprep.subr.mxu0 0.0
        %1702 = vmatpush1.msra.mxu0 0.0
        %1703 = vmatprep.subr.mxu0 0.0
        %1704 = vmatpush1.msra.mxu0 0.0
        %1705 = vmatprep.subr.mxu0 0.0
        %1706 = vmatpush1.msra.mxu0 0.0
        %1707 = vmatprep.subr.mxu0 0.0
        %1708 = vmatpush1.msra.mxu0 0.0
        %1709 = vmatprep.subr.mxu0 0.0
        %1710 = vmatpush1.msra.mxu0 0.0
        %1711 = vmatprep.subr.mxu0 0.0
        %1712 = vmatpush1.msra.mxu0 0.0
        %1713 = vmatprep.subr.mxu0 0.0
        %1714 = vmatpush1.msra.mxu0 0.0
        %1715 = vmatprep.subr.mxu0 0.0
        %1716 = vmatpush1.msra.mxu0 0.0
        %1717 = vmatprep.subr.mxu0 0.0
        %1718 = vmatpush1.msra.mxu0 0.0
        %1719 = vmatprep.subr.mxu0 0.0
        %1720 = vmatpush1.msra.mxu0 0.0
        %1721 = vmatprep.subr.mxu0 0.0
        %1722 = vmatpush1.msra.mxu0 0.0
        %1723 = vmatprep.mubr.f32.mxu0 0.0
        %1724 = vmatmul.mubr.f32.gmra.mrb[0].mxu0 %v517
        %v1725 = vpop.f32.mrb[0].mxu0
        %v1726 = vadd.f32 %v1657, %v1725
        %v1727 = vpop.f32.mrb[0].mxu0
        %1728 = vdwg.mxu0
        %v1730 = vsel %vm743, %v1570, 0
        %v1733 = vsel %vm743, %v1648, 0
        %1735 = vmatprep.subr.mxu0 0.0
        %1736 = vmatpush1.xpose.msra.mxu0 %v1733
        %1737 = vmatprep.subr.mxu0 0.0
        %1738 = vmatpush1.xpose.msra.mxu0 0.0
        %1739 = vmatprep.subr.mxu0 0.0
        %1740 = vmatpush1.xpose.msra.mxu0 0.0
        %1741 = vmatprep.subr.mxu0 0.0
        %1742 = vmatpush1.xpose.msra.mxu0 0.0
        %1743 = vmatprep.subr.mxu0 0.0
        %1744 = vmatpush1.xpose.msra.mxu0 0.0
        %1745 = vmatprep.subr.mxu0 0.0
        %1746 = vmatpush1.xpose.msra.mxu0 0.0
        %1747 = vmatprep.subr.mxu0 0.0
        %1748 = vmatpush1.xpose.msra.mxu0 0.0
        %1749 = vmatprep.subr.mxu0 0.0
        %1750 = vmatpush1.xpose.msra.mxu0 0.0
        %1751 = vmatprep.subr.mxu0 0.0
        %1752 = vmatpush1.xpose.msra.mxu0 0.0
        %1753 = vmatprep.subr.mxu0 0.0
        %1754 = vmatpush1.xpose.msra.mxu0 0.0
        %1755 = vmatprep.subr.mxu0 0.0
        %1756 = vmatpush1.xpose.msra.mxu0 0.0
        %1757 = vmatprep.subr.mxu0 0.0
        %1758 = vmatpush1.xpose.msra.mxu0 0.0
        %1759 = vmatprep.subr.mxu0 0.0
        %1760 = vmatpush1.xpose.msra.mxu0 0.0
        %1761 = vmatprep.subr.mxu0 0.0
        %1762 = vmatpush1.xpose.msra.mxu0 0.0
        %1763 = vmatprep.subr.mxu0 0.0
        %1764 = vmatpush1.xpose.msra.mxu0 0.0
        %1765 = vmatprep.subr.mxu0 0.0
        %1766 = vmatpush1.xpose.msra.mxu0 0.0
        %1767 = vmatprep.subr.mxu0 0.0
        %1768 = vmatpush1.xpose.msra.mxu0 0.0
        %1769 = vmatprep.subr.mxu0 0.0
        %1770 = vmatpush1.xpose.msra.mxu0 0.0
        %1771 = vmatprep.subr.mxu0 0.0
        %1772 = vmatpush1.xpose.msra.mxu0 0.0
        %1773 = vmatprep.subr.mxu0 0.0
        %1774 = vmatpush1.xpose.msra.mxu0 0.0
        %1775 = vmatprep.subr.mxu0 0.0
        %1776 = vmatpush1.xpose.msra.mxu0 0.0
        %1777 = vmatprep.subr.mxu0 0.0
        %1778 = vmatpush1.xpose.msra.mxu0 0.0
        %1779 = vmatprep.subr.mxu0 0.0
        %1780 = vmatpush1.xpose.msra.mxu0 0.0
        %1781 = vmatprep.subr.mxu0 0.0
        %1782 = vmatpush1.xpose.msra.mxu0 0.0
        %1783 = vmatprep.subr.mxu0 0.0
        %1784 = vmatpush1.xpose.msra.mxu0 0.0
        %1785 = vmatprep.subr.mxu0 0.0
        %1786 = vmatpush1.xpose.msra.mxu0 0.0
        %1787 = vmatprep.subr.mxu0 0.0
        %1788 = vmatpush1.xpose.msra.mxu0 0.0
        %1789 = vmatprep.subr.mxu0 0.0
        %1790 = vmatpush1.xpose.msra.mxu0 0.0
        %1791 = vmatprep.subr.mxu0 0.0
        %1792 = vmatpush1.xpose.msra.mxu0 0.0
        %1793 = vmatprep.subr.mxu0 0.0
        %1794 = vmatpush1.xpose.msra.mxu0 0.0
        %1795 = vmatprep.subr.mxu0 0.0
        %1796 = vmatpush1.xpose.msra.mxu0 0.0
        %1797 = vmatprep.subr.mxu0 0.0
        %1798 = vmatpush1.xpose.msra.mxu0 0.0
        %1799 = vmatprep.mubr.f32.mxu0 0.0
        %1800 = vmatmul.mubr.f32.gmra.mrb[0].mxu0 %v1730
        %v1801 = vpop.f32.mrb[0].mxu0
        %v1802 = vadd.f32 0.0, %v1801
        %v1803 = vpop.f32.mrb[0].mxu0
        %1804 = vdwg.mxu0
        %v1805 = vmul.f32 %v1802, 0.31622776
        %v1806 = vsel %vm821, %v1805, -inf
        %1807 = vmax.xlane.f32.xlu0 %v1806
        %v1808 = vpop.xlane.xlu0 %1807
        %v1809 = vsub.f32 %v1805, %v1808
        %v1810 = vmul.f32 %v1809, 1.442695
        %v1811 = vpow.pop %v1810
        %v1812 = vsel %vm821, %v1811, 0.0
        %1813 = vadd.xlane.f32.xlu0 %v1812
        %v1814 = vpop.xlane.xlu0 %1813
        %v1815 = vrcp.pop %v1814
        %v1816 = vmul.f32 %v1811, %v1815
        %v1818 = vsel %vm821, %v1816, 0
        %1820 = vmatprep.subr.mxu0 0.0
        %1821 = vmatpush1.msra.mxu0 %v1726
        %1822 = vmatprep.subr.mxu0 0.0
        %1823 = vmatpush1.msra.mxu0 0.0
        %1824 = vmatprep.subr.mxu0 0.0
        %1825 = vmatpush1.msra.mxu0 0.0
        %1826 = vmatprep.subr.mxu0 0.0
        %1827 = vmatpush1.msra.mxu0 0.0
        %1828 = vmatprep.subr.mxu0 0.0
        %1829 = vmatpush1.msra.mxu0 0.0
        %1830 = vmatprep.subr.mxu0 0.0
        %1831 = vmatpush1.msra.mxu0 0.0
        %1832 = vmatprep.subr.mxu0 0.0
        %1833 = vmatpush1.msra.mxu0 0.0
        %1834 = vmatprep.subr.mxu0 0.0
        %1835 = vmatpush1.msra.mxu0 0.0
        %1836 = vmatprep.subr.mxu0 0.0
        %1837 = vmatpush1.msra.mxu0 0.0
        %1838 = vmatprep.subr.mxu0 0.0
        %1839 = vmatpush1.msra.mxu0 0.0
        %1840 = vmatprep.subr.mxu0 0.0
        %1841 = vmatpush1.msra.mxu0 0.0
        %1842 = vmatprep.subr.mxu0 0.0
        %1843 = vmatpush1.msra.mxu0 0.0
        %1844 = vmatprep.subr.mxu0 0.0
        %1845 = vmatpush1.msra.mxu0 0.0
        %1846 = vmatprep.subr.mxu0 0.0
        %1847 = vmatpush1.msra.mxu0 0.0
        %1848 = vmatprep.subr.mxu0 0.0
        %1849 = vmatpush1.msra.mxu0 0.0
        %1850 = vmatprep.subr.mxu0 0.0
        %1851 = vmatpush1.msra.mxu0 0.0
        %1852 = vmatprep.subr.mxu0 0.0
        %1853 = vmatpush1.msra.mxu0 0.0
        %1854 = vmatprep.subr.mxu0 0.0
        %1855 = vmatpush1.msra.mxu0 0.0
        %1856 = vmatprep.subr.mxu0 0.0
        %1857 = vmatpush1.msra.mxu0 0.0
        %1858 = vmatprep.subr.mxu0 0.0
        %1859 = vmatpush1.msra.mxu0 0.0
        %1860 = vmatprep.subr.mxu0 0.0
        %1861 = vmatpush1.msra.mxu0 0.0
        %1862 = vmatprep.subr.mxu0 0.0
        %1863 = vmatpush1.msra.mxu0 0.0
        %1864 = vmatprep.subr.mxu0 0.0
        %1865 = vmatpush1.msra.mxu0 0.0
        %1866 = vmatprep.subr.mxu0 0.0
        %1867 = vmatpush1.msra.mxu0 0.0
        %1868 = vmatprep.subr.mxu0 0.0
        %1869 = vmatpush1.msra.mxu0 0.0
        %1870 = vmatprep.subr.mxu0 0.0
        %1871 = vmatpush1.msra.mxu0 0.0
        %1872 = vmatprep.subr.mxu0 0.0
        %1873 = vmatpush1.msra.mxu0 0.0
        %1874 = vmatprep.subr.mxu0 0.0
        %1875 = vmatpush1.msra.mxu0 0.0
        %1876 = vmatprep.subr.mxu0 0.0
        %1877 = vmatpush1.msra.mxu0 0.0
        %1878 = vmatprep.subr.mxu0 0.0
        %1879 = vmatpush1.msra.mxu0 0.0
        %1880 = vmatprep.subr.mxu0 0.0
        %1881 = vmatpush1.msra.mxu0 0.0
        %1882 = vmatprep.subr.mxu0 0.0
        %1883 = vmatpush1.msra.mxu0 0.0
        %1884 = vmatprep.mubr.f32.mxu0 0.0
        %1885 = vmatmul.mubr.f32.gmra.mrb[0].mxu0 %v1818
        %v1886 = vpop.f32.mrb[0].mxu0
        %v1887 = vadd.f32 0.0, %v1886
        %v1888 = vpop.f32.mrb[0].mxu0
        %1889 = vdwg.mxu0
        %s1890 = scalar_lea.vmem %s7, 32
        %v1891 = vld [vmem:[%s1890] sm:$0xff]
        %v1892 = vld [vmem:[%s1890 + $0x8] sm:$0x3]
        %v1894 = vsel %vm743, %v1887, 0
        %v1897 = vsel %vm1327, %v1892, 0
        %1899 = vmatprep.subr.mxu0 0.0
        %1900 = vmatpush1.msra.mxu0 %v1891
        %1901 = vmatprep.subr.mxu0 0.0
        %1902 = vmatpush1.msra.mxu0 %v1897
        %1903 = vmatprep.subr.mxu0 0.0
        %1904 = vmatpush1.msra.mxu0 0.0
        %1905 = vmatprep.subr.mxu0 0.0
        %1906 = vmatpush1.msra.mxu0 0.0
        %1907 = vmatprep.subr.mxu0 0.0
        %1908 = vmatpush1.msra.mxu0 0.0
        %1909 = vmatprep.subr.mxu0 0.0
        %1910 = vmatpush1.msra.mxu0 0.0
        %1911 = vmatprep.subr.mxu0 0.0
        %1912 = vmatpush1.msra.mxu0 0.0
        %1913 = vmatprep.subr.mxu0 0.0
        %1914 = vmatpush1.msra.mxu0 0.0
        %1915 = vmatprep.subr.mxu0 0.0
        %1916 = vmatpush1.msra.mxu0 0.0
        %1917 = vmatprep.subr.mxu0 0.0
        %1918 = vmatpush1.msra.mxu0 0.0
        %1919 = vmatprep.subr.mxu0 0.0
        %1920 = vmatpush1.msra.mxu0 0.0
        %1921 = vmatprep.subr.mxu0 0.0
        %1922 = vmatpush1.msra.mxu0 0.0
        %1923 = vmatprep.subr.mxu0 0.0
        %1924 = vmatpush1.msra.mxu0 0.0
        %1925 = vmatprep.subr.mxu0 0.0
        %1926 = vmatpush1.msra.mxu0 0.0
        %1927 = vmatprep.subr.mxu0 0.0
        %1928 = vmatpush1.msra.mxu0 0.0
        %1929 = vmatprep.subr.mxu0 0.0
        %1930 = vmatpush1.msra.mxu0 0.0
        %1931 = vmatprep.subr.mxu0 0.0
        %1932 = vmatpush1.msra.mxu0 0.0
        %1933 = vmatprep.subr.mxu0 0.0
        %1934 = vmatpush1.msra.mxu0 0.0
        %1935 = vmatprep.subr.mxu0 0.0
        %1936 = vmatpush1.msra.mxu0 0.0
        %1937 = vmatprep.subr.mxu0 0.0
        %1938 = vmatpush1.msra.mxu0 0.0
        %1939 = vmatprep.subr.mxu0 0.0
        %1940 = vmatpush1.msra.mxu0 0.0
        %1941 = vmatprep.subr.mxu0 0.0
        %1942 = vmatpush1.msra.mxu0 0.0
        %1943 = vmatprep.subr.mxu0 0.0
        %1944 = vmatpush1.msra.mxu0 0.0
        %1945 = vmatprep.subr.mxu0 0.0
        %1946 = vmatpush1.msra.mxu0 0.0
        %1947 = vmatprep.subr.mxu0 0.0
        %1948 = vmatpush1.msra.mxu0 0.0
        %1949 = vmatprep.subr.mxu0 0.0
        %1950 = vmatpush1.msra.mxu0 0.0
        %1951 = vmatprep.subr.mxu0 0.0
        %1952 = vmatpush1.msra.mxu0 0.0
        %1953 = vmatprep.subr.mxu0 0.0
        %1954 = vmatpush1.msra.mxu0 0.0
        %1955 = vmatprep.subr.mxu0 0.0
        %1956 = vmatpush1.msra.mxu0 0.0
        %1957 = vmatprep.subr.mxu0 0.0
        %1958 = vmatpush1.msra.mxu0 0.0
        %1959 = vmatprep.subr.mxu0 0.0
        %1960 = vmatpush1.msra.mxu0 0.0
        %1961 = vmatprep.subr.mxu0 0.0
        %1962 = vmatpush1.msra.mxu0 0.0
        %1963 = vmatprep.mubr.f32.mxu0 0.0
        %1964 = vmatmul.mubr.f32.gmra.mrb[0].mxu0 %v1894
        %v1965 = vpop.f32.mrb[0].mxu0
        %v1966 = vadd.f32 0.0, %v1965
        %v1967 = vpop.f32.mrb[0].mxu0
        %1968 = vdwg.mxu0
        %v1969 = vadd.f32 %v1474, %v1966
        %s1970 = scalar_lea.vmem %s1, 120
        %v1971 = vld [vmem:[%s1970] sm:$0xff]
        %v1972 = vld [vmem:[%s1970 + $0x8] sm:$0xff]
        %v1973 = vld [vmem:[%s1970 + $0x10] sm:$0xff]
        %v1974 = vld [vmem:[%s1970 + $0x18] sm:$0xff]
        %v1975 = vld [vmem:[%s1970 + $0x20] sm:$0xff]
        %s1976 = scalar_lea.vmem %s3, 120
        %v1977 = vld [vmem:[%s1976] sm:$0xff]
        %v1978 = vld [vmem:[%s1976 + $0x8] sm:$0xff]
        %v1979 = vld [vmem:[%s1976 + $0x10] sm:$0xff]
        %v1980 = vld [vmem:[%s1976 + $0x18] sm:$0xff]
        %v1981 = vld [vmem:[%s1976 + $0x20] sm:$0xff]
        %s1982 = scalar_lea.vmem %s5, 120
        %v1983 = vld [vmem:[%s1982] sm:$0xff]
        %v1984 = vld [vmem:[%s1982 + $0x8] sm:$0xff]
        %v1985 = vld [vmem:[%s1982 + $0x10] sm:$0xff]
        %v1986 = vld [vmem:[%s1982 + $0x18] sm:$0xff]
        %v1987 = vld [vmem:[%s1982 + $0x20] sm:$0xff]
        %s1988 = scalar_lea.vmem %s2, 3
        %v1989 = vld [vmem:[%s1988] sm:$0x1]
        %v1991 = vlaneseq
        %v1992 = vshrl.u32 %v1991, 7
        %v1993 = vsub.s32 0, %v1992
        %v1994 = vrot.slane %v1989, %v1993
        %1996 = vmatprep.subr.mxu0 0.0
        %1997 = vmatpush1.msra.mxu0 %v1971
        %1998 = vmatprep.subr.mxu0 0.0
        %1999 = vmatpush1.msra.mxu0 %v1972
        %2000 = vmatprep.subr.mxu0 0.0
        %2001 = vmatpush1.msra.mxu0 %v1973
        %2002 = vmatprep.subr.mxu0 0.0
        %2003 = vmatpush1.msra.mxu0 %v1974
        %2004 = vmatprep.subr.mxu0 0.0
        %2005 = vmatpush1.msra.mxu0 %v1975
        %2006 = vmatprep.subr.mxu0 0.0
        %2007 = vmatpush1.msra.mxu0 0.0
        %2008 = vmatprep.subr.mxu0 0.0
        %2009 = vmatpush1.msra.mxu0 0.0
        %2010 = vmatprep.subr.mxu0 0.0
        %2011 = vmatpush1.msra.mxu0 0.0
        %2012 = vmatprep.subr.mxu0 0.0
        %2013 = vmatpush1.msra.mxu0 0.0
        %2014 = vmatprep.subr.mxu0 0.0
        %2015 = vmatpush1.msra.mxu0 0.0
        %2016 = vmatprep.subr.mxu0 0.0
        %2017 = vmatpush1.msra.mxu0 0.0
        %2018 = vmatprep.subr.mxu0 0.0
        %2019 = vmatpush1.msra.mxu0 0.0
        %2020 = vmatprep.subr.mxu0 0.0
        %2021 = vmatpush1.msra.mxu0 0.0
        %2022 = vmatprep.subr.mxu0 0.0
        %2023 = vmatpush1.msra.mxu0 0.0
        %2024 = vmatprep.subr.mxu0 0.0
        %2025 = vmatpush1.msra.mxu0 0.0
        %2026 = vmatprep.subr.mxu0 0.0
        %2027 = vmatpush1.msra.mxu0 0.0
        %2028 = vmatprep.subr.mxu0 0.0
        %2029 = vmatpush1.msra.mxu0 0.0
        %2030 = vmatprep.subr.mxu0 0.0
        %2031 = vmatpush1.msra.mxu0 0.0
        %2032 = vmatprep.subr.mxu0 0.0
        %2033 = vmatpush1.msra.mxu0 0.0
        %2034 = vmatprep.subr.mxu0 0.0
        %2035 = vmatpush1.msra.mxu0 0.0
        %2036 = vmatprep.subr.mxu0 0.0
        %2037 = vmatpush1.msra.mxu0 0.0
        %2038 = vmatprep.subr.mxu0 0.0
        %2039 = vmatpush1.msra.mxu0 0.0
        %2040 = vmatprep.subr.mxu0 0.0
        %2041 = vmatpush1.msra.mxu0 0.0
        %2042 = vmatprep.subr.mxu0 0.0
        %2043 = vmatpush1.msra.mxu0 0.0
        %2044 = vmatprep.subr.mxu0 0.0
        %2045 = vmatpush1.msra.mxu0 0.0
        %2046 = vmatprep.subr.mxu0 0.0
        %2047 = vmatpush1.msra.mxu0 0.0
        %2048 = vmatprep.subr.mxu0 0.0
        %2049 = vmatpush1.msra.mxu0 0.0
        %2050 = vmatprep.subr.mxu0 0.0
        %2051 = vmatpush1.msra.mxu0 0.0
        %2052 = vmatprep.subr.mxu0 0.0
        %2053 = vmatpush1.msra.mxu0 0.0
        %2054 = vmatprep.subr.mxu0 0.0
        %2055 = vmatpush1.msra.mxu0 0.0
        %2056 = vmatprep.subr.mxu0 0.0
        %2057 = vmatpush1.msra.mxu0 0.0
        %2058 = vmatprep.subr.mxu0 0.0
        %2059 = vmatpush1.msra.mxu0 0.0
        %2060 = vmatprep.mubr.f32.mxu0 0.0
        %2061 = vmatmul.mubr.f32.gmra.mrb[0].mxu0 %v517
        %v2062 = vpop.f32.mrb[0].mxu0
        %v2063 = vadd.f32 %v1994, %v2062
        %v2064 = vpop.f32.mrb[0].mxu0
        %2065 = vdwg.mxu0
        %s2066 = scalar_lea.vmem %s4, 3
        %v2067 = vld [vmem:[%s2066] sm:$0x1]
        %v2069 = vlaneseq
        %v2070 = vshrl.u32 %v2069, 7
        %v2071 = vsub.s32 0, %v2070
        %v2072 = vrot.slane %v2067, %v2071
        %2074 = vmatprep.subr.mxu0 0.0
        %2075 = vmatpush1.msra.mxu0 %v1977
        %2076 = vmatprep.subr.mxu0 0.0
        %2077 = vmatpush1.msra.mxu0 %v1978
        %2078 = vmatprep.subr.mxu0 0.0
        %2079 = vmatpush1.msra.mxu0 %v1979
        %2080 = vmatprep.subr.mxu0 0.0
        %2081 = vmatpush1.msra.mxu0 %v1980
        %2082 = vmatprep.subr.mxu0 0.0
        %2083 = vmatpush1.msra.mxu0 %v1981
        %2084 = vmatprep.subr.mxu0 0.0
        %2085 = vmatpush1.msra.mxu0 0.0
        %2086 = vmatprep.subr.mxu0 0.0
        %2087 = vmatpush1.msra.mxu0 0.0
        %2088 = vmatprep.subr.mxu0 0.0
        %2089 = vmatpush1.msra.mxu0 0.0
        %2090 = vmatprep.subr.mxu0 0.0
        %2091 = vmatpush1.msra.mxu0 0.0
        %2092 = vmatprep.subr.mxu0 0.0
        %2093 = vmatpush1.msra.mxu0 0.0
        %2094 = vmatprep.subr.mxu0 0.0
        %2095 = vmatpush1.msra.mxu0 0.0
        %2096 = vmatprep.subr.mxu0 0.0
        %2097 = vmatpush1.msra.mxu0 0.0
        %2098 = vmatprep.subr.mxu0 0.0
        %2099 = vmatpush1.msra.mxu0 0.0
        %2100 = vmatprep.subr.mxu0 0.0
        %2101 = vmatpush1.msra.mxu0 0.0
        %2102 = vmatprep.subr.mxu0 0.0
        %2103 = vmatpush1.msra.mxu0 0.0
        %2104 = vmatprep.subr.mxu0 0.0
        %2105 = vmatpush1.msra.mxu0 0.0
        %2106 = vmatprep.subr.mxu0 0.0
        %2107 = vmatpush1.msra.mxu0 0.0
        %2108 = vmatprep.subr.mxu0 0.0
        %2109 = vmatpush1.msra.mxu0 0.0
        %2110 = vmatprep.subr.mxu0 0.0
        %2111 = vmatpush1.msra.mxu0 0.0
        %2112 = vmatprep.subr.mxu0 0.0
        %2113 = vmatpush1.msra.mxu0 0.0
        %2114 = vmatprep.subr.mxu0 0.0
        %2115 = vmatpush1.msra.mxu0 0.0
        %2116 = vmatprep.subr.mxu0 0.0
        %2117 = vmatpush1.msra.mxu0 0.0
        %2118 = vmatprep.subr.mxu0 0.0
        %2119 = vmatpush1.msra.mxu0 0.0
        %2120 = vmatprep.subr.mxu0 0.0
        %2121 = vmatpush1.msra.mxu0 0.0
        %2122 = vmatprep.subr.mxu0 0.0
        %2123 = vmatpush1.msra.mxu0 0.0
        %2124 = vmatprep.subr.mxu0 0.0
        %2125 = vmatpush1.msra.mxu0 0.0
        %2126 = vmatprep.subr.mxu0 0.0
        %2127 = vmatpush1.msra.mxu0 0.0
        %2128 = vmatprep.subr.mxu0 0.0
        %2129 = vmatpush1.msra.mxu0 0.0
        %2130 = vmatprep.subr.mxu0 0.0
        %2131 = vmatpush1.msra.mxu0 0.0
        %2132 = vmatprep.subr.mxu0 0.0
        %2133 = vmatpush1.msra.mxu0 0.0
        %2134 = vmatprep.subr.mxu0 0.0
        %2135 = vmatpush1.msra.mxu0 0.0
        %2136 = vmatprep.subr.mxu0 0.0
        %2137 = vmatpush1.msra.mxu0 0.0
        %2138 = vmatprep.mubr.f32.mxu0 0.0
        %2139 = vmatmul.mubr.f32.gmra.mrb[0].mxu0 %v517
        %v2140 = vpop.f32.mrb[0].mxu0
        %v2141 = vadd.f32 %v2072, %v2140
        %v2142 = vpop.f32.mrb[0].mxu0
        %2143 = vdwg.mxu0
        %s2144 = scalar_lea.vmem %s6, 3
        %v2145 = vld [vmem:[%s2144] sm:$0x1]
        %v2147 = vlaneseq
        %v2148 = vshrl.u32 %v2147, 7
        %v2149 = vsub.s32 0, %v2148
        %v2150 = vrot.slane %v2145, %v2149
        %2152 = vmatprep.subr.mxu0 0.0
        %2153 = vmatpush1.msra.mxu0 %v1983
        %2154 = vmatprep.subr.mxu0 0.0
        %2155 = vmatpush1.msra.mxu0 %v1984
        %2156 = vmatprep.subr.mxu0 0.0
        %2157 = vmatpush1.msra.mxu0 %v1985
        %2158 = vmatprep.subr.mxu0 0.0
        %2159 = vmatpush1.msra.mxu0 %v1986
        %2160 = vmatprep.subr.mxu0 0.0
        %2161 = vmatpush1.msra.mxu0 %v1987
        %2162 = vmatprep.subr.mxu0 0.0
        %2163 = vmatpush1.msra.mxu0 0.0
        %2164 = vmatprep.subr.mxu0 0.0
        %2165 = vmatpush1.msra.mxu0 0.0
        %2166 = vmatprep.subr.mxu0 0.0
        %2167 = vmatpush1.msra.mxu0 0.0
        %2168 = vmatprep.subr.mxu0 0.0
        %2169 = vmatpush1.msra.mxu0 0.0
        %2170 = vmatprep.subr.mxu0 0.0
        %2171 = vmatpush1.msra.mxu0 0.0
        %2172 = vmatprep.subr.mxu0 0.0
        %2173 = vmatpush1.msra.mxu0 0.0
        %2174 = vmatprep.subr.mxu0 0.0
        %2175 = vmatpush1.msra.mxu0 0.0
        %2176 = vmatprep.subr.mxu0 0.0
        %2177 = vmatpush1.msra.mxu0 0.0
        %2178 = vmatprep.subr.mxu0 0.0
        %2179 = vmatpush1.msra.mxu0 0.0
        %2180 = vmatprep.subr.mxu0 0.0
        %2181 = vmatpush1.msra.mxu0 0.0
        %2182 = vmatprep.subr.mxu0 0.0
        %2183 = vmatpush1.msra.mxu0 0.0
        %2184 = vmatprep.subr.mxu0 0.0
        %2185 = vmatpush1.msra.mxu0 0.0
        %2186 = vmatprep.subr.mxu0 0.0
        %2187 = vmatpush1.msra.mxu0 0.0
        %2188 = vmatprep.subr.mxu0 0.0
        %2189 = vmatpush1.msra.mxu0 0.0
        %2190 = vmatprep.subr.mxu0 0.0
        %2191 = vmatpush1.msra.mxu0 0.0
        %2192 = vmatprep.subr.mxu0 0.0
        %2193 = vmatpush1.msra.mxu0 0.0
        %2194 = vmatprep.subr.mxu0 0.0
        %2195 = vmatpush1.msra.mxu0 0.0
        %2196 = vmatprep.subr.mxu0 0.0
        %2197 = vmatpush1.msra.mxu0 0.0
        %2198 = vmatprep.subr.mxu0 0.0
        %2199 = vmatpush1.msra.mxu0 0.0
        %2200 = vmatprep.subr.mxu0 0.0
        %2201 = vmatpush1.msra.mxu0 0.0
        %2202 = vmatprep.subr.mxu0 0.0
        %2203 = vmatpush1.msra.mxu0 0.0
        %2204 = vmatprep.subr.mxu0 0.0
        %2205 = vmatpush1.msra.mxu0 0.0
        %2206 = vmatprep.subr.mxu0 0.0
        %2207 = vmatpush1.msra.mxu0 0.0
        %2208 = vmatprep.subr.mxu0 0.0
        %2209 = vmatpush1.msra.mxu0 0.0
        %2210 = vmatprep.subr.mxu0 0.0
        %2211 = vmatpush1.msra.mxu0 0.0
        %2212 = vmatprep.subr.mxu0 0.0
        %2213 = vmatpush1.msra.mxu0 0.0
        %2214 = vmatprep.subr.mxu0 0.0
        %2215 = vmatpush1.msra.mxu0 0.0
        %2216 = vmatprep.mubr.f32.mxu0 0.0
        %2217 = vmatmul.mubr.f32.gmra.mrb[0].mxu0 %v517
        %v2218 = vpop.f32.mrb[0].mxu0
        %v2219 = vadd.f32 %v2150, %v2218
        %v2220 = vpop.f32.mrb[0].mxu0
        %2221 = vdwg.mxu0
        %v2223 = vsel %vm743, %v2063, 0
        %v2226 = vsel %vm743, %v2141, 0
        %2228 = vmatprep.subr.mxu0 0.0
        %2229 = vmatpush1.xpose.msra.mxu0 %v2226
        %2230 = vmatprep.subr.mxu0 0.0
        %2231 = vmatpush1.xpose.msra.mxu0 0.0
        %2232 = vmatprep.subr.mxu0 0.0
        %2233 = vmatpush1.xpose.msra.mxu0 0.0
        %2234 = vmatprep.subr.mxu0 0.0
        %2235 = vmatpush1.xpose.msra.mxu0 0.0
        %2236 = vmatprep.subr.mxu0 0.0
        %2237 = vmatpush1.xpose.msra.mxu0 0.0
        %2238 = vmatprep.subr.mxu0 0.0
        %2239 = vmatpush1.xpose.msra.mxu0 0.0
        %2240 = vmatprep.subr.mxu0 0.0
        %2241 = vmatpush1.xpose.msra.mxu0 0.0
        %2242 = vmatprep.subr.mxu0 0.0
        %2243 = vmatpush1.xpose.msra.mxu0 0.0
        %2244 = vmatprep.subr.mxu0 0.0
        %2245 = vmatpush1.xpose.msra.mxu0 0.0
        %2246 = vmatprep.subr.mxu0 0.0
        %2247 = vmatpush1.xpose.msra.mxu0 0.0
        %2248 = vmatprep.subr.mxu0 0.0
        %2249 = vmatpush1.xpose.msra.mxu0 0.0
        %2250 = vmatprep.subr.mxu0 0.0
        %2251 = vmatpush1.xpose.msra.mxu0 0.0
        %2252 = vmatprep.subr.mxu0 0.0
        %2253 = vmatpush1.xpose.msra.mxu0 0.0
        %2254 = vmatprep.subr.mxu0 0.0
        %2255 = vmatpush1.xpose.msra.mxu0 0.0
        %2256 = vmatprep.subr.mxu0 0.0
        %2257 = vmatpush1.xpose.msra.mxu0 0.0
        %2258 = vmatprep.subr.mxu0 0.0
        %2259 = vmatpush1.xpose.msra.mxu0 0.0
        %2260 = vmatprep.subr.mxu0 0.0
        %2261 = vmatpush1.xpose.msra.mxu0 0.0
        %2262 = vmatprep.subr.mxu0 0.0
        %2263 = vmatpush1.xpose.msra.mxu0 0.0
        %2264 = vmatprep.subr.mxu0 0.0
        %2265 = vmatpush1.xpose.msra.mxu0 0.0
        %2266 = vmatprep.subr.mxu0 0.0
        %2267 = vmatpush1.xpose.msra.mxu0 0.0
        %2268 = vmatprep.subr.mxu0 0.0
        %2269 = vmatpush1.xpose.msra.mxu0 0.0
        %2270 = vmatprep.subr.mxu0 0.0
        %2271 = vmatpush1.xpose.msra.mxu0 0.0
        %2272 = vmatprep.subr.mxu0 0.0
        %2273 = vmatpush1.xpose.msra.mxu0 0.0
        %2274 = vmatprep.subr.mxu0 0.0
        %2275 = vmatpush1.xpose.msra.mxu0 0.0
        %2276 = vmatprep.subr.mxu0 0.0
        %2277 = vmatpush1.xpose.msra.mxu0 0.0
        %2278 = vmatprep.subr.mxu0 0.0
        %2279 = vmatpush1.xpose.msra.mxu0 0.0
        %2280 = vmatprep.subr.mxu0 0.0
        %2281 = vmatpush1.xpose.msra.mxu0 0.0
        %2282 = vmatprep.subr.mxu0 0.0
        %2283 = vmatpush1.xpose.msra.mxu0 0.0
        %2284 = vmatprep.subr.mxu0 0.0
        %2285 = vmatpush1.xpose.msra.mxu0 0.0
        %2286 = vmatprep.subr.mxu0 0.0
        %2287 = vmatpush1.xpose.msra.mxu0 0.0
        %2288 = vmatprep.subr.mxu0 0.0
        %2289 = vmatpush1.xpose.msra.mxu0 0.0
        %2290 = vmatprep.subr.mxu0 0.0
        %2291 = vmatpush1.xpose.msra.mxu0 0.0
        %2292 = vmatprep.mubr.f32.mxu0 0.0
        %2293 = vmatmul.mubr.f32.gmra.mrb[0].mxu0 %v2223
        %v2294 = vpop.f32.mrb[0].mxu0
        %v2295 = vadd.f32 0.0, %v2294
        %v2296 = vpop.f32.mrb[0].mxu0
        %2297 = vdwg.mxu0
        %v2298 = vmul.f32 %v2295, 0.31622776
        %v2299 = vsel %vm821, %v2298, -inf
        %2300 = vmax.xlane.f32.xlu0 %v2299
        %v2301 = vpop.xlane.xlu0 %2300
        %v2302 = vsub.f32 %v2298, %v2301
        %v2303 = vmul.f32 %v2302, 1.442695
        %v2304 = vpow.pop %v2303
        %v2305 = vsel %vm821, %v2304, 0.0
        %2306 = vadd.xlane.f32.xlu0 %v2305
        %v2307 = vpop.xlane.xlu0 %2306
        %v2308 = vrcp.pop %v2307
        %v2309 = vmul.f32 %v2304, %v2308
        %v2311 = vsel %vm821, %v2309, 0
        %2313 = vmatprep.subr.mxu0 0.0
        %2314 = vmatpush1.msra.mxu0 %v2219
        %2315 = vmatprep.subr.mxu0 0.0
        %2316 = vmatpush1.msra.mxu0 0.0
        %2317 = vmatprep.subr.mxu0 0.0
        %2318 = vmatpush1.msra.mxu0 0.0
        %2319 = vmatprep.subr.mxu0 0.0
        %2320 = vmatpush1.msra.mxu0 0.0
        %2321 = vmatprep.subr.mxu0 0.0
        %2322 = vmatpush1.msra.mxu0 0.0
        %2323 = vmatprep.subr.mxu0 0.0
        %2324 = vmatpush1.msra.mxu0 0.0
        %2325 = vmatprep.subr.mxu0 0.0
        %2326 = vmatpush1.msra.mxu0 0.0
        %2327 = vmatprep.subr.mxu0 0.0
        %2328 = vmatpush1.msra.mxu0 0.0
        %2329 = vmatprep.subr.mxu0 0.0
        %2330 = vmatpush1.msra.mxu0 0.0
        %2331 = vmatprep.subr.mxu0 0.0
        %2332 = vmatpush1.msra.mxu0 0.0
        %2333 = vmatprep.subr.mxu0 0.0
        %2334 = vmatpush1.msra.mxu0 0.0
        %2335 = vmatprep.subr.mxu0 0.0
        %2336 = vmatpush1.msra.mxu0 0.0
        %2337 = vmatprep.subr.mxu0 0.0
        %2338 = vmatpush1.msra.mxu0 0.0
        %2339 = vmatprep.subr.mxu0 0.0
        %2340 = vmatpush1.msra.mxu0 0.0
        %2341 = vmatprep.subr.mxu0 0.0
        %2342 = vmatpush1.msra.mxu0 0.0
        %2343 = vmatprep.subr.mxu0 0.0
        %2344 = vmatpush1.msra.mxu0 0.0
        %2345 = vmatprep.subr.mxu0 0.0
        %2346 = vmatpush1.msra.mxu0 0.0
        %2347 = vmatprep.subr.mxu0 0.0
        %2348 = vmatpush1.msra.mxu0 0.0
        %2349 = vmatprep.subr.mxu0 0.0
        %2350 = vmatpush1.msra.mxu0 0.0
        %2351 = vmatprep.subr.mxu0 0.0
        %2352 = vmatpush1.msra.mxu0 0.0
        %2353 = vmatprep.subr.mxu0 0.0
        %2354 = vmatpush1.msra.mxu0 0.0
        %2355 = vmatprep.subr.mxu0 0.0
        %2356 = vmatpush1.msra.mxu0 0.0
        %2357 = vmatprep.subr.mxu0 0.0
        %2358 = vmatpush1.msra.mxu0 0.0
        %2359 = vmatprep.subr.mxu0 0.0
        %2360 = vmatpush1.msra.mxu0 0.0
        %2361 = vmatprep.subr.mxu0 0.0
        %2362 = vmatpush1.msra.mxu0 0.0
        %2363 = vmatprep.subr.mxu0 0.0
        %2364 = vmatpush1.msra.mxu0 0.0
        %2365 = vmatprep.subr.mxu0 0.0
        %2366 = vmatpush1.msra.mxu0 0.0
        %2367 = vmatprep.subr.mxu0 0.0
        %2368 = vmatpush1.msra.mxu0 0.0
        %2369 = vmatprep.subr.mxu0 0.0
        %2370 = vmatpush1.msra.mxu0 0.0
        %2371 = vmatprep.subr.mxu0 0.0
        %2372 = vmatpush1.msra.mxu0 0.0
        %2373 = vmatprep.subr.mxu0 0.0
        %2374 = vmatpush1.msra.mxu0 0.0
        %2375 = vmatprep.subr.mxu0 0.0
        %2376 = vmatpush1.msra.mxu0 0.0
        %2377 = vmatprep.mubr.f32.mxu0 0.0
        %2378 = vmatmul.mubr.f32.gmra.mrb[0].mxu0 %v2311
        %v2379 = vpop.f32.mrb[0].mxu0
        %v2380 = vadd.f32 0.0, %v2379
        %v2381 = vpop.f32.mrb[0].mxu0
        %2382 = vdwg.mxu0
        %s2383 = scalar_lea.vmem %s7, 48
        %v2384 = vld [vmem:[%s2383] sm:$0xff]
        %v2385 = vld [vmem:[%s2383 + $0x8] sm:$0x3]
        %v2387 = vsel %vm743, %v2380, 0
        %v2390 = vsel %vm1327, %v2385, 0
        %2392 = vmatprep.subr.mxu0 0.0
        %2393 = vmatpush1.msra.mxu0 %v2384
        %2394 = vmatprep.subr.mxu0 0.0
        %2395 = vmatpush1.msra.mxu0 %v2390
        %2396 = vmatprep.subr.mxu0 0.0
        %2397 = vmatpush1.msra.mxu0 0.0
        %2398 = vmatprep.subr.mxu0 0.0
        %2399 = vmatpush1.msra.mxu0 0.0
        %2400 = vmatprep.subr.mxu0 0.0
        %2401 = vmatpush1.msra.mxu0 0.0
        %2402 = vmatprep.subr.mxu0 0.0
        %2403 = vmatpush1.msra.mxu0 0.0
        %2404 = vmatprep.subr.mxu0 0.0
        %2405 = vmatpush1.msra.mxu0 0.0
        %2406 = vmatprep.subr.mxu0 0.0
        %2407 = vmatpush1.msra.mxu0 0.0
        %2408 = vmatprep.subr.mxu0 0.0
        %2409 = vmatpush1.msra.mxu0 0.0
        %2410 = vmatprep.subr.mxu0 0.0
        %2411 = vmatpush1.msra.mxu0 0.0
        %2412 = vmatprep.subr.mxu0 0.0
        %2413 = vmatpush1.msra.mxu0 0.0
        %2414 = vmatprep.subr.mxu0 0.0
        %2415 = vmatpush1.msra.mxu0 0.0
        %2416 = vmatprep.subr.mxu0 0.0
        %2417 = vmatpush1.msra.mxu0 0.0
        %2418 = vmatprep.subr.mxu0 0.0
        %2419 = vmatpush1.msra.mxu0 0.0
        %2420 = vmatprep.subr.mxu0 0.0
        %2421 = vmatpush1.msra.mxu0 0.0
        %2422 = vmatprep.subr.mxu0 0.0
        %2423 = vmatpush1.msra.mxu0 0.0
        %2424 = vmatprep.subr.mxu0 0.0
        %2425 = vmatpush1.msra.mxu0 0.0
        %2426 = vmatprep.subr.mxu0 0.0
        %2427 = vmatpush1.msra.mxu0 0.0
        %2428 = vmatprep.subr.mxu0 0.0
        %2429 = vmatpush1.msra.mxu0 0.0
        %2430 = vmatprep.subr.mxu0 0.0
        %2431 = vmatpush1.msra.mxu0 0.0
        %2432 = vmatprep.subr.mxu0 0.0
        %2433 = vmatpush1.msra.mxu0 0.0
        %2434 = vmatprep.subr.mxu0 0.0
        %2435 = vmatpush1.msra.mxu0 0.0
        %2436 = vmatprep.subr.mxu0 0.0
        %2437 = vmatpush1.msra.mxu0 0.0
        %2438 = vmatprep.subr.mxu0 0.0
        %2439 = vmatpush1.msra.mxu0 0.0
        %2440 = vmatprep.subr.mxu0 0.0
        %2441 = vmatpush1.msra.mxu0 0.0
        %2442 = vmatprep.subr.mxu0 0.0
        %2443 = vmatpush1.msra.mxu0 0.0
        %2444 = vmatprep.subr.mxu0 0.0
        %2445 = vmatpush1.msra.mxu0 0.0
        %2446 = vmatprep.subr.mxu0 0.0
        %2447 = vmatpush1.msra.mxu0 0.0
        %2448 = vmatprep.subr.mxu0 0.0
        %2449 = vmatpush1.msra.mxu0 0.0
        %2450 = vmatprep.subr.mxu0 0.0
        %2451 = vmatpush1.msra.mxu0 0.0
        %2452 = vmatprep.subr.mxu0 0.0
        %2453 = vmatpush1.msra.mxu0 0.0
        %2454 = vmatprep.subr.mxu0 0.0
        %2455 = vmatpush1.msra.mxu0 0.0
        %2456 = vmatprep.mubr.f32.mxu0 0.0
        %2457 = vmatmul.mubr.f32.gmra.mrb[0].mxu0 %v2387
        %v2458 = vpop.f32.mrb[0].mxu0
        %v2459 = vadd.f32 0.0, %v2458
        %v2460 = vpop.f32.mrb[0].mxu0
        %2461 = vdwg.mxu0
        %v2462 = vadd.f32 %v1969, %v2459
        %v2463 = vld [vmem:[%s8] sm:$0x1]
        %v2465 = vlaneseq
        %v2466 = vshrl.u32 %v2465, 7
        %v2467 = vsub.s32 0, %v2466
        %v2468 = vrot.slane %v2463, %v2467
        %v2470 = vadd.f32 %v2462, %v2468
        %v2471 = vadd.f32 %v490, %v2470
        %v2472 = vsel %vm515, %v2471, 0.0
        %2473 = vadd.xlane.f32.xlu0 %v2472
        %v2474 = vpop.xlane.xlu0 %2473
        %v2475 = vrcp.pop 40.0
        %v2476 = vmul.f32 %v2474, %v2475
        %v2477 = vsub.f32 %v2471, %v2476
        %v2478 = vmul.f32 %v2477, %v2477
        %v2479 = vsel %vm515, %v2478, 0.0
        %2480 = vadd.xlane.f32.xlu0 %v2479
        %v2481 = vpop.xlane.xlu0 %2480
        %v2482 = vmul.f32 %v2481, %v2475
        %v2483 = vadd.f32 %v2482, 1e-05
        %v2484 = vrsqrt.pop %v2483
        %v2485 = vmul.f32 %v2477, %v2484
        %v2487 = vlaneseq
        %v2488 = vshrl.u32 %v2487, 7
        %v2489 = vsub.s32 0, %v2488
        %v2490 = vrot.slane %v491, %v2489
        %v2492 = vmul.f32 %v2485, %v2490
        %v2494 = vlaneseq
        %v2495 = vshrl.u32 %v2494, 7
        %v2496 = vsub.s32 0, %v2495
        %v2497 = vrot.slane %v492, %v2496
        %v2499 = vadd.f32 %v2492, %v2497
        %v2500 = vld [vmem:[%s9] sm:$0xff]
        %v2501 = vld [vmem:[%s9 + $0x8] sm:$0xff]
        %v2502 = vld [vmem:[%s9 + $0x10] sm:$0xff]
        %v2503 = vld [vmem:[%s9 + $0x18] sm:$0xff]
        %v2504 = vld [vmem:[%s9 + $0x20] sm:$0xff]
        %v2505 = vld [vmem:[%s9 + $0x28] sm:$0xff]
        %v2506 = vld [vmem:[%s9 + $0x30] sm:$0xff]
        %v2507 = vld [vmem:[%s9 + $0x38] sm:$0xff]
        %v2508 = vld [vmem:[%s9 + $0x40] sm:$0xff]
        %v2509 = vld [vmem:[%s9 + $0x48] sm:$0xff]
        %v2510 = vld [vmem:[%s10] sm:$0x3]
        %v2512 = vlaneseq
        %v2513 = vshrl.u32 %v2512, 7
        %v2514 = vsub.s32 0, %v2513
        %v2515 = vrot.slane %v2510, %v2514
        %v2516 = vlaneseq
        %v2517 = vshrl.u32 %v2516, 7
        %v2518 = vsub.s32 1, %v2517
        %v2519 = vrot.slane %v2510, %v2518
        %v2523 = vsel %vm515, %v2499, 0
        %2525 = vmatprep.subr.mxu0 %v2501
        %2526 = vmatpush1.msra.mxu0 %v2500
        %2527 = vmatprep.subr.mxu0 %v2503
        %2528 = vmatpush1.msra.mxu0 %v2502
        %2529 = vmatprep.subr.mxu0 %v2505
        %2530 = vmatpush1.msra.mxu0 %v2504
        %2531 = vmatprep.subr.mxu0 %v2507
        %2532 = vmatpush1.msra.mxu0 %v2506
        %2533 = vmatprep.subr.mxu0 %v2509
        %2534 = vmatpush1.msra.mxu0 %v2508
        %2535 = vmatprep.subr.mxu0 0.0
        %2536 = vmatpush1.msra.mxu0 0.0
        %2537 = vmatprep.subr.mxu0 0.0
        %2538 = vmatpush1.msra.mxu0 0.0
        %2539 = vmatprep.subr.mxu0 0.0
        %2540 = vmatpush1.msra.mxu0 0.0
        %2541 = vmatprep.subr.mxu0 0.0
        %2542 = vmatpush1.msra.mxu0 0.0
        %2543 = vmatprep.subr.mxu0 0.0
        %2544 = vmatpush1.msra.mxu0 0.0
        %2545 = vmatprep.subr.mxu0 0.0
        %2546 = vmatpush1.msra.mxu0 0.0
        %2547 = vmatprep.subr.mxu0 0.0
        %2548 = vmatpush1.msra.mxu0 0.0
        %2549 = vmatprep.subr.mxu0 0.0
        %2550 = vmatpush1.msra.mxu0 0.0
        %2551 = vmatprep.subr.mxu0 0.0
        %2552 = vmatpush1.msra.mxu0 0.0
        %2553 = vmatprep.subr.mxu0 0.0
        %2554 = vmatpush1.msra.mxu0 0.0
        %2555 = vmatprep.subr.mxu0 0.0
        %2556 = vmatpush1.msra.mxu0 0.0
        %2557 = vmatprep.subr.mxu0 0.0
        %2558 = vmatpush1.msra.mxu0 0.0
        %2559 = vmatprep.subr.mxu0 0.0
        %2560 = vmatpush1.msra.mxu0 0.0
        %2561 = vmatprep.subr.mxu0 0.0
        %2562 = vmatpush1.msra.mxu0 0.0
        %2563 = vmatprep.subr.mxu0 0.0
        %2564 = vmatpush1.msra.mxu0 0.0
        %2565 = vmatprep.subr.mxu0 0.0
        %2566 = vmatpush1.msra.mxu0 0.0
        %2567 = vmatprep.subr.mxu0 0.0
        %2568 = vmatpush1.msra.mxu0 0.0
        %2569 = vmatprep.subr.mxu0 0.0
        %2570 = vmatpush1.msra.mxu0 0.0
        %2571 = vmatprep.subr.mxu0 0.0
        %2572 = vmatpush1.msra.mxu0 0.0
        %2573 = vmatprep.subr.mxu0 0.0
        %2574 = vmatpush1.msra.mxu0 0.0
        %2575 = vmatprep.subr.mxu0 0.0
        %2576 = vmatpush1.msra.mxu0 0.0
        %2577 = vmatprep.subr.mxu0 0.0
        %2578 = vmatpush1.msra.mxu0 0.0
        %2579 = vmatprep.subr.mxu0 0.0
        %2580 = vmatpush1.msra.mxu0 0.0
        %2581 = vmatprep.subr.mxu0 0.0
        %2582 = vmatpush1.msra.mxu0 0.0
        %2583 = vmatprep.subr.mxu0 0.0
        %2584 = vmatpush1.msra.mxu0 0.0
        %2585 = vmatprep.subr.mxu0 0.0
        %2586 = vmatpush1.msra.mxu0 0.0
        %2587 = vmatprep.subr.mxu0 0.0
        %2588 = vmatpush1.msra.mxu0 0.0
        %2589 = vmatprep.mubr.f32.mxu0 0.0
        %2590 = vmatmul.mubr.f32.gmra.mrb[0].mxu0 %v2523
        %v2591 = vpop.f32.mrb[0].mxu0
        %v2592 = vadd.f32 %v2515, %v2591
        %v2593 = vpop.f32.mrb[0].mxu0
        %v2594 = vadd.f32 %v2519, %v2593
        %2595 = vdwg.mxu0
        %v2596 = vmax.f32 %v2592, 0.0
        %v2597 = vmax.f32 %v2594, 0.0
        %v2598 = vld [vmem:[%s11] sm:$0xff]
        %v2599 = vld [vmem:[%s11 + $0x8] sm:$0xff]
        %v2600 = vld [vmem:[%s11 + $0x10] sm:$0xff]
        %v2601 = vld [vmem:[%s11 + $0x18] sm:$0xff]
        %v2602 = vld [vmem:[%s11 + $0x20] sm:$0xff]
        %v2603 = vld [vmem:[%s11 + $0x28] sm:$0xff]
        %v2604 = vld [vmem:[%s11 + $0x30] sm:$0xff]
        %v2605 = vld [vmem:[%s11 + $0x38] sm:$0xff]
        %v2606 = vld [vmem:[%s11 + $0x40] sm:$0xff]
        %v2607 = vld [vmem:[%s11 + $0x48] sm:$0xff]
        %v2608 = vld [vmem:[%s11 + $0x50] sm:$0xff]
        %v2609 = vld [vmem:[%s11 + $0x58] sm:$0xff]
        %v2610 = vld [vmem:[%s11 + $0x60] sm:$0xff]
        %v2611 = vld [vmem:[%s11 + $0x68] sm:$0xff]
        %v2612 = vld [vmem:[%s11 + $0x70] sm:$0xff]
        %v2613 = vld [vmem:[%s11 + $0x78] sm:$0xff]
        %v2614 = vld [vmem:[%s11 + $0x80] sm:$0xff]
        %v2615 = vld [vmem:[%s11 + $0x88] sm:$0xff]
        %v2616 = vld [vmem:[%s11 + $0x90] sm:$0xff]
        %v2617 = vld [vmem:[%s11 + $0x98] sm:$0xff]
        %v2618 = vld [vmem:[%s12] sm:$0x1]
        %v2620 = vlaneseq
        %v2621 = vshrl.u32 %v2620, 7
        %v2622 = vsub.s32 0, %v2621
        %v2623 = vrot.slane %v2618, %v2622
        %vm2625 = vcmask 261120
        %v2627 = vsel %vm2625, %v2597, 0
        %2629 = vmatprep.subr.mxu0 0.0
        %2630 = vmatpush1.msra.mxu0 %v2598
        %2631 = vmatprep.subr.mxu0 0.0
        %2632 = vmatpush1.msra.mxu0 %v2599
        %2633 = vmatprep.subr.mxu0 0.0
        %2634 = vmatpush1.msra.mxu0 %v2600
        %2635 = vmatprep.subr.mxu0 0.0
        %2636 = vmatpush1.msra.mxu0 %v2601
        %2637 = vmatprep.subr.mxu0 0.0
        %2638 = vmatpush1.msra.mxu0 %v2602
        %2639 = vmatprep.subr.mxu0 0.0
        %2640 = vmatpush1.msra.mxu0 %v2603
        %2641 = vmatprep.subr.mxu0 0.0
        %2642 = vmatpush1.msra.mxu0 %v2604
        %2643 = vmatprep.subr.mxu0 0.0
        %2644 = vmatpush1.msra.mxu0 %v2605
        %2645 = vmatprep.subr.mxu0 0.0
        %2646 = vmatpush1.msra.mxu0 %v2606
        %2647 = vmatprep.subr.mxu0 0.0
        %2648 = vmatpush1.msra.mxu0 %v2607
        %2649 = vmatprep.subr.mxu0 0.0
        %2650 = vmatpush1.msra.mxu0 %v2608
        %2651 = vmatprep.subr.mxu0 0.0
        %2652 = vmatpush1.msra.mxu0 %v2609
        %2653 = vmatprep.subr.mxu0 0.0
        %2654 = vmatpush1.msra.mxu0 %v2610
        %2655 = vmatprep.subr.mxu0 0.0
        %2656 = vmatpush1.msra.mxu0 %v2611
        %2657 = vmatprep.subr.mxu0 0.0
        %2658 = vmatpush1.msra.mxu0 %v2612
        %2659 = vmatprep.subr.mxu0 0.0
        %2660 = vmatpush1.msra.mxu0 %v2613
        %2661 = vmatprep.subr.mxu0 0.0
        %2662 = vmatpush1.msra.mxu0 %v2614
        %2663 = vmatprep.subr.mxu0 0.0
        %2664 = vmatpush1.msra.mxu0 %v2615
        %2665 = vmatprep.subr.mxu0 0.0
        %2666 = vmatpush1.msra.mxu0 %v2616
        %2667 = vmatprep.subr.mxu0 0.0
        %2668 = vmatpush1.msra.mxu0 %v2617
        %2669 = vmatprep.subr.mxu0 0.0
        %2670 = vmatpush1.msra.mxu0 0.0
        %2671 = vmatprep.subr.mxu0 0.0
        %2672 = vmatpush1.msra.mxu0 0.0
        %2673 = vmatprep.subr.mxu0 0.0
        %2674 = vmatpush1.msra.mxu0 0.0
        %2675 = vmatprep.subr.mxu0 0.0
        %2676 = vmatpush1.msra.mxu0 0.0
        %2677 = vmatprep.subr.mxu0 0.0
        %2678 = vmatpush1.msra.mxu0 0.0
        %2679 = vmatprep.subr.mxu0 0.0
        %2680 = vmatpush1.msra.mxu0 0.0
        %2681 = vmatprep.subr.mxu0 0.0
        %2682 = vmatpush1.msra.mxu0 0.0
        %2683 = vmatprep.subr.mxu0 0.0
        %2684 = vmatpush1.msra.mxu0 0.0
        %2685 = vmatprep.subr.mxu0 0.0
        %2686 = vmatpush1.msra.mxu0 0.0
        %2687 = vmatprep.subr.mxu0 0.0
        %2688 = vmatpush1.msra.mxu0 0.0
        %2689 = vmatprep.subr.mxu0 0.0
        %2690 = vmatpush1.msra.mxu0 0.0
        %2691 = vmatprep.subr.mxu0 0.0
        %2692 = vmatpush1.msra.mxu0 0.0
        %2693 = vmatprep.mubr.f32.mxu0 %v2627
        %2694 = vmatmul.mubr.f32.gmra.mrb[0].mxu0 %v2596
        %v2695 = vpop.f32.mrb[0].mxu0
        %v2696 = vadd.f32 %v2623, %v2695
        %v2697 = vpop.f32.mrb[0].mxu0
        %2698 = vdwg.mxu0
        %v2699 = vadd.f32 %v2499, %v2696
        %v2700 = vsel %vm515, %v2699, 0.0
        %2701 = vadd.xlane.f32.xlu0 %v2700
        %v2702 = vpop.xlane.xlu0 %2701
        %v2703 = vmul.f32 %v2702, %v2475
        %v2704 = vsub.f32 %v2699, %v2703
        %v2705 = vmul.f32 %v2704, %v2704
        %v2706 = vsel %vm515, %v2705, 0.0
        %2707 = vadd.xlane.f32.xlu0 %v2706
        %v2708 = vpop.xlane.xlu0 %2707
        %v2709 = vmul.f32 %v2708, %v2475
        %v2710 = vadd.f32 %v2709, 1e-05
        %v2711 = vrsqrt.pop %v2710
        %v2712 = vmul.f32 %v2704, %v2711
        %v2713 = vmul.f32 %v2712, %v2490
        %v2714 = vadd.f32 %v2713, %v2497
        %2715 = vst.msk [vmem:[%s485] sm:$0xff] %vm515, %v2714
        %s2716 = sand.u32 %s357, 1
        %s2717 = scalar_lea.sflag [#allocation3], %s2716
        %s2718 = sand.u32 %s357, 1
        %s2719 = smul.addr %s2718, 8
        %s2720 = scalar_lea.vmem [#allocation2], %s2719
        // Predicated region
        $region81: #{tpu_custom_call.1} parent=79 // pred_check
          %p2721 = pneg %p367
        $region82: #{tpu_custom_call.1} parent=79 // pred_check_branch
          %2723 = sbr.rel (%p2721) target = $region84
        $region83: #{tpu_custom_call.1} parent=79 // pred_region
          %s2725 = ssub.s32 128, 128
          %2726 = vsyncadd %s2717, %s2725
          %s2727 = smul.addr %s29, 128
          %s2728 = scalar_lea.hbm %s15, %s2727
          %s2730 = sshll.u32 %s2720, 4
          %s2731 = int_to_ptr.vmem [resolvable:$true] %s2730
          %2733 = dma.vmem_to_hbm [thread:$0]  %s2731, 128, %s2728, %s2717
        $region84: #{tpu_custom_call.1} parent=79 // pred_fallthru
          _
      $region80: #{tpu_custom_call.1} parent=5 // pred_fallthru
        _
      %p2734 = scmp.le.s32.totalorder 2, %s24
      // Predicated region
      $region85: #{tpu_custom_call.1} parent=5 // pred_check
        %p2735 = pneg %p2734
      $region86: #{tpu_custom_call.1} parent=5 // pred_check_branch
        %2737 = sbr.rel (%p2735) target = $region88
      $region87: #{tpu_custom_call.1} parent=5 // pred_region
        %s2738 = ssub.s32 %s24, 2
        // Predicated region
        $region89: #{tpu_custom_call.1} parent=87 // pred_check
          %p2739 = pneg %p373
        $region90: #{tpu_custom_call.1} parent=87 // pred_check_branch
          %2741 = sbr.rel (%p2739) target = $region92
        $region91: #{tpu_custom_call.1} parent=87 // pred_region
          %s2742 = sand.u32 %s358, 1
          %s2743 = scalar_lea.sflag [#allocation3], %s2742
          %s2744 = sand.u32 %s358, 1
          %s2745 = smul.addr %s2744, 8
          %s2746 = scalar_lea.vmem [#allocation2], %s2745
          %2747 = dma.done %s2743, 128
        $region92: #{tpu_custom_call.1} parent=87 // pred_fallthru
          _
      $region88: #{tpu_custom_call.1} parent=5 // pred_fallthru
        _
    $region6: #{tpu_custom_call.1} parent=1 // loop_footer
      %s28 = sadd.s32 1, %s24
    $region7: #{tpu_custom_call.1} parent=1 // loop_footer_branch
      %23 = sbr.rel target = $region3
    $region8: #{tpu_custom_call.1} parent=1 // loop_exit
      _
    %2748 = vsyncpa [#allocation3], 1
    %s2749 = scalar_lea.sflag [#allocation3], 1
    %2750 = vsyncpa %s2749, 1

</llo_original>
